<compile_context>
chip_gen: v7x
topology: tpu7x:2x2x1
jax: 0.10.0
libtpu: 0.0.40
codegen_flags: <defaults>
</compile_context>

<pallas_src>
import functools
import numpy as np
import jax
import jax.numpy as jnp
from jax import lax
from jax.experimental import pallas as pl
from jax.experimental.pallas import tpu as pltpu

LN_EPS = 1e-5


# -------------------- fused Pallas kernel: all layers, one batch chunk per grid row --------------------
def _cx_stack_kernel(q_ref, k_ref, qp_ref, kp_ref,
                     wq_ref, bq_ref, wk_ref, bk_ref, wv_ref, bv_ref,
                     wo_ref, bo_ref, g1_ref, be1_ref,
                     w1_ref, b1_ref, w2_ref, b2_ref, g2_ref, be2_ref,
                     out_ref, attn_ref,
                     x_vmem, q_vmem, k_vmem, v_vmem, ctx_vmem,
                     *, nhead, batch_block, lq, lk):
    layer = pl.program_id(1)
    f32 = jnp.float32
    cdt = wq_ref.dtype                        # MXU compute dtype (f32 or bf16), f32 accumulation
    D = x_vmem.shape[-1]
    dh = D // nhead
    scale = 1.0 / float(np.sqrt(dh))
    inv_h = 1.0 / float(nhead)

    # Layer 0 of each batch chunk: load the query into the resident VMEM activation
    # buffer; it stays in VMEM for all subsequent layers.
    @pl.when(layer == 0)
    def _():
        x_vmem[...] = q_ref[...].astype(f32)

    x = x_vmem[...]                           # (bb*Lq, D) current activations (f32)
    key = k_ref[...].astype(f32)              # (bb*Lk, D)
    qq = x + qp_ref[...].astype(f32)          # query + positional embedding
    kk = key + kp_ref[...].astype(f32)        # key   + positional embedding

    def mm(a, w):                             # MXU matmul, f32 accumulation
        return jnp.dot(a, w, preferred_element_type=f32)

    # ---- in-projections: full-chunk M, full-K matmuls; cast to compute dtype ONCE ----
    q_vmem[...] = (mm(qq.astype(cdt), wq_ref[0]) + bq_ref[0].astype(f32)).astype(cdt)
    k_vmem[...] = (mm(kk.astype(cdt), wk_ref[0]) + bk_ref[0].astype(f32)).astype(cdt)
    v_vmem[...] = (mm(key.astype(cdt), wv_ref[0]) + bv_ref[0].astype(f32)).astype(cdt)

    # ---- attention: fori_loop over batches (bounded live ranges); per-head ctx written
    #      into its column slot of ctx_vmem; output projection deferred to ONE matmul ----
    def batch_body(b, carry):
        r0q = b * lq
        r0k = b * lk
        if lq % 8 == 0:
            r0q = pl.multiple_of(r0q, 8)
        if lk % 8 == 0:
            r0k = pl.multiple_of(r0k, 8)
        attn_sum = jnp.zeros((lq, lk), f32)
        for h in range(nhead):                # small static head loop
            c0 = h * dh
            qh = q_vmem[pl.ds(r0q, lq), pl.ds(c0, dh)]
            kh = k_vmem[pl.ds(r0k, lk), pl.ds(c0, dh)]
            vh = v_vmem[pl.ds(r0k, lk), pl.ds(c0, dh)]
            # q @ k^T via dot_general contracting the last dims (no explicit .T)
            s = lax.dot_general(qh, kh, (((1,), (1,)), ((), ())),
                                preferred_element_type=f32) * scale
            s = s - jnp.max(s, axis=-1, keepdims=True)
            e = jnp.exp(s)
            d = jnp.sum(e, axis=-1, keepdims=True)
            r = pl.reciprocal(d, approx=True)
            r = r * (2.0 - d * r)             # one Newton step -> near-exact softmax rows
            p = e * r
            attn_sum = attn_sum + p
            ctx = mm(p.astype(cdt), vh)       # (lq, dh)
            ctx_vmem[pl.ds(r0q, lq), pl.ds(c0, dh)] = ctx.astype(cdt)
        # head-averaged attention weights: written straight to the output ref (no scratch)
        attn_ref[0, pl.ds(r0q, lq), :] = attn_sum * inv_h
        return carry

    lax.fori_loop(0, batch_block, batch_body, 0)

    # ---- single full-K output projection for the whole chunk ----
    attn_out = mm(ctx_vmem[...], wo_ref[0]) + bo_ref[0].astype(f32)

    def layernorm(v, g, be):
        mu = jnp.mean(v, axis=-1, keepdims=True)
        var = jnp.mean((v - mu) ** 2, axis=-1, keepdims=True)
        return (v - mu) * lax.rsqrt(var + LN_EPS) * g.astype(f32) + be.astype(f32)

    # ---- residual + LN1, FFN, residual + LN2 (flattened over batch*Lq rows) ----
    xn = layernorm(x + attn_out, g1_ref[0], be1_ref[0])
    f1 = jnp.maximum(mm(xn.astype(cdt), w1_ref[0]) + b1_ref[0].astype(f32), 0.0)
    f2 = mm(f1.astype(cdt), w2_ref[0]) + b2_ref[0].astype(f32)
    y = layernorm(xn + f2, g2_ref[0], be2_ref[0])

    x_vmem[...] = y                           # carry activations to the next layer (stays in VMEM)
    out_ref[0] = y.astype(out_ref.dtype)


# -------------------- VMEM budget (double-buffered inputs/weights/outputs + scratch) --------------------
def _pick_vmem_limit(rows_q, rows_k, D, Dff, Lk, wbytes, cbytes, obytes):
    weights = 2 * ((4 * D * D + 2 * D * Dff) * wbytes + 10 * D * 4 + 2 * Dff * 4)
    tokens = 2 * 2 * (rows_q + rows_k) * D * 4
    outs = 2 * rows_q * (D * obytes + Lk * 4)
    scratch = rows_q * D * 4 + (2 * rows_q + 2 * rows_k) * D * cbytes
    total = weights + tokens + outs + scratch
    # headroom for compiler temporaries; clamp to a range that is safe on v5e/v6e (128 MiB)
    # and within v7x's 64 MiB physical VMEM for the demo-scale chunk sizes used here.
    return int(min(max(int(total * 1.5) + (8 << 20), 32 << 20), 100 << 20))


# -------------------- pallas_call wrapper --------------------
def cx_encoder_stack(q_bf, k_bf, qp_bf, kp_bf, params, *, nhead,
                     batch_block=None, out_dtype=jnp.float32):
    """q_bf/k_bf batch-first (B, L, D) f32; params are layer-stacked (NL, ...)."""
    B, Lq, D = q_bf.shape
    Lk = k_bf.shape[1]
    NL = params["wq"].shape[0]
    Dff = params["w1"].shape[-1]
    assert D % nhead == 0

    if batch_block is None:
        batch_block = B
        try:
            kind = jax.devices()[0].device_kind.lower()
            # v7x has 2 TensorCores: split the batch so the "parallel" axis shards across them.
            if ("v7" in kind or "7x" in kind) and B % 2 == 0:
                batch_block = B // 2
        except Exception:
            pass
    assert B % batch_block == 0
    nb = B // batch_block                    # parallel grid axis (megacore / dual-TC splittable)
    rows_q = batch_block * Lq
    rows_k = batch_block * Lk

    cdt = params["wq"].dtype
    wbytes = jnp.dtype(cdt).itemsize
    obytes = jnp.dtype(out_dtype).itemsize
    vmem_limit = _pick_vmem_limit(rows_q, rows_k, D, Dff, Lk, wbytes, wbytes, obytes)

    qf = q_bf.reshape(B * Lq, D)
    kf = k_bf.reshape(B * Lk, D)
    qpf = qp_bf.reshape(B * Lq, D)
    kpf = kp_bf.reshape(B * Lk, D)

    def tok_spec(rows):                      # depends only on the batch chunk -> fetched once per chunk
        return pl.BlockSpec((rows, D), lambda c, l: (c, 0))

    def w_spec(r, cdim):                     # per-layer weight slab, streamed along the layer axis
        return pl.BlockSpec((1, r, cdim), lambda c, l: (l, 0, 0))

    kernel = functools.partial(_cx_stack_kernel, nhead=nhead,
                               batch_block=batch_block, lq=Lq, lk=Lk)

    out_all, attn_all = pl.pallas_call(
        kernel,
        out_shape=(
            jax.ShapeDtypeStruct((NL, B * Lq, D), out_dtype),
            jax.ShapeDtypeStruct((NL, B * Lq, Lk), jnp.float32),
        ),
        grid=(nb, NL),
        in_specs=[
            tok_spec(rows_q), tok_spec(rows_k), tok_spec(rows_q), tok_spec(rows_k),
            w_spec(D, D), w_spec(1, D),       # Wq, bq
            w_spec(D, D), w_spec(1, D),       # Wk, bk
            w_spec(D, D), w_spec(1, D),       # Wv, bv
            w_spec(D, D), w_spec(1, D),       # Wo, bo
            w_spec(1, D), w_spec(1, D),       # norm1 gamma, beta
            w_spec(D, Dff), w_spec(1, Dff),   # linear1
            w_spec(Dff, D), w_spec(1, D),     # linear2
            w_spec(1, D), w_spec(1, D),       # norm2 gamma, beta
        ],
        out_specs=(
            pl.BlockSpec((1, rows_q, D), lambda c, l: (l, c, 0)),
            pl.BlockSpec((1, rows_q, Lk), lambda c, l: (l, c, 0)),
        ),
        scratch_shapes=[
            pltpu.VMEM((rows_q, D), jnp.float32),   # resident activations across layers
            pltpu.VMEM((rows_q, D), cdt),           # Q (compute dtype, cast once)
            pltpu.VMEM((rows_k, D), cdt),           # K
            pltpu.VMEM((rows_k, D), cdt),           # V
            pltpu.VMEM((rows_q, D), cdt),           # per-head ctx slots -> one Wo matmul
        ],
        compiler_params=pltpu.CompilerParams(
            dimension_semantics=("parallel", "arbitrary"),  # batch chunks parallel, layers serial
            vmem_limit_bytes=vmem_limit,
        ),
    )(qf, kf, qpf, kpf,
      params["wq"], params["bq"], params["wk"], params["bk"],
      params["wv"], params["bv"], params["wo"], params["bo"],
      params["g1"], params["be1"], params["w1"], params["b1"],
      params["w2"], params["b2"], params["g2"], params["be2"])
    return out_all, attn_all


# -------------------- CXTransformerEncoder forward (glue) --------------------
def stack_layer_params(layer_params, param_dtype=jnp.bfloat16):
    """Stack per-layer param dicts along a leading layer axis; cast matmul weights to param_dtype
    (bf16 default: halves weight DMA + weight double-buffer VMEM; biases/LN stay f32)."""
    mats = ("wq", "wk", "wv", "wo", "w1", "w2")
    vecs = ("bq", "bk", "bv", "bo", "g1", "be1", "b1", "b2", "g2", "be2")
    out = {n: jnp.stack([p[n] for p in layer_params], 0).astype(param_dtype) for n in mats}
    out.update({n: jnp.stack([p[n] for p in layer_params], 0).astype(jnp.float32) for n in vecs})
    return out


def cx_transformer_encoder(query, key, layer_params, q_pos=None, k_pos=None,
                           nhead=4, final_norm=None, param_dtype=jnp.bfloat16,
                           batch_block=None, out_dtype=jnp.float32):
    """Inputs are PyTorch seq-first: query (Lq, B, D), key (Lk, B, D)."""
    # TODO(synk): src_mask / src_key_padding_mask not implemented (None in the example).
    if q_pos is None:
        q_pos = jnp.zeros_like(query)
    if k_pos is None:
        k_pos = jnp.zeros_like(key)

    # single seq-first -> batch-first transpose for the whole stack
    q_bf = jnp.transpose(query, (1, 0, 2)).astype(jnp.float32)
    k_bf = jnp.transpose(key, (1, 0, 2)).astype(jnp.float32)
    qp_bf = jnp.transpose(q_pos, (1, 0, 2)).astype(jnp.float32)
    kp_bf = jnp.transpose(k_pos, (1, 0, 2)).astype(jnp.float32)

    B, Lq, D = q_bf.shape
    Lk = k_bf.shape[1]
    NL = len(layer_params)

    stacked = stack_layer_params(layer_params, param_dtype)
    out_all, attn_all = cx_encoder_stack(q_bf, k_bf, qp_bf, kp_bf, stacked,
                                         nhead=nhead, batch_block=batch_block,
                                         out_dtype=out_dtype)

    # single batch-first -> seq-first transpose of the whole (NL, ...) stack
    out_sf = jnp.transpose(out_all.reshape(NL, B, Lq, D), (0, 2, 1, 3)).astype(jnp.float32)
    attn_all = attn_all.reshape(NL, B, Lq, Lk)

    output = out_sf[-1]
    if final_norm is not None:      # optional nn.LayerNorm(d_model) on the final output (glue)
        g, b = final_norm
        mu = jnp.mean(output, -1, keepdims=True)
        var = jnp.mean((output - mu) ** 2, -1, keepdims=True)
        output = (output - mu) * lax.rsqrt(var + LN_EPS) * g + b

    output_list = [out_sf[i] for i in range(NL)]
    attn_list = [attn_all[i] for i in range(NL)]
    return output, output_list, attn_list


# -------------------- deterministic parameter init --------------------
def init_layer_params(key, d_model, dff):
    ks = jax.random.split(key, 8)
    s = 0.02
    f32 = jnp.float32
    return dict(
        wq=s * jax.random.normal(ks[0], (d_model, d_model), f32),
        wk=s * jax.random.normal(ks[1], (d_model, d_model), f32),
        wv=s * jax.random.normal(ks[2], (d_model, d_model), f32),
        bq=s * jax.random.normal(ks[3], (1, d_model), f32),
        bk=jnp.zeros((1, d_model), f32),
        bv=jnp.zeros((1, d_model), f32),
        wo=s * jax.random.normal(ks[4], (d_model, d_model), f32),
        bo=jnp.zeros((1, d_model), f32),
        g1=jnp.ones((1, d_model), f32), be1=jnp.zeros((1, d_model), f32),
        w1=s * jax.random.normal(ks[5], (d_model, dff), f32),
        b1=s * jax.random.normal(ks[6], (1, dff), f32),
        w2=s * jax.random.normal(ks[7], (dff, d_model), f32),
        b2=jnp.zeros((1, d_model), f32),
        g2=jnp.ones((1, d_model), f32), be2=jnp.zeros((1, d_model), f32),
    )


# -------------------- pure-JAX reference (for correctness check) --------------------
def _ref_layer(q_bf, k_bf, qp_bf, kp_bf, p, nhead):
    B, Lq, D = q_bf.shape
    Lk = k_bf.shape[1]
    dh = D // nhead
    Q = (q_bf + qp_bf) @ p["wq"] + p["bq"]
    K = (k_bf + kp_bf) @ p["wk"] + p["bk"]
    V = k_bf @ p["wv"] + p["bv"]
    Qh = Q.reshape(B, Lq, nhead, dh).transpose(0, 2, 1, 3)
    Kh = K.reshape(B, Lk, nhead, dh).transpose(0, 2, 1, 3)
    Vh = V.reshape(B, Lk, nhead, dh).transpose(0, 2, 1, 3)
    s = jnp.einsum("bhqd,bhkd->bhqk", Qh, Kh) / np.sqrt(dh)
    pmat = jax.nn.softmax(s, axis=-1)
    ctx = jnp.einsum("bhqk,bhkd->bhqd", pmat, Vh).transpose(0, 2, 1, 3).reshape(B, Lq, D)
    attn_out = ctx @ p["wo"] + p["bo"]

    def ln(x, g, b):
        mu = jnp.mean(x, -1, keepdims=True)
        var = jnp.mean((x - mu) ** 2, -1, keepdims=True)
        return (x - mu) * lax.rsqrt(var + LN_EPS) * g + b

    x = ln(q_bf + attn_out, p["g1"], p["be1"])
    h = jnp.maximum(x @ p["w1"] + p["b1"], 0.0) @ p["w2"] + p["b2"]
    y = ln(x + h, p["g2"], p["be2"])
    return y, jnp.mean(pmat, axis=1)


if __name__ == "__main__":
    # small shapes: seq Lq=Lk=8, batch=2, d_model=32, nhead=4, dff=64, 2 layers
    Lq, Lk, B, D, NHEAD, DFF, NLAYERS = 8, 8, 2, 32, 4, 64, 2

    root = jax.random.PRNGKey(0)
    k_q, k_k, k_qp, k_kp, k_params = jax.random.split(root, 5)
    query = jax.random.normal(k_q, (Lq, B, D), jnp.float32)
    key = jax.random.normal(k_k, (Lk, B, D), jnp.float32)
    q_pos = jax.random.normal(k_qp, (Lq, B, D), jnp.float32)
    k_pos = jax.random.normal(k_kp, (Lk, B, D), jnp.float32)

    layer_params = [init_layer_params(k, D, DFF)
                    for k in jax.random.split(k_params, NLAYERS)]

    # fused kernel, f32 weights (strict check vs pure-JAX reference)
    output, output_list, attn_list = cx_transformer_encoder(
        query, key, layer_params, q_pos=q_pos, k_pos=k_pos, nhead=NHEAD,
        final_norm=None, param_dtype=jnp.float32)
    jax.block_until_ready(output)
    jax.block_until_ready(attn_list[-1])

    # pure-JAX reference
    qb = jnp.transpose(query, (1, 0, 2))
    kb = jnp.transpose(key, (1, 0, 2))
    qpb = jnp.transpose(q_pos, (1, 0, 2))
    kpb = jnp.transpose(k_pos, (1, 0, 2))
    ref = qb
    for p in layer_params:
        ref, ref_attn = _ref_layer(ref, kb, qpb, kpb, p, NHEAD)
    ref_out = jnp.transpose(ref, (1, 0, 2))

    assert output.shape == (Lq, B, D)
    assert attn_list[-1].shape == (B, Lq, Lk)
    assert len(output_list) == NLAYERS and len(attn_list) == NLAYERS
    # approx-reciprocal softmax gets a Newton step in the kernel -> tight tolerance is fine
    np.testing.assert_allclose(np.asarray(output), np.asarray(ref_out), rtol=2e-2, atol=2e-2)
    np.testing.assert_allclose(np.asarray(attn_list[-1]), np.asarray(ref_attn), rtol=1e-2, atol=1e-2)

    # bf16-weight fast path (default: bf16 MXU operands, f32 accumulation): run + coarse check
    out_bf16, _, _ = cx_transformer_encoder(
        query, key, layer_params, q_pos=q_pos, k_pos=k_pos, nhead=NHEAD, final_norm=None)
    jax.block_until_ready(out_bf16)
    diff = np.abs(np.asarray(out_bf16, np.float32) - np.asarray(ref_out, np.float32))
    assert np.all(np.isfinite(diff)) and float(diff.max()) < 0.5

    print("KERNEL_OK")
</pallas_src>

<mosaic_0001>
module attributes {stable_mosaic.version = 11 : i64} {
  func.func @_cx_stack_kernel(%arg0: i32, %arg1: i32, %arg2: memref<16x32xf32, #tpu.memory_space<vmem>>, %arg3: memref<16x32xf32, #tpu.memory_space<vmem>>, %arg4: memref<16x32xf32, #tpu.memory_space<vmem>>, %arg5: memref<16x32xf32, #tpu.memory_space<vmem>>, %arg6: memref<1x32x32xf32, #tpu.memory_space<vmem>>, %arg7: memref<1x1x32xf32, #tpu.memory_space<vmem>>, %arg8: memref<1x32x32xf32, #tpu.memory_space<vmem>>, %arg9: memref<1x1x32xf32, #tpu.memory_space<vmem>>, %arg10: memref<1x32x32xf32, #tpu.memory_space<vmem>>, %arg11: memref<1x1x32xf32, #tpu.memory_space<vmem>>, %arg12: memref<1x32x32xf32, #tpu.memory_space<vmem>>, %arg13: memref<1x1x32xf32, #tpu.memory_space<vmem>>, %arg14: memref<1x1x32xf32, #tpu.memory_space<vmem>>, %arg15: memref<1x1x32xf32, #tpu.memory_space<vmem>>, %arg16: memref<1x32x64xf32, #tpu.memory_space<vmem>>, %arg17: memref<1x1x64xf32, #tpu.memory_space<vmem>>, %arg18: memref<1x64x32xf32, #tpu.memory_space<vmem>>, %arg19: memref<1x1x32xf32, #tpu.memory_space<vmem>>, %arg20: memref<1x1x32xf32, #tpu.memory_space<vmem>>, %arg21: memref<1x1x32xf32, #tpu.memory_space<vmem>>, %arg22: memref<1x16x32xf32, #tpu.memory_space<vmem>>, %arg23: memref<1x16x8xf32, #tpu.memory_space<vmem>>, %arg24: memref<16x32xf32, #tpu.memory_space<vmem>>, %arg25: memref<16x32xf32, #tpu.memory_space<vmem>>, %arg26: memref<16x32xf32, #tpu.memory_space<vmem>>, %arg27: memref<16x32xf32, #tpu.memory_space<vmem>>, %arg28: memref<16x32xf32, #tpu.memory_space<vmem>>) attributes {dimension_semantics = [#tpu.dimension_semantics<parallel>, #tpu.dimension_semantics<arbitrary>], iteration_bounds = array<i64: 1, 2>, scalar_prefetch = 0 : i64, scratch_operands = 5 : i64, tpu.core_type = #tpu.core_type<tc>, window_params = [{transform_indices = @transform_0, window_bounds = array<i64: 16, 32>}, {transform_indices = @transform_1, window_bounds = array<i64: 16, 32>}, {transform_indices = @transform_2, window_bounds = array<i64: 16, 32>}, {transform_indices = @transform_3, window_bounds = array<i64: 16, 32>}, {transform_indices = @transform_4, window_bounds = array<i64: 1, 32, 32>}, {transform_indices = @transform_5, window_bounds = array<i64: 1, 1, 32>}, {transform_indices = @transform_6, window_bounds = array<i64: 1, 32, 32>}, {transform_indices = @transform_7, window_bounds = array<i64: 1, 1, 32>}, {transform_indices = @transform_8, window_bounds = array<i64: 1, 32, 32>}, {transform_indices = @transform_9, window_bounds = array<i64: 1, 1, 32>}, {transform_indices = @transform_10, window_bounds = array<i64: 1, 32, 32>}, {transform_indices = @transform_11, window_bounds = array<i64: 1, 1, 32>}, {transform_indices = @transform_12, window_bounds = array<i64: 1, 1, 32>}, {transform_indices = @transform_13, window_bounds = array<i64: 1, 1, 32>}, {transform_indices = @transform_14, window_bounds = array<i64: 1, 32, 64>}, {transform_indices = @transform_15, window_bounds = array<i64: 1, 1, 64>}, {transform_indices = @transform_16, window_bounds = array<i64: 1, 64, 32>}, {transform_indices = @transform_17, window_bounds = array<i64: 1, 1, 32>}, {transform_indices = @transform_18, window_bounds = array<i64: 1, 1, 32>}, {transform_indices = @transform_19, window_bounds = array<i64: 1, 1, 32>}, {transform_indices = @transform_20, window_bounds = array<i64: 1, 16, 32>}, {transform_indices = @transform_21, window_bounds = array<i64: 1, 16, 8>}]} {
    %c0_i32 = arith.constant 0 : i32
    %0 = arith.cmpi eq, %arg1, %c0_i32 : i32
    %1 = arith.extui %0 : i1 to i32
    %c0_i32_0 = arith.constant 0 : i32
    %2 = arith.cmpi ne, %1, %c0_i32_0 : i32
    scf.if %2 {
      %c0_87 = arith.constant 0 : index
      %c0_88 = arith.constant 0 : index
      %116 = vector.load %arg2[%c0_87, %c0_88] : memref<16x32xf32, #tpu.memory_space<vmem>>, vector<16x32xf32>
      %c0_89 = arith.constant 0 : index
      %c0_90 = arith.constant 0 : index
      %117 = vector.load %arg24[%c0_89, %c0_90] : memref<16x32xf32, #tpu.memory_space<vmem>>, vector<16x32xf32>
      tpu.vector_store %arg24[%c0_89, %c0_90], %116 {strides = array<i32>} : memref<16x32xf32, #tpu.memory_space<vmem>>, vector<16x32xf32>,
    } else {
    }
    %c0 = arith.constant 0 : index
    %c0_1 = arith.constant 0 : index
    %3 = vector.load %arg24[%c0, %c0_1] : memref<16x32xf32, #tpu.memory_space<vmem>>, vector<16x32xf32>
    %c0_2 = arith.constant 0 : index
    %c0_3 = arith.constant 0 : index
    %4 = vector.load %arg3[%c0_2, %c0_3] : memref<16x32xf32, #tpu.memory_space<vmem>>, vector<16x32xf32>
    %c0_4 = arith.constant 0 : index
    %c0_5 = arith.constant 0 : index
    %5 = vector.load %arg4[%c0_4, %c0_5] : memref<16x32xf32, #tpu.memory_space<vmem>>, vector<16x32xf32>
    %6 = arith.addf %3, %5 : vector<16x32xf32>
    %c0_6 = arith.constant 0 : index
    %c0_7 = arith.constant 0 : index
    %7 = vector.load %arg5[%c0_6, %c0_7] : memref<16x32xf32, #tpu.memory_space<vmem>>, vector<16x32xf32>
    %8 = arith.addf %4, %7 : vector<16x32xf32>
    %c0_8 = arith.constant 0 : index
    %c0_9 = arith.constant 0 : index
    %c0_10 = arith.constant 0 : index
    %9 = vector.load %arg6[%c0_8, %c0_9, %c0_10] : memref<1x32x32xf32, #tpu.memory_space<vmem>>, vector<1x32x32xf32>
    %10 = vector.shape_cast %9 : vector<1x32x32xf32> to vector<32x32xf32>
    %cst = arith.constant dense<0.000000e+00> : vector<16x32xf32>
    %11 = tpu.matmul %6, %10, %cst {dimension_numbers = #tpu.dot_dimension_numbers<[1], [0], [0], [1], [0, 0, 1, 1], [], []>} : vector<16x32xf32>, vector<32x32xf32>, vector<16x32xf32> -> vector<16x32xf32>
    %c0_11 = arith.constant 0 : index
    %c0_12 = arith.constant 0 : index
    %c0_13 = arith.constant 0 : index
    %12 = vector.load %arg7[%c0_11, %c0_12, %c0_13] : memref<1x1x32xf32, #tpu.memory_space<vmem>>, vector<1x1x32xf32>
    %13 = vector.shape_cast %12 : vector<1x1x32xf32> to vector<1x32xf32>
    %14 = vector.broadcast %13 : vector<1x32xf32> to vector<16x32xf32>
    %15 = arith.addf %11, %14 : vector<16x32xf32>
    %c0_14 = arith.constant 0 : index
    %c0_15 = arith.constant 0 : index
    %16 = vector.load %arg25[%c0_14, %c0_15] : memref<16x32xf32, #tpu.memory_space<vmem>>, vector<16x32xf32>
    tpu.vector_store %arg25[%c0_14, %c0_15], %15 {strides = array<i32>} : memref<16x32xf32, #tpu.memory_space<vmem>>, vector<16x32xf32>,
    %c0_16 = arith.constant 0 : index
    %c0_17 = arith.constant 0 : index
    %c0_18 = arith.constant 0 : index
    %17 = vector.load %arg8[%c0_16, %c0_17, %c0_18] : memref<1x32x32xf32, #tpu.memory_space<vmem>>, vector<1x32x32xf32>
    %18 = vector.shape_cast %17 : vector<1x32x32xf32> to vector<32x32xf32>
    %cst_19 = arith.constant dense<0.000000e+00> : vector<16x32xf32>
    %19 = tpu.matmul %8, %18, %cst_19 {dimension_numbers = #tpu.dot_dimension_numbers<[1], [0], [0], [1], [0, 0, 1, 1], [], []>} : vector<16x32xf32>, vector<32x32xf32>, vector<16x32xf32> -> vector<16x32xf32>
    %c0_20 = arith.constant 0 : index
    %c0_21 = arith.constant 0 : index
    %c0_22 = arith.constant 0 : index
    %20 = vector.load %arg9[%c0_20, %c0_21, %c0_22] : memref<1x1x32xf32, #tpu.memory_space<vmem>>, vector<1x1x32xf32>
    %21 = vector.shape_cast %20 : vector<1x1x32xf32> to vector<1x32xf32>
    %22 = vector.broadcast %21 : vector<1x32xf32> to vector<16x32xf32>
    %23 = arith.addf %19, %22 : vector<16x32xf32>
    %c0_23 = arith.constant 0 : index
    %c0_24 = arith.constant 0 : index
    %24 = vector.load %arg26[%c0_23, %c0_24] : memref<16x32xf32, #tpu.memory_space<vmem>>, vector<16x32xf32>
    tpu.vector_store %arg26[%c0_23, %c0_24], %23 {strides = array<i32>} : memref<16x32xf32, #tpu.memory_space<vmem>>, vector<16x32xf32>,
    %c0_25 = arith.constant 0 : index
    %c0_26 = arith.constant 0 : index
    %c0_27 = arith.constant 0 : index
    %25 = vector.load %arg10[%c0_25, %c0_26, %c0_27] : memref<1x32x32xf32, #tpu.memory_space<vmem>>, vector<1x32x32xf32>
    %26 = vector.shape_cast %25 : vector<1x32x32xf32> to vector<32x32xf32>
    %cst_28 = arith.constant dense<0.000000e+00> : vector<16x32xf32>
    %27 = tpu.matmul %4, %26, %cst_28 {dimension_numbers = #tpu.dot_dimension_numbers<[1], [0], [0], [1], [0, 0, 1, 1], [], []>} : vector<16x32xf32>, vector<32x32xf32>, vector<16x32xf32> -> vector<16x32xf32>
    %c0_29 = arith.constant 0 : index
    %c0_30 = arith.constant 0 : index
    %c0_31 = arith.constant 0 : index
    %28 = vector.load %arg11[%c0_29, %c0_30, %c0_31] : memref<1x1x32xf32, #tpu.memory_space<vmem>>, vector<1x1x32xf32>
    %29 = vector.shape_cast %28 : vector<1x1x32xf32> to vector<1x32xf32>
    %30 = vector.broadcast %29 : vector<1x32xf32> to vector<16x32xf32>
    %31 = arith.addf %27, %30 : vector<16x32xf32>
    %c0_32 = arith.constant 0 : index
    %c0_33 = arith.constant 0 : index
    %32 = vector.load %arg27[%c0_32, %c0_33] : memref<16x32xf32, #tpu.memory_space<vmem>>, vector<16x32xf32>
    tpu.vector_store %arg27[%c0_32, %c0_33], %31 {strides = array<i32>} : memref<16x32xf32, #tpu.memory_space<vmem>>, vector<16x32xf32>,
    %c0_i32_34 = arith.constant 0 : i32
    %c2_i32 = arith.constant 2 : i32
    %33 = arith.addi %c0_i32_34, %c2_i32 : i32
    %c1_i32 = arith.constant 1 : i32
    scf.for %arg29 = %c0_i32_34 to %33 step %c1_i32  : i32 {
      %c8_i32 = arith.constant 8 : i32
      %116 = arith.muli %arg29, %c8_i32 : i32
      %c8_i32_87 = arith.constant 8 : i32
      %117 = arith.muli %arg29, %c8_i32_87 : i32
      %118 = tpu.assume_multiple %116, 8 : i32
      %119 = tpu.assume_multiple %117, 8 : i32
      %cst_88 = arith.constant 0.000000e+00 : f32
      %120 = vector.broadcast %cst_88 : f32 to vector<8x8xf32>
      %121 = arith.index_cast %118 : i32 to index
      %c0_89 = arith.constant 0 : index
      %122 = vector.load %arg25[%121, %c0_89] : memref<16x32xf32, #tpu.memory_space<vmem>>, vector<8x8xf32>
      %123 = arith.index_cast %119 : i32 to index
      %c0_90 = arith.constant 0 : index
      %124 = vector.load %arg26[%123, %c0_90] : memref<16x32xf32, #tpu.memory_space<vmem>>, vector<8x8xf32>
      %125 = arith.index_cast %119 : i32 to index
      %c0_91 = arith.constant 0 : index
      %126 = vector.load %arg27[%125, %c0_91] : memref<16x32xf32, #tpu.memory_space<vmem>>, vector<8x8xf32>
      %cst_92 = arith.constant dense<0.000000e+00> : vector<8x8xf32>
      %127 = tpu.matmul %122, %124, %cst_92 {dimension_numbers = #tpu.dot_dimension_numbers<[1], [1], [0], [0], [0, 0, 1, 0], [], []>} : vector<8x8xf32>, vector<8x8xf32>, vector<8x8xf32> -> vector<8x8xf32>
      %cst_93 = arith.constant 0.353553385 : f32
      %128 = vector.broadcast %cst_93 : f32 to vector<8x8xf32>
      %129 = arith.mulf %127, %128 : vector<8x8xf32>
      %cst_94 = arith.constant dense<0xFF800000> : vector<8xf32>
      %130 = vector.multi_reduction <maximumf>, %129, %cst_94 [1] : vector<8x8xf32> to vector<8xf32>
      %131 = vector.shape_cast %130 : vector<8xf32> to vector<8x1xf32>
      %132 = vector.broadcast %131 : vector<8x1xf32> to vector<8x8xf32>
      %133 = arith.subf %129, %132 : vector<8x8xf32>
      %134 = math.exp %133 : vector<8x8xf32>
      %cst_95 = arith.constant dense<0.000000e+00> : vector<8xf32>
      %135 = vector.multi_reduction <add>, %134, %cst_95 [1] : vector<8x8xf32> to vector<8xf32>
      %136 = vector.shape_cast %135 : vector<8xf32> to vector<8x1xf32>
      %137 = tpu.reciprocal %136 {approx = true} : vector<8x1xf32> -> vector<8x1xf32>
      %138 = arith.mulf %136, %137 : vector<8x1xf32>
      %cst_96 = arith.constant 2.000000e+00 : f32
      %139 = vector.broadcast %cst_96 : f32 to vector<8x1xf32>
      %140 = arith.subf %139, %138 : vector<8x1xf32>
      %141 = arith.mulf %137, %140 : vector<8x1xf32>
      %142 = vector.broadcast %141 : vector<8x1xf32> to vector<8x8xf32>
      %143 = arith.mulf %134, %142 : vector<8x8xf32>
      %144 = arith.addf %120, %143 : vector<8x8xf32>
      %cst_97 = arith.constant dense<0.000000e+00> : vector<8x8xf32>
      %145 = tpu.matmul %143, %126, %cst_97 {dimension_numbers = #tpu.dot_dimension_numbers<[1], [0], [0], [1], [0, 0, 1, 1], [], []>} : vector<8x8xf32>, vector<8x8xf32>, vector<8x8xf32> -> vector<8x8xf32>
      %146 = arith.index_cast %118 : i32 to index
      %c0_98 = arith.constant 0 : index
      %147 = vector.load %arg28[%146, %c0_98] : memref<16x32xf32, #tpu.memory_space<vmem>>, vector<8x8xf32>
      tpu.vector_store %arg28[%146, %c0_98], %145 {strides = array<i32>} : memref<16x32xf32, #tpu.memory_space<vmem>>, vector<8x8xf32>,
      %148 = arith.index_cast %118 : i32 to index
      %c8 = arith.constant 8 : index
      %149 = vector.load %arg25[%148, %c8] : memref<16x32xf32, #tpu.memory_space<vmem>>, vector<8x8xf32>
      %150 = arith.index_cast %119 : i32 to index
      %c8_99 = arith.constant 8 : index
      %151 = vector.load %arg26[%150, %c8_99] : memref<16x32xf32, #tpu.memory_space<vmem>>, vector<8x8xf32>
      %152 = arith.index_cast %119 : i32 to index
      %c8_100 = arith.constant 8 : index
      %153 = vector.load %arg27[%152, %c8_100] : memref<16x32xf32, #tpu.memory_space<vmem>>, vector<8x8xf32>
      %cst_101 = arith.constant dense<0.000000e+00> : vector<8x8xf32>
      %154 = tpu.matmul %149, %151, %cst_101 {dimension_numbers = #tpu.dot_dimension_numbers<[1], [1], [0], [0], [0, 0, 1, 0], [], []>} : vector<8x8xf32>, vector<8x8xf32>, vector<8x8xf32> -> vector<8x8xf32>
      %cst_102 = arith.constant 0.353553385 : f32
      %155 = vector.broadcast %cst_102 : f32 to vector<8x8xf32>
      %156 = arith.mulf %154, %155 : vector<8x8xf32>
      %cst_103 = arith.constant dense<0xFF800000> : vector<8xf32>
      %157 = vector.multi_reduction <maximumf>, %156, %cst_103 [1] : vector<8x8xf32> to vector<8xf32>
      %158 = vector.shape_cast %157 : vector<8xf32> to vector<8x1xf32>
      %159 = vector.broadcast %158 : vector<8x1xf32> to vector<8x8xf32>
      %160 = arith.subf %156, %159 : vector<8x8xf32>
      %161 = math.exp %160 : vector<8x8xf32>
      %cst_104 = arith.constant dense<0.000000e+00> : vector<8xf32>
      %162 = vector.multi_reduction <add>, %161, %cst_104 [1] : vector<8x8xf32> to vector<8xf32>
      %163 = vector.shape_cast %162 : vector<8xf32> to vector<8x1xf32>
      %164 = tpu.reciprocal %163 {approx = true} : vector<8x1xf32> -> vector<8x1xf32>
      %165 = arith.mulf %163, %164 : vector<8x1xf32>
      %cst_105 = arith.constant 2.000000e+00 : f32
      %166 = vector.broadcast %cst_105 : f32 to vector<8x1xf32>
      %167 = arith.subf %166, %165 : vector<8x1xf32>
      %168 = arith.mulf %164, %167 : vector<8x1xf32>
      %169 = vector.broadcast %168 : vector<8x1xf32> to vector<8x8xf32>
      %170 = arith.mulf %161, %169 : vector<8x8xf32>
      %171 = arith.addf %144, %170 : vector<8x8xf32>
      %cst_106 = arith.constant dense<0.000000e+00> : vector<8x8xf32>
      %172 = tpu.matmul %170, %153, %cst_106 {dimension_numbers = #tpu.dot_dimension_numbers<[1], [0], [0], [1], [0, 0, 1, 1], [], []>} : vector<8x8xf32>, vector<8x8xf32>, vector<8x8xf32> -> vector<8x8xf32>
      %173 = arith.index_cast %118 : i32 to index
      %c8_107 = arith.constant 8 : index
      %174 = vector.load %arg28[%173, %c8_107] : memref<16x32xf32, #tpu.memory_space<vmem>>, vector<8x8xf32>
      tpu.vector_store %arg28[%173, %c8_107], %172 {strides = array<i32>} : memref<16x32xf32, #tpu.memory_space<vmem>>, vector<8x8xf32>,
      %175 = arith.index_cast %118 : i32 to index
      %c16 = arith.constant 16 : index
      %176 = vector.load %arg25[%175, %c16] : memref<16x32xf32, #tpu.memory_space<vmem>>, vector<8x8xf32>
      %177 = arith.index_cast %119 : i32 to index
      %c16_108 = arith.constant 16 : index
      %178 = vector.load %arg26[%177, %c16_108] : memref<16x32xf32, #tpu.memory_space<vmem>>, vector<8x8xf32>
      %179 = arith.index_cast %119 : i32 to index
      %c16_109 = arith.constant 16 : index
      %180 = vector.load %arg27[%179, %c16_109] : memref<16x32xf32, #tpu.memory_space<vmem>>, vector<8x8xf32>
      %cst_110 = arith.constant dense<0.000000e+00> : vector<8x8xf32>
      %181 = tpu.matmul %176, %178, %cst_110 {dimension_numbers = #tpu.dot_dimension_numbers<[1], [1], [0], [0], [0, 0, 1, 0], [], []>} : vector<8x8xf32>, vector<8x8xf32>, vector<8x8xf32> -> vector<8x8xf32>
      %cst_111 = arith.constant 0.353553385 : f32
      %182 = vector.broadcast %cst_111 : f32 to vector<8x8xf32>
      %183 = arith.mulf %181, %182 : vector<8x8xf32>
      %cst_112 = arith.constant dense<0xFF800000> : vector<8xf32>
      %184 = vector.multi_reduction <maximumf>, %183, %cst_112 [1] : vector<8x8xf32> to vector<8xf32>
      %185 = vector.shape_cast %184 : vector<8xf32> to vector<8x1xf32>
      %186 = vector.broadcast %185 : vector<8x1xf32> to vector<8x8xf32>
      %187 = arith.subf %183, %186 : vector<8x8xf32>
      %188 = math.exp %187 : vector<8x8xf32>
      %cst_113 = arith.constant dense<0.000000e+00> : vector<8xf32>
      %189 = vector.multi_reduction <add>, %188, %cst_113 [1] : vector<8x8xf32> to vector<8xf32>
      %190 = vector.shape_cast %189 : vector<8xf32> to vector<8x1xf32>
      %191 = tpu.reciprocal %190 {approx = true} : vector<8x1xf32> -> vector<8x1xf32>
      %192 = arith.mulf %190, %191 : vector<8x1xf32>
      %cst_114 = arith.constant 2.000000e+00 : f32
      %193 = vector.broadcast %cst_114 : f32 to vector<8x1xf32>
      %194 = arith.subf %193, %192 : vector<8x1xf32>
      %195 = arith.mulf %191, %194 : vector<8x1xf32>
      %196 = vector.broadcast %195 : vector<8x1xf32> to vector<8x8xf32>
      %197 = arith.mulf %188, %196 : vector<8x8xf32>
      %198 = arith.addf %171, %197 : vector<8x8xf32>
      %cst_115 = arith.constant dense<0.000000e+00> : vector<8x8xf32>
      %199 = tpu.matmul %197, %180, %cst_115 {dimension_numbers = #tpu.dot_dimension_numbers<[1], [0], [0], [1], [0, 0, 1, 1], [], []>} : vector<8x8xf32>, vector<8x8xf32>, vector<8x8xf32> -> vector<8x8xf32>
      %200 = arith.index_cast %118 : i32 to index
      %c16_116 = arith.constant 16 : index
      %201 = vector.load %arg28[%200, %c16_116] : memref<16x32xf32, #tpu.memory_space<vmem>>, vector<8x8xf32>
      tpu.vector_store %arg28[%200, %c16_116], %199 {strides = array<i32>} : memref<16x32xf32, #tpu.memory_space<vmem>>, vector<8x8xf32>,
      %202 = arith.index_cast %118 : i32 to index
      %c24 = arith.constant 24 : index
      %203 = vector.load %arg25[%202, %c24] : memref<16x32xf32, #tpu.memory_space<vmem>>, vector<8x8xf32>
      %204 = arith.index_cast %119 : i32 to index
      %c24_117 = arith.constant 24 : index
      %205 = vector.load %arg26[%204, %c24_117] : memref<16x32xf32, #tpu.memory_space<vmem>>, vector<8x8xf32>
      %206 = arith.index_cast %119 : i32 to index
      %c24_118 = arith.constant 24 : index
      %207 = vector.load %arg27[%206, %c24_118] : memref<16x32xf32, #tpu.memory_space<vmem>>, vector<8x8xf32>
      %cst_119 = arith.constant dense<0.000000e+00> : vector<8x8xf32>
      %208 = tpu.matmul %203, %205, %cst_119 {dimension_numbers = #tpu.dot_dimension_numbers<[1], [1], [0], [0], [0, 0, 1, 0], [], []>} : vector<8x8xf32>, vector<8x8xf32>, vector<8x8xf32> -> vector<8x8xf32>
      %cst_120 = arith.constant 0.353553385 : f32
      %209 = vector.broadcast %cst_120 : f32 to vector<8x8xf32>
      %210 = arith.mulf %208, %209 : vector<8x8xf32>
      %cst_121 = arith.constant dense<0xFF800000> : vector<8xf32>
      %211 = vector.multi_reduction <maximumf>, %210, %cst_121 [1] : vector<8x8xf32> to vector<8xf32>
      %212 = vector.shape_cast %211 : vector<8xf32> to vector<8x1xf32>
      %213 = vector.broadcast %212 : vector<8x1xf32> to vector<8x8xf32>
      %214 = arith.subf %210, %213 : vector<8x8xf32>
      %215 = math.exp %214 : vector<8x8xf32>
      %cst_122 = arith.constant dense<0.000000e+00> : vector<8xf32>
      %216 = vector.multi_reduction <add>, %215, %cst_122 [1] : vector<8x8xf32> to vector<8xf32>
      %217 = vector.shape_cast %216 : vector<8xf32> to vector<8x1xf32>
      %218 = tpu.reciprocal %217 {approx = true} : vector<8x1xf32> -> vector<8x1xf32>
      %219 = arith.mulf %217, %218 : vector<8x1xf32>
      %cst_123 = arith.constant 2.000000e+00 : f32
      %220 = vector.broadcast %cst_123 : f32 to vector<8x1xf32>
      %221 = arith.subf %220, %219 : vector<8x1xf32>
      %222 = arith.mulf %218, %221 : vector<8x1xf32>
      %223 = vector.broadcast %222 : vector<8x1xf32> to vector<8x8xf32>
      %224 = arith.mulf %215, %223 : vector<8x8xf32>
      %225 = arith.addf %198, %224 : vector<8x8xf32>
      %cst_124 = arith.constant dense<0.000000e+00> : vector<8x8xf32>
      %226 = tpu.matmul %224, %207, %cst_124 {dimension_numbers = #tpu.dot_dimension_numbers<[1], [0], [0], [1], [0, 0, 1, 1], [], []>} : vector<8x8xf32>, vector<8x8xf32>, vector<8x8xf32> -> vector<8x8xf32>
      %227 = arith.index_cast %118 : i32 to index
      %c24_125 = arith.constant 24 : index
      %228 = vector.load %arg28[%227, %c24_125] : memref<16x32xf32, #tpu.memory_space<vmem>>, vector<8x8xf32>
      tpu.vector_store %arg28[%227, %c24_125], %226 {strides = array<i32>} : memref<16x32xf32, #tpu.memory_space<vmem>>, vector<8x8xf32>,
      %cst_126 = arith.constant 2.500000e-01 : f32
      %229 = vector.broadcast %cst_126 : f32 to vector<8x8xf32>
      %230 = arith.mulf %225, %229 : vector<8x8xf32>
      %c0_127 = arith.constant 0 : index
      %231 = arith.index_cast %118 : i32 to index
      %c0_128 = arith.constant 0 : index
      %232 = vector.load %arg23[%c0_127, %231, %c0_128] : memref<1x16x8xf32, #tpu.memory_space<vmem>>, vector<1x8x8xf32>
      %233 = vector.shape_cast %232 : vector<1x8x8xf32> to vector<8x8xf32>
      %234 = vector.shape_cast %230 : vector<8x8xf32> to vector<1x8x8xf32>
      tpu.vector_store %arg23[%c0_127, %231, %c0_128], %234 {strides = array<i32>} : memref<1x16x8xf32, #tpu.memory_space<vmem>>, vector<1x8x8xf32>,
    }
    %c2_i32_35 = arith.constant 2 : i32
    %c0_36 = arith.constant 0 : index
    %c0_37 = arith.constant 0 : index
    %34 = vector.load %arg28[%c0_36, %c0_37] : memref<16x32xf32, #tpu.memory_space<vmem>>, vector<16x32xf32>
    %c0_38 = arith.constant 0 : index
    %c0_39 = arith.constant 0 : index
    %c0_40 = arith.constant 0 : index
    %35 = vector.load %arg12[%c0_38, %c0_39, %c0_40] : memref<1x32x32xf32, #tpu.memory_space<vmem>>, vector<1x32x32xf32>
    %36 = vector.shape_cast %35 : vector<1x32x32xf32> to vector<32x32xf32>
    %cst_41 = arith.constant dense<0.000000e+00> : vector<16x32xf32>
    %37 = tpu.matmul %34, %36, %cst_41 {dimension_numbers = #tpu.dot_dimension_numbers<[1], [0], [0], [1], [0, 0, 1, 1], [], []>} : vector<16x32xf32>, vector<32x32xf32>, vector<16x32xf32> -> vector<16x32xf32>
    %c0_42 = arith.constant 0 : index
    %c0_43 = arith.constant 0 : index
    %c0_44 = arith.constant 0 : index
    %38 = vector.load %arg13[%c0_42, %c0_43, %c0_44] : memref<1x1x32xf32, #tpu.memory_space<vmem>>, vector<1x1x32xf32>
    %39 = vector.shape_cast %38 : vector<1x1x32xf32> to vector<1x32xf32>
    %40 = vector.broadcast %39 : vector<1x32xf32> to vector<16x32xf32>
    %41 = arith.addf %37, %40 : vector<16x32xf32>
    %42 = arith.addf %3, %41 : vector<16x32xf32>
    %c0_45 = arith.constant 0 : index
    %c0_46 = arith.constant 0 : index
    %c0_47 = arith.constant 0 : index
    %43 = vector.load %arg14[%c0_45, %c0_46, %c0_47] : memref<1x1x32xf32, #tpu.memory_space<vmem>>, vector<1x1x32xf32>
    %44 = vector.shape_cast %43 : vector<1x1x32xf32> to vector<1x32xf32>
    %c0_48 = arith.constant 0 : index
    %c0_49 = arith.constant 0 : index
    %c0_50 = arith.constant 0 : index
    %45 = vector.load %arg15[%c0_48, %c0_49, %c0_50] : memref<1x1x32xf32, #tpu.memory_space<vmem>>, vector<1x1x32xf32>
    %46 = vector.shape_cast %45 : vector<1x1x32xf32> to vector<1x32xf32>
    %cst_51 = arith.constant dense<0.000000e+00> : vector<16xf32>
    %47 = vector.multi_reduction <add>, %42, %cst_51 [1] : vector<16x32xf32> to vector<16xf32>
    %48 = vector.shape_cast %47 : vector<16xf32> to vector<16x1xf32>
    %cst_52 = arith.constant 3.200000e+01 : f32
    %49 = vector.broadcast %cst_52 : f32 to vector<16x1xf32>
    %50 = arith.divf %48, %49 : vector<16x1xf32>
    %51 = vector.broadcast %50 : vector<16x1xf32> to vector<16x32xf32>
    %52 = arith.subf %42, %51 : vector<16x32xf32>
    %53 = arith.mulf %52, %52 : vector<16x32xf32>
    %cst_53 = arith.constant dense<0.000000e+00> : vector<16xf32>
    %54 = vector.multi_reduction <add>, %53, %cst_53 [1] : vector<16x32xf32> to vector<16xf32>
    %55 = vector.shape_cast %54 : vector<16xf32> to vector<16x1xf32>
    %cst_54 = arith.constant 3.200000e+01 : f32
    %56 = vector.broadcast %cst_54 : f32 to vector<16x1xf32>
    %57 = arith.divf %55, %56 : vector<16x1xf32>
    %58 = vector.broadcast %50 : vector<16x1xf32> to vector<16x32xf32>
    %59 = arith.subf %42, %58 : vector<16x32xf32>
    %cst_55 = arith.constant 9.99999974E-6 : f32
    %60 = vector.broadcast %cst_55 : f32 to vector<16x1xf32>
    %61 = arith.addf %57, %60 : vector<16x1xf32>
    %62 = math.rsqrt %61 : vector<16x1xf32>
    %63 = vector.broadcast %62 : vector<16x1xf32> to vector<16x32xf32>
    %64 = arith.mulf %59, %63 : vector<16x32xf32>
    %65 = vector.broadcast %44 : vector<1x32xf32> to vector<16x32xf32>
    %66 = arith.mulf %64, %65 : vector<16x32xf32>
    %67 = vector.broadcast %46 : vector<1x32xf32> to vector<16x32xf32>
    %68 = arith.addf %66, %67 : vector<16x32xf32>
    %c0_56 = arith.constant 0 : index
    %c0_57 = arith.constant 0 : index
    %c0_58 = arith.constant 0 : index
    %69 = vector.load %arg16[%c0_56, %c0_57, %c0_58] : memref<1x32x64xf32, #tpu.memory_space<vmem>>, vector<1x32x64xf32>
    %70 = vector.shape_cast %69 : vector<1x32x64xf32> to vector<32x64xf32>
    %cst_59 = arith.constant dense<0.000000e+00> : vector<16x64xf32>
    %71 = tpu.matmul %68, %70, %cst_59 {dimension_numbers = #tpu.dot_dimension_numbers<[1], [0], [0], [1], [0, 0, 1, 1], [], []>} : vector<16x32xf32>, vector<32x64xf32>, vector<16x64xf32> -> vector<16x64xf32>
    %c0_60 = arith.constant 0 : index
    %c0_61 = arith.constant 0 : index
    %c0_62 = arith.constant 0 : index
    %72 = vector.load %arg17[%c0_60, %c0_61, %c0_62] : memref<1x1x64xf32, #tpu.memory_space<vmem>>, vector<1x1x64xf32>
    %73 = vector.shape_cast %72 : vector<1x1x64xf32> to vector<1x64xf32>
    %74 = vector.broadcast %73 : vector<1x64xf32> to vector<16x64xf32>
    %75 = arith.addf %71, %74 : vector<16x64xf32>
    %cst_63 = arith.constant 0.000000e+00 : f32
    %76 = vector.broadcast %cst_63 : f32 to vector<16x64xf32>
    %77 = arith.maximumf %75, %76 : vector<16x64xf32>
    %c0_64 = arith.constant 0 : index
    %c0_65 = arith.constant 0 : index
    %c0_66 = arith.constant 0 : index
    %78 = vector.load %arg18[%c0_64, %c0_65, %c0_66] : memref<1x64x32xf32, #tpu.memory_space<vmem>>, vector<1x64x32xf32>
    %79 = vector.shape_cast %78 : vector<1x64x32xf32> to vector<64x32xf32>
    %cst_67 = arith.constant dense<0.000000e+00> : vector<16x32xf32>
    %80 = tpu.matmul %77, %79, %cst_67 {dimension_numbers = #tpu.dot_dimension_numbers<[1], [0], [0], [1], [0, 0, 1, 1], [], []>} : vector<16x64xf32>, vector<64x32xf32>, vector<16x32xf32> -> vector<16x32xf32>
    %c0_68 = arith.constant 0 : index
    %c0_69 = arith.constant 0 : index
    %c0_70 = arith.constant 0 : index
    %81 = vector.load %arg19[%c0_68, %c0_69, %c0_70] : memref<1x1x32xf32, #tpu.memory_space<vmem>>, vector<1x1x32xf32>
    %82 = vector.shape_cast %81 : vector<1x1x32xf32> to vector<1x32xf32>
    %83 = vector.broadcast %82 : vector<1x32xf32> to vector<16x32xf32>
    %84 = arith.addf %80, %83 : vector<16x32xf32>
    %85 = arith.addf %68, %84 : vector<16x32xf32>
    %c0_71 = arith.constant 0 : index
    %c0_72 = arith.constant 0 : index
    %c0_73 = arith.constant 0 : index
    %86 = vector.load %arg20[%c0_71, %c0_72, %c0_73] : memref<1x1x32xf32, #tpu.memory_space<vmem>>, vector<1x1x32xf32>
    %87 = vector.shape_cast %86 : vector<1x1x32xf32> to vector<1x32xf32>
    %c0_74 = arith.constant 0 : index
    %c0_75 = arith.constant 0 : index
    %c0_76 = arith.constant 0 : index
    %88 = vector.load %arg21[%c0_74, %c0_75, %c0_76] : memref<1x1x32xf32, #tpu.memory_space<vmem>>, vector<1x1x32xf32>
    %89 = vector.shape_cast %88 : vector<1x1x32xf32> to vector<1x32xf32>
    %cst_77 = arith.constant dense<0.000000e+00> : vector<16xf32>
    %90 = vector.multi_reduction <add>, %85, %cst_77 [1] : vector<16x32xf32> to vector<16xf32>
    %91 = vector.shape_cast %90 : vector<16xf32> to vector<16x1xf32>
    %cst_78 = arith.constant 3.200000e+01 : f32
    %92 = vector.broadcast %cst_78 : f32 to vector<16x1xf32>
    %93 = arith.divf %91, %92 : vector<16x1xf32>
    %94 = vector.broadcast %93 : vector<16x1xf32> to vector<16x32xf32>
    %95 = arith.subf %85, %94 : vector<16x32xf32>
    %96 = arith.mulf %95, %95 : vector<16x32xf32>
    %cst_79 = arith.constant dense<0.000000e+00> : vector<16xf32>
    %97 = vector.multi_reduction <add>, %96, %cst_79 [1] : vector<16x32xf32> to vector<16xf32>
    %98 = vector.shape_cast %97 : vector<16xf32> to vector<16x1xf32>
    %cst_80 = arith.constant 3.200000e+01 : f32
    %99 = vector.broadcast %cst_80 : f32 to vector<16x1xf32>
    %100 = arith.divf %98, %99 : vector<16x1xf32>
    %101 = vector.broadcast %93 : vector<16x1xf32> to vector<16x32xf32>
    %102 = arith.subf %85, %101 : vector<16x32xf32>
    %cst_81 = arith.constant 9.99999974E-6 : f32
    %103 = vector.broadcast %cst_81 : f32 to vector<16x1xf32>
    %104 = arith.addf %100, %103 : vector<16x1xf32>
    %105 = math.rsqrt %104 : vector<16x1xf32>
    %106 = vector.broadcast %105 : vector<16x1xf32> to vector<16x32xf32>
    %107 = arith.mulf %102, %106 : vector<16x32xf32>
    %108 = vector.broadcast %87 : vector<1x32xf32> to vector<16x32xf32>
    %109 = arith.mulf %107, %108 : vector<16x32xf32>
    %110 = vector.broadcast %89 : vector<1x32xf32> to vector<16x32xf32>
    %111 = arith.addf %109, %110 : vector<16x32xf32>
    %c0_82 = arith.constant 0 : index
    %c0_83 = arith.constant 0 : index
    %112 = vector.load %arg24[%c0_82, %c0_83] : memref<16x32xf32, #tpu.memory_space<vmem>>, vector<16x32xf32>
    tpu.vector_store %arg24[%c0_82, %c0_83], %111 {strides = array<i32>} : memref<16x32xf32, #tpu.memory_space<vmem>>, vector<16x32xf32>,
    %c0_84 = arith.constant 0 : index
    %c0_85 = arith.constant 0 : index
    %c0_86 = arith.constant 0 : index
    %113 = vector.load %arg22[%c0_84, %c0_85, %c0_86] : memref<1x16x32xf32, #tpu.memory_space<vmem>>, vector<1x16x32xf32>
    %114 = vector.shape_cast %113 : vector<1x16x32xf32> to vector<16x32xf32>
    %115 = vector.shape_cast %111 : vector<16x32xf32> to vector<1x16x32xf32>
    tpu.vector_store %arg22[%c0_84, %c0_85, %c0_86], %115 {strides = array<i32>} : memref<1x16x32xf32, #tpu.memory_space<vmem>>, vector<1x16x32xf32>,
    return
  }
  func.func @transform_0(%arg0: i32, %arg1: i32) -> (i32, i32) {
    %c0_i32 = arith.constant 0 : i32
    %c0_i32_0 = arith.constant 0 : i32
    return %arg0, %c0_i32 : i32, i32
  }
  func.func @transform_1(%arg0: i32, %arg1: i32) -> (i32, i32) {
    %c0_i32 = arith.constant 0 : i32
    %c0_i32_0 = arith.constant 0 : i32
    return %arg0, %c0_i32 : i32, i32
  }
  func.func @transform_2(%arg0: i32, %arg1: i32) -> (i32, i32) {
    %c0_i32 = arith.constant 0 : i32
    %c0_i32_0 = arith.constant 0 : i32
    return %arg0, %c0_i32 : i32, i32
  }
  func.func @transform_3(%arg0: i32, %arg1: i32) -> (i32, i32) {
    %c0_i32 = arith.constant 0 : i32
    %c0_i32_0 = arith.constant 0 : i32
    return %arg0, %c0_i32 : i32, i32
  }
  func.func @transform_4(%arg0: i32, %arg1: i32) -> (i32, i32, i32) {
    %c0_i32 = arith.constant 0 : i32
    %c0_i32_0 = arith.constant 0 : i32
    %c0_i32_1 = arith.constant 0 : i32
    return %arg1, %c0_i32, %c0_i32_0 : i32, i32, i32
  }
  func.func @transform_5(%arg0: i32, %arg1: i32) -> (i32, i32, i32) {
    %c0_i32 = arith.constant 0 : i32
    %c0_i32_0 = arith.constant 0 : i32
    %c0_i32_1 = arith.constant 0 : i32
    return %arg1, %c0_i32, %c0_i32_0 : i32, i32, i32
  }
  func.func @transform_6(%arg0: i32, %arg1: i32) -> (i32, i32, i32) {
    %c0_i32 = arith.constant 0 : i32
    %c0_i32_0 = arith.constant 0 : i32
    %c0_i32_1 = arith.constant 0 : i32
    return %arg1, %c0_i32, %c0_i32_0 : i32, i32, i32
  }
  func.func @transform_7(%arg0: i32, %arg1: i32) -> (i32, i32, i32) {
    %c0_i32 = arith.constant 0 : i32
    %c0_i32_0 = arith.constant 0 : i32
    %c0_i32_1 = arith.constant 0 : i32
    return %arg1, %c0_i32, %c0_i32_0 : i32, i32, i32
  }
  func.func @transform_8(%arg0: i32, %arg1: i32) -> (i32, i32, i32) {
    %c0_i32 = arith.constant 0 : i32
    %c0_i32_0 = arith.constant 0 : i32
    %c0_i32_1 = arith.constant 0 : i32
    return %arg1, %c0_i32, %c0_i32_0 : i32, i32, i32
  }
  func.func @transform_9(%arg0: i32, %arg1: i32) -> (i32, i32, i32) {
    %c0_i32 = arith.constant 0 : i32
    %c0_i32_0 = arith.constant 0 : i32
    %c0_i32_1 = arith.constant 0 : i32
    return %arg1, %c0_i32, %c0_i32_0 : i32, i32, i32
  }
  func.func @transform_10(%arg0: i32, %arg1: i32) -> (i32, i32, i32) {
    %c0_i32 = arith.constant 0 : i32
    %c0_i32_0 = arith.constant 0 : i32
    %c0_i32_1 = arith.constant 0 : i32
    return %arg1, %c0_i32, %c0_i32_0 : i32, i32, i32
  }
  func.func @transform_11(%arg0: i32, %arg1: i32) -> (i32, i32, i32) {
    %c0_i32 = arith.constant 0 : i32
    %c0_i32_0 = arith.constant 0 : i32
    %c0_i32_1 = arith.constant 0 : i32
    return %arg1, %c0_i32, %c0_i32_0 : i32, i32, i32
  }
  func.func @transform_12(%arg0: i32, %arg1: i32) -> (i32, i32, i32) {
    %c0_i32 = arith.constant 0 : i32
    %c0_i32_0 = arith.constant 0 : i32
    %c0_i32_1 = arith.constant 0 : i32
    return %arg1, %c0_i32, %c0_i32_0 : i32, i32, i32
  }
  func.func @transform_13(%arg0: i32, %arg1: i32) -> (i32, i32, i32) {
    %c0_i32 = arith.constant 0 : i32
    %c0_i32_0 = arith.constant 0 : i32
    %c0_i32_1 = arith.constant 0 : i32
    return %arg1, %c0_i32, %c0_i32_0 : i32, i32, i32
  }
  func.func @transform_14(%arg0: i32, %arg1: i32) -> (i32, i32, i32) {
    %c0_i32 = arith.constant 0 : i32
    %c0_i32_0 = arith.constant 0 : i32
    %c0_i32_1 = arith.constant 0 : i32
    return %arg1, %c0_i32, %c0_i32_0 : i32, i32, i32
  }
  func.func @transform_15(%arg0: i32, %arg1: i32) -> (i32, i32, i32) {
    %c0_i32 = arith.constant 0 : i32
    %c0_i32_0 = arith.constant 0 : i32
    %c0_i32_1 = arith.constant 0 : i32
    return %arg1, %c0_i32, %c0_i32_0 : i32, i32, i32
  }
  func.func @transform_16(%arg0: i32, %arg1: i32) -> (i32, i32, i32) {
    %c0_i32 = arith.constant 0 : i32
    %c0_i32_0 = arith.constant 0 : i32
    %c0_i32_1 = arith.constant 0 : i32
    return %arg1, %c0_i32, %c0_i32_0 : i32, i32, i32
  }
  func.func @transform_17(%arg0: i32, %arg1: i32) -> (i32, i32, i32) {
    %c0_i32 = arith.constant 0 : i32
    %c0_i32_0 = arith.constant 0 : i32
    %c0_i32_1 = arith.constant 0 : i32
    return %arg1, %c0_i32, %c0_i32_0 : i32, i32, i32
  }
  func.func @transform_18(%arg0: i32, %arg1: i32) -> (i32, i32, i32) {
    %c0_i32 = arith.constant 0 : i32
    %c0_i32_0 = arith.constant 0 : i32
    %c0_i32_1 = arith.constant 0 : i32
    return %arg1, %c0_i32, %c0_i32_0 : i32, i32, i32
  }
  func.func @transform_19(%arg0: i32, %arg1: i32) -> (i32, i32, i32) {
    %c0_i32 = arith.constant 0 : i32
    %c0_i32_0 = arith.constant 0 : i32
    %c0_i32_1 = arith.constant 0 : i32
    return %arg1, %c0_i32, %c0_i32_0 : i32, i32, i32
  }
  func.func @transform_20(%arg0: i32, %arg1: i32) -> (i32, i32, i32) {
    %c0_i32 = arith.constant 0 : i32
    %c0_i32_0 = arith.constant 0 : i32
    return %arg1, %arg0, %c0_i32 : i32, i32, i32
  }
  func.func @transform_21(%arg0: i32, %arg1: i32) -> (i32, i32, i32) {
    %c0_i32 = arith.constant 0 : i32
    %c0_i32_0 = arith.constant 0 : i32
    return %arg1, %arg0, %c0_i32 : i32, i32, i32
  }
}

</mosaic_0001>

<llo_original>
// kernel: tpu_custom_call.1
$region0: #{tpu_custom_call.1}
  #allocation0 [shape = 'u32[]', space=smem, size = 0x4, offset = 0x4, fixed_abs, tag = 'smem constant byte address 0x4 - core index']
  #allocation1 [shape = 'u32[144,128]{1,0:T(1,128)}', space=vmem, size = 0x12000, scoped, tag = 'internal scratch']
  #allocation2 [shape = 'f32[16,32]{1,0:T(8,128)}', space=vmem, size = 0x2000, scoped, tag = 'scratch operand']
  #allocation3 [shape = 'f32[16,32]{1,0:T(8,128)}', space=vmem, size = 0x2000, scoped, tag = 'scratch operand']
  #allocation4 [shape = 'f32[16,32]{1,0:T(8,128)}', space=vmem, size = 0x2000, scoped, tag = 'scratch operand']
  #allocation5 [shape = 'f32[16,32]{1,0:T(8,128)}', space=vmem, size = 0x2000, scoped, tag = 'scratch operand']
  #allocation6 [shape = 'f32[16,32]{1,0:T(8,128)}', space=vmem, size = 0x2000, scoped, tag = 'scratch operand']
  %s0 = inlined_call_operand.hbm [shape: f32[16,32], index: 0, kind: input, shape index: {}]
  %s1 = inlined_call_operand.hbm [shape: f32[16,32], index: 1, kind: input, shape index: {}]
  %s2 = inlined_call_operand.hbm [shape: f32[16,32], index: 2, kind: input, shape index: {}]
  %s3 = inlined_call_operand.hbm [shape: f32[16,32], index: 3, kind: input, shape index: {}]
  %s4 = inlined_call_operand.vmem [shape: f32[2,32,32], index: 4, kind: input, shape index: {}]
  %s5 = inlined_call_operand.vmem [shape: f32[2,1,32], index: 5, kind: input, shape index: {}]
  %s6 = inlined_call_operand.vmem [shape: f32[2,32,32], index: 6, kind: input, shape index: {}]
  %s7 = inlined_call_operand.vmem [shape: f32[2,1,32], index: 7, kind: input, shape index: {}]
  %s8 = inlined_call_operand.vmem [shape: f32[2,32,32], index: 8, kind: input, shape index: {}]
  %s9 = inlined_call_operand.vmem [shape: f32[2,1,32], index: 9, kind: input, shape index: {}]
  %s10 = inlined_call_operand.hbm [shape: f32[2,32,32], index: 10, kind: input, shape index: {}]
  %s11 = inlined_call_operand.vmem [shape: f32[2,1,32], index: 11, kind: input, shape index: {}]
  %s12 = inlined_call_operand.vmem [shape: f32[2,1,32], index: 12, kind: input, shape index: {}]
  %s13 = inlined_call_operand.vmem [shape: f32[2,1,32], index: 13, kind: input, shape index: {}]
  %s14 = inlined_call_operand.hbm [shape: f32[2,32,64], index: 14, kind: input, shape index: {}]
  %s15 = inlined_call_operand.vmem [shape: f32[2,1,64], index: 15, kind: input, shape index: {}]
  %s16 = inlined_call_operand.vmem [shape: f32[2,64,32], index: 16, kind: input, shape index: {}]
  %s17 = inlined_call_operand.vmem [shape: f32[2,1,32], index: 17, kind: input, shape index: {}]
  %s18 = inlined_call_operand.vmem [shape: f32[2,1,32], index: 18, kind: input, shape index: {}]
  %s19 = inlined_call_operand.vmem [shape: f32[2,1,32], index: 19, kind: input, shape index: {}]
  %s20 = inlined_call_operand.hbm [shape: f32[2,16,32], index: 20, kind: output, shape index: {0}]
  %s21 = inlined_call_operand.vmem [shape: f32[2,16,8], index: 21, kind: output, shape index: {1}]
  %22 = xla_tuple %s20, %s21
  %s23 = sld [smem:[#allocation0]]
  $region156: #{tpu_custom_call.1} parent=0
    _
  %s25 = ssub.s32 1, %s23
  %s26 = scalar_select 0, %s25, %s23
  $region1: #{tpu_custom_call.1} parent=0
    #allocation7 [shape = 'u8[8192]{0}', space=vmem, size = 0x2000, scoped, tag = 'input window, operand 0, single buffered']
    #allocation8 [shape = 's32[2]{0}', space=sflag, size = 0x8, scoped, tag = 'scoped memory for tpu_custom_call.1']
    #allocation9 [shape = 's32[2]{0}', space=sflag, size = 0x8, scoped, tag = 'scoped memory for tpu_custom_call.1']
    #allocation10 [shape = 'u8[8192]{0}', space=vmem, size = 0x2000, scoped, tag = 'input window, operand 1, single buffered']
    #allocation11 [shape = 's32[1]{0}', space=sflag, size = 0x4, scoped, tag = 'scoped memory for tpu_custom_call.1']
    #allocation12 [shape = 'u8[8192]{0}', space=vmem, size = 0x2000, scoped, tag = 'input window, operand 2, single buffered']
    #allocation13 [shape = 'u8[8192]{0}', space=vmem, size = 0x2000, scoped, tag = 'input window, operand 3, single buffered']
    #allocation14 [shape = 's32[1]{0}', space=sflag, size = 0x4, scoped, tag = 'scoped memory for tpu_custom_call.1']
    #allocation15 [shape = 'u8[32768]{0}', space=vmem, size = 0x8000, scoped, tag = 'input window, operand 10']
    #allocation16 [shape = 'u8[32768]{0}', space=vmem, size = 0x8000, scoped, tag = 'input window, operand 14']
    #allocation17 [shape = 'u8[16384]{0}', space=vmem, size = 0x4000, scoped, tag = 'output window, operand 0']
    %27 = vsyncpa [#allocation8], 0
    %28 = vsyncpa [#allocation11], 0
    %29 = vsyncpa [#allocation14], 0
    %30 = vsyncpa [#allocation9], 0
    %s31 = scalar_lea.sflag [#allocation9], 1
    %32 = vsyncpa %s31, 0
    loop: start=0, step=1, limit=4
    $region2: #{tpu_custom_call.1} parent=1 // loop_pre_header
      _
    $region3: #{tpu_custom_call.1} parent=1 // loop_header
      %s34 = sphi 0, %s38
      %p35 = scmp.ge.s32.totalorder %s34, 4
      %s41 = sphi 0, %s53
      %s42 = sphi 0, %s49
      %s43 = sphi 0, %s41
      %s44 = sphi 0, %s42
      %s45 = sphi 0, %s43
      %s46 = sphi 0, %s44
      %s56 = sphi 0, %s58
      %s59 = sphi 0, %s56
      %s60 = sphi 0, %s59
      %s76 = sphi 0, %s60
      %s82 = sphi 0, %s84
      %s85 = sphi 0, %s82
      %s86 = sphi 0, %s85
      %s102 = sphi 0, %s86
      %s108 = sphi 0, %s110
      %s111 = sphi 0, %s108
      %s112 = sphi 0, %s111
      %s128 = sphi 0, %s112
      %s134 = sphi 0, %s136
      %s137 = sphi 0, %s134
      %s138 = sphi 0, %s137
      %s154 = sphi 0, %s138
      %s160 = sphi 0, %s162
      %s163 = sphi 0, %s160
      %s164 = sphi 0, %s163
      %s180 = sphi 0, %s164
      %s186 = sphi 0, %s188
      %s189 = sphi 0, %s186
      %s190 = sphi 0, %s189
      %s206 = sphi 0, %s190
      %s212 = sphi 0, %s214
      %s215 = sphi 0, %s212
      %s216 = sphi 0, %s215
      %s232 = sphi 0, %s216
      %s238 = sphi 0, %s240
      %s241 = sphi 0, %s238
      %s242 = sphi 0, %s241
      %s258 = sphi 0, %s242
      %s264 = sphi 0, %s266
      %s267 = sphi 0, %s264
      %s268 = sphi 0, %s267
      %s284 = sphi 0, %s268
      %s290 = sphi 0, %s292
      %s293 = sphi 0, %s290
      %s294 = sphi 0, %s293
      %s310 = sphi 0, %s294
      %s316 = sphi 0, %s318
      %s319 = sphi 0, %s316
      %s320 = sphi 0, %s319
      %s336 = sphi 0, %s320
      %s342 = sphi 0, %s344
      %s345 = sphi 0, %s342
      %s346 = sphi 0, %s345
      %s362 = sphi 0, %s346
      %s368 = sphi 0, %s370
      %s371 = sphi 0, %s368
      %s372 = sphi 0, %s371
      %s388 = sphi 0, %s372
      %s394 = sphi 0, %s396
      %s397 = sphi 0, %s394
      %s398 = sphi 0, %s397
      %s414 = sphi 0, %s398
      %s420 = sphi 0, %s422
      %s423 = sphi 0, %s420
      %s424 = sphi 0, %s423
      %s440 = sphi 0, %s424
      %s446 = sphi 0, %s448
      %s449 = sphi 0, %s446
      %s450 = sphi 0, %s449
      %s466 = sphi 0, %s450
      %s472 = sphi 0, %s474
      %s475 = sphi 0, %s472
      %s476 = sphi 0, %s475
      %s492 = sphi 0, %s476
      %s498 = sphi 0, %s500
      %s501 = sphi 0, %s498
      %s502 = sphi 0, %s501
      %s518 = sphi 0, %s502
      %s524 = sphi 0, %s526
      %s527 = sphi 0, %s524
      %s528 = sphi 0, %s527
      %s544 = sphi 0, %s528
      %s550 = sphi 0, %s552
      %s553 = sphi 0, %s550
      %s554 = sphi 0, %s553
      %s570 = sphi 0, %s554
      %s578 = sphi 0, %s580
      %s581 = sphi 0, %s578
      %s582 = sphi 0, %s581
      %s598 = sphi 0, %s582
      %s606 = sphi 0, %s608
      %s609 = sphi 0, %s606
      %s610 = sphi 0, %s609
      %s626 = sphi 0, %s610
    $region4: #{tpu_custom_call.1} parent=1 // loop_header_branch
      %37 = sbr.rel (%p35) target = $region8
    $region5: #{tpu_custom_call.1} parent=1 // loop_body
      %s39 = ssub.s32 %s34, 1
      %s40 = ssub.s32 %s34, 2
      %s47 = sadd.s32 1, %s42
      %p48 = scmp.ge.s32.totalorder %s47, 2
      %s49 = scalar_select %p48, 0, %s47
      %s50 = sadd.s32 1, %s41
      %s51 = scalar_select %p48, %s50, %s41
      %p52 = scmp.ge.s32.totalorder %s51, 1
      %s53 = scalar_select %p52, 0, %s51
      %s54 = ssub.s32 %s41, %s53
      %p55 = scmp.eq.s32.totalorder %s54, 0
      %s57 = sadd.s32 %s56, 1
      %s58 = scalar_select %p55, %s56, %s57
      %p61 = pneg %p55
      %p62 = scmp.eq.s32.totalorder %s34, 1
      %p63 = por %p61, %p62
      %p64 = scmp.ne.s32.totalorder %s56, %s59
      %p65 = scmp.eq.s32.totalorder %s34, 0
      %p66 = por %p64, %p65
      %p67 = scmp.ne.s32.totalorder %s56, %s59
      %p68 = scmp.eq.s32.totalorder %s39, 1
      %p69 = por %p67, %p68
      %p70 = scmp.ne.s32.totalorder %s59, %s60
      %p71 = scmp.eq.s32.totalorder %s39, 0
      %p72 = por %p70, %p71
      %p73 = scmp.ne.s32.totalorder %s59, %s60
      %p74 = scmp.eq.s32.totalorder %s40, 1
      %p75 = por %p73, %p74
      %p77 = scmp.ne.s32.totalorder %s60, %s76
      %p78 = scmp.eq.s32.totalorder %s40, 0
      %p79 = por %p77, %p78
      %s80 = ssub.s32 %s41, %s53
      %p81 = scmp.eq.s32.totalorder %s80, 0
      %s83 = sadd.s32 %s82, 1
      %s84 = scalar_select %p81, %s82, %s83
      %p87 = pneg %p81
      %p88 = scmp.eq.s32.totalorder %s34, 1
      %p89 = por %p87, %p88
      %p90 = scmp.ne.s32.totalorder %s82, %s85
      %p91 = scmp.eq.s32.totalorder %s34, 0
      %p92 = por %p90, %p91
      %p93 = scmp.ne.s32.totalorder %s82, %s85
      %p94 = scmp.eq.s32.totalorder %s39, 1
      %p95 = por %p93, %p94
      %p96 = scmp.ne.s32.totalorder %s85, %s86
      %p97 = scmp.eq.s32.totalorder %s39, 0
      %p98 = por %p96, %p97
      %p99 = scmp.ne.s32.totalorder %s85, %s86
      %p100 = scmp.eq.s32.totalorder %s40, 1
      %p101 = por %p99, %p100
      %p103 = scmp.ne.s32.totalorder %s86, %s102
      %p104 = scmp.eq.s32.totalorder %s40, 0
      %p105 = por %p103, %p104
      %s106 = ssub.s32 %s41, %s53
      %p107 = scmp.eq.s32.totalorder %s106, 0
      %s109 = sadd.s32 %s108, 1
      %s110 = scalar_select %p107, %s108, %s109
      %p113 = pneg %p107
      %p114 = scmp.eq.s32.totalorder %s34, 1
      %p115 = por %p113, %p114
      %p116 = scmp.ne.s32.totalorder %s108, %s111
      %p117 = scmp.eq.s32.totalorder %s34, 0
      %p118 = por %p116, %p117
      %p119 = scmp.ne.s32.totalorder %s108, %s111
      %p120 = scmp.eq.s32.totalorder %s39, 1
      %p121 = por %p119, %p120
      %p122 = scmp.ne.s32.totalorder %s111, %s112
      %p123 = scmp.eq.s32.totalorder %s39, 0
      %p124 = por %p122, %p123
      %p125 = scmp.ne.s32.totalorder %s111, %s112
      %p126 = scmp.eq.s32.totalorder %s40, 1
      %p127 = por %p125, %p126
      %p129 = scmp.ne.s32.totalorder %s112, %s128
      %p130 = scmp.eq.s32.totalorder %s40, 0
      %p131 = por %p129, %p130
      %s132 = ssub.s32 %s41, %s53
      %p133 = scmp.eq.s32.totalorder %s132, 0
      %s135 = sadd.s32 %s134, 1
      %s136 = scalar_select %p133, %s134, %s135
      %p139 = pneg %p133
      %p140 = scmp.eq.s32.totalorder %s34, 1
      %p141 = por %p139, %p140
      %p142 = scmp.ne.s32.totalorder %s134, %s137
      %p143 = scmp.eq.s32.totalorder %s34, 0
      %p144 = por %p142, %p143
      %p145 = scmp.ne.s32.totalorder %s134, %s137
      %p146 = scmp.eq.s32.totalorder %s39, 1
      %p147 = por %p145, %p146
      %p148 = scmp.ne.s32.totalorder %s137, %s138
      %p149 = scmp.eq.s32.totalorder %s39, 0
      %p150 = por %p148, %p149
      %p151 = scmp.ne.s32.totalorder %s137, %s138
      %p152 = scmp.eq.s32.totalorder %s40, 1
      %p153 = por %p151, %p152
      %p155 = scmp.ne.s32.totalorder %s138, %s154
      %p156 = scmp.eq.s32.totalorder %s40, 0
      %p157 = por %p155, %p156
      %s158 = ssub.s32 %s42, %s49
      %p159 = scmp.eq.s32.totalorder %s158, 0
      %s161 = sadd.s32 %s160, 1
      %s162 = scalar_select %p159, %s160, %s161
      %p165 = pneg %p159
      %p166 = scmp.eq.s32.totalorder %s34, 1
      %p167 = por %p165, %p166
      %p168 = scmp.ne.s32.totalorder %s160, %s163
      %p169 = scmp.eq.s32.totalorder %s34, 0
      %p170 = por %p168, %p169
      %p171 = scmp.ne.s32.totalorder %s160, %s163
      %p172 = scmp.eq.s32.totalorder %s39, 1
      %p173 = por %p171, %p172
      %p174 = scmp.ne.s32.totalorder %s163, %s164
      %p175 = scmp.eq.s32.totalorder %s39, 0
      %p176 = por %p174, %p175
      %p177 = scmp.ne.s32.totalorder %s163, %s164
      %p178 = scmp.eq.s32.totalorder %s40, 1
      %p179 = por %p177, %p178
      %p181 = scmp.ne.s32.totalorder %s164, %s180
      %p182 = scmp.eq.s32.totalorder %s40, 0
      %p183 = por %p181, %p182
      %s184 = ssub.s32 %s42, %s49
      %p185 = scmp.eq.s32.totalorder %s184, 0
      %s187 = sadd.s32 %s186, 1
      %s188 = scalar_select %p185, %s186, %s187
      %p191 = pneg %p185
      %p192 = scmp.eq.s32.totalorder %s34, 1
      %p193 = por %p191, %p192
      %p194 = scmp.ne.s32.totalorder %s186, %s189
      %p195 = scmp.eq.s32.totalorder %s34, 0
      %p196 = por %p194, %p195
      %p197 = scmp.ne.s32.totalorder %s186, %s189
      %p198 = scmp.eq.s32.totalorder %s39, 1
      %p199 = por %p197, %p198
      %p200 = scmp.ne.s32.totalorder %s189, %s190
      %p201 = scmp.eq.s32.totalorder %s39, 0
      %p202 = por %p200, %p201
      %p203 = scmp.ne.s32.totalorder %s189, %s190
      %p204 = scmp.eq.s32.totalorder %s40, 1
      %p205 = por %p203, %p204
      %p207 = scmp.ne.s32.totalorder %s190, %s206
      %p208 = scmp.eq.s32.totalorder %s40, 0
      %p209 = por %p207, %p208
      %s210 = ssub.s32 %s42, %s49
      %p211 = scmp.eq.s32.totalorder %s210, 0
      %s213 = sadd.s32 %s212, 1
      %s214 = scalar_select %p211, %s212, %s213
      %p217 = pneg %p211
      %p218 = scmp.eq.s32.totalorder %s34, 1
      %p219 = por %p217, %p218
      %p220 = scmp.ne.s32.totalorder %s212, %s215
      %p221 = scmp.eq.s32.totalorder %s34, 0
      %p222 = por %p220, %p221
      %p223 = scmp.ne.s32.totalorder %s212, %s215
      %p224 = scmp.eq.s32.totalorder %s39, 1
      %p225 = por %p223, %p224
      %p226 = scmp.ne.s32.totalorder %s215, %s216
      %p227 = scmp.eq.s32.totalorder %s39, 0
      %p228 = por %p226, %p227
      %p229 = scmp.ne.s32.totalorder %s215, %s216
      %p230 = scmp.eq.s32.totalorder %s40, 1
      %p231 = por %p229, %p230
      %p233 = scmp.ne.s32.totalorder %s216, %s232
      %p234 = scmp.eq.s32.totalorder %s40, 0
      %p235 = por %p233, %p234
      %s236 = ssub.s32 %s42, %s49
      %p237 = scmp.eq.s32.totalorder %s236, 0
      %s239 = sadd.s32 %s238, 1
      %s240 = scalar_select %p237, %s238, %s239
      %p243 = pneg %p237
      %p244 = scmp.eq.s32.totalorder %s34, 1
      %p245 = por %p243, %p244
      %p246 = scmp.ne.s32.totalorder %s238, %s241
      %p247 = scmp.eq.s32.totalorder %s34, 0
      %p248 = por %p246, %p247
      %p249 = scmp.ne.s32.totalorder %s238, %s241
      %p250 = scmp.eq.s32.totalorder %s39, 1
      %p251 = por %p249, %p250
      %p252 = scmp.ne.s32.totalorder %s241, %s242
      %p253 = scmp.eq.s32.totalorder %s39, 0
      %p254 = por %p252, %p253
      %p255 = scmp.ne.s32.totalorder %s241, %s242
      %p256 = scmp.eq.s32.totalorder %s40, 1
      %p257 = por %p255, %p256
      %p259 = scmp.ne.s32.totalorder %s242, %s258
      %p260 = scmp.eq.s32.totalorder %s40, 0
      %p261 = por %p259, %p260
      %s262 = ssub.s32 %s42, %s49
      %p263 = scmp.eq.s32.totalorder %s262, 0
      %s265 = sadd.s32 %s264, 1
      %s266 = scalar_select %p263, %s264, %s265
      %p269 = pneg %p263
      %p270 = scmp.eq.s32.totalorder %s34, 1
      %p271 = por %p269, %p270
      %p272 = scmp.ne.s32.totalorder %s264, %s267
      %p273 = scmp.eq.s32.totalorder %s34, 0
      %p274 = por %p272, %p273
      %p275 = scmp.ne.s32.totalorder %s264, %s267
      %p276 = scmp.eq.s32.totalorder %s39, 1
      %p277 = por %p275, %p276
      %p278 = scmp.ne.s32.totalorder %s267, %s268
      %p279 = scmp.eq.s32.totalorder %s39, 0
      %p280 = por %p278, %p279
      %p281 = scmp.ne.s32.totalorder %s267, %s268
      %p282 = scmp.eq.s32.totalorder %s40, 1
      %p283 = por %p281, %p282
      %p285 = scmp.ne.s32.totalorder %s268, %s284
      %p286 = scmp.eq.s32.totalorder %s40, 0
      %p287 = por %p285, %p286
      %s288 = ssub.s32 %s42, %s49
      %p289 = scmp.eq.s32.totalorder %s288, 0
      %s291 = sadd.s32 %s290, 1
      %s292 = scalar_select %p289, %s290, %s291
      %p295 = pneg %p289
      %p296 = scmp.eq.s32.totalorder %s34, 1
      %p297 = por %p295, %p296
      %p298 = scmp.ne.s32.totalorder %s290, %s293
      %p299 = scmp.eq.s32.totalorder %s34, 0
      %p300 = por %p298, %p299
      %p301 = scmp.ne.s32.totalorder %s290, %s293
      %p302 = scmp.eq.s32.totalorder %s39, 1
      %p303 = por %p301, %p302
      %p304 = scmp.ne.s32.totalorder %s293, %s294
      %p305 = scmp.eq.s32.totalorder %s39, 0
      %p306 = por %p304, %p305
      %p307 = scmp.ne.s32.totalorder %s293, %s294
      %p308 = scmp.eq.s32.totalorder %s40, 1
      %p309 = por %p307, %p308
      %p311 = scmp.ne.s32.totalorder %s294, %s310
      %p312 = scmp.eq.s32.totalorder %s40, 0
      %p313 = por %p311, %p312
      %s314 = ssub.s32 %s42, %s49
      %p315 = scmp.eq.s32.totalorder %s314, 0
      %s317 = sadd.s32 %s316, 1
      %s318 = scalar_select %p315, %s316, %s317
      %p321 = pneg %p315
      %p322 = scmp.eq.s32.totalorder %s34, 1
      %p323 = por %p321, %p322
      %p324 = scmp.ne.s32.totalorder %s316, %s319
      %p325 = scmp.eq.s32.totalorder %s34, 0
      %p326 = por %p324, %p325
      %p327 = scmp.ne.s32.totalorder %s316, %s319
      %p328 = scmp.eq.s32.totalorder %s39, 1
      %p329 = por %p327, %p328
      %p330 = scmp.ne.s32.totalorder %s319, %s320
      %p331 = scmp.eq.s32.totalorder %s39, 0
      %p332 = por %p330, %p331
      %p333 = scmp.ne.s32.totalorder %s319, %s320
      %p334 = scmp.eq.s32.totalorder %s40, 1
      %p335 = por %p333, %p334
      %p337 = scmp.ne.s32.totalorder %s320, %s336
      %p338 = scmp.eq.s32.totalorder %s40, 0
      %p339 = por %p337, %p338
      %s340 = ssub.s32 %s42, %s49
      %p341 = scmp.eq.s32.totalorder %s340, 0
      %s343 = sadd.s32 %s342, 1
      %s344 = scalar_select %p341, %s342, %s343
      %p347 = pneg %p341
      %p348 = scmp.eq.s32.totalorder %s34, 1
      %p349 = por %p347, %p348
      %p350 = scmp.ne.s32.totalorder %s342, %s345
      %p351 = scmp.eq.s32.totalorder %s34, 0
      %p352 = por %p350, %p351
      %p353 = scmp.ne.s32.totalorder %s342, %s345
      %p354 = scmp.eq.s32.totalorder %s39, 1
      %p355 = por %p353, %p354
      %p356 = scmp.ne.s32.totalorder %s345, %s346
      %p357 = scmp.eq.s32.totalorder %s39, 0
      %p358 = por %p356, %p357
      %p359 = scmp.ne.s32.totalorder %s345, %s346
      %p360 = scmp.eq.s32.totalorder %s40, 1
      %p361 = por %p359, %p360
      %p363 = scmp.ne.s32.totalorder %s346, %s362
      %p364 = scmp.eq.s32.totalorder %s40, 0
      %p365 = por %p363, %p364
      %s366 = ssub.s32 %s42, %s49
      %p367 = scmp.eq.s32.totalorder %s366, 0
      %s369 = sadd.s32 %s368, 1
      %s370 = scalar_select %p367, %s368, %s369
      %p373 = pneg %p367
      %p374 = scmp.eq.s32.totalorder %s34, 1
      %p375 = por %p373, %p374
      %p376 = scmp.ne.s32.totalorder %s368, %s371
      %p377 = scmp.eq.s32.totalorder %s34, 0
      %p378 = por %p376, %p377
      %p379 = scmp.ne.s32.totalorder %s368, %s371
      %p380 = scmp.eq.s32.totalorder %s39, 1
      %p381 = por %p379, %p380
      %p382 = scmp.ne.s32.totalorder %s371, %s372
      %p383 = scmp.eq.s32.totalorder %s39, 0
      %p384 = por %p382, %p383
      %p385 = scmp.ne.s32.totalorder %s371, %s372
      %p386 = scmp.eq.s32.totalorder %s40, 1
      %p387 = por %p385, %p386
      %p389 = scmp.ne.s32.totalorder %s372, %s388
      %p390 = scmp.eq.s32.totalorder %s40, 0
      %p391 = por %p389, %p390
      %s392 = ssub.s32 %s42, %s49
      %p393 = scmp.eq.s32.totalorder %s392, 0
      %s395 = sadd.s32 %s394, 1
      %s396 = scalar_select %p393, %s394, %s395
      %p399 = pneg %p393
      %p400 = scmp.eq.s32.totalorder %s34, 1
      %p401 = por %p399, %p400
      %p402 = scmp.ne.s32.totalorder %s394, %s397
      %p403 = scmp.eq.s32.totalorder %s34, 0
      %p404 = por %p402, %p403
      %p405 = scmp.ne.s32.totalorder %s394, %s397
      %p406 = scmp.eq.s32.totalorder %s39, 1
      %p407 = por %p405, %p406
      %p408 = scmp.ne.s32.totalorder %s397, %s398
      %p409 = scmp.eq.s32.totalorder %s39, 0
      %p410 = por %p408, %p409
      %p411 = scmp.ne.s32.totalorder %s397, %s398
      %p412 = scmp.eq.s32.totalorder %s40, 1
      %p413 = por %p411, %p412
      %p415 = scmp.ne.s32.totalorder %s398, %s414
      %p416 = scmp.eq.s32.totalorder %s40, 0
      %p417 = por %p415, %p416
      %s418 = ssub.s32 %s42, %s49
      %p419 = scmp.eq.s32.totalorder %s418, 0
      %s421 = sadd.s32 %s420, 1
      %s422 = scalar_select %p419, %s420, %s421
      %p425 = pneg %p419
      %p426 = scmp.eq.s32.totalorder %s34, 1
      %p427 = por %p425, %p426
      %p428 = scmp.ne.s32.totalorder %s420, %s423
      %p429 = scmp.eq.s32.totalorder %s34, 0
      %p430 = por %p428, %p429
      %p431 = scmp.ne.s32.totalorder %s420, %s423
      %p432 = scmp.eq.s32.totalorder %s39, 1
      %p433 = por %p431, %p432
      %p434 = scmp.ne.s32.totalorder %s423, %s424
      %p435 = scmp.eq.s32.totalorder %s39, 0
      %p436 = por %p434, %p435
      %p437 = scmp.ne.s32.totalorder %s423, %s424
      %p438 = scmp.eq.s32.totalorder %s40, 1
      %p439 = por %p437, %p438
      %p441 = scmp.ne.s32.totalorder %s424, %s440
      %p442 = scmp.eq.s32.totalorder %s40, 0
      %p443 = por %p441, %p442
      %s444 = ssub.s32 %s42, %s49
      %p445 = scmp.eq.s32.totalorder %s444, 0
      %s447 = sadd.s32 %s446, 1
      %s448 = scalar_select %p445, %s446, %s447
      %p451 = pneg %p445
      %p452 = scmp.eq.s32.totalorder %s34, 1
      %p453 = por %p451, %p452
      %p454 = scmp.ne.s32.totalorder %s446, %s449
      %p455 = scmp.eq.s32.totalorder %s34, 0
      %p456 = por %p454, %p455
      %p457 = scmp.ne.s32.totalorder %s446, %s449
      %p458 = scmp.eq.s32.totalorder %s39, 1
      %p459 = por %p457, %p458
      %p460 = scmp.ne.s32.totalorder %s449, %s450
      %p461 = scmp.eq.s32.totalorder %s39, 0
      %p462 = por %p460, %p461
      %p463 = scmp.ne.s32.totalorder %s449, %s450
      %p464 = scmp.eq.s32.totalorder %s40, 1
      %p465 = por %p463, %p464
      %p467 = scmp.ne.s32.totalorder %s450, %s466
      %p468 = scmp.eq.s32.totalorder %s40, 0
      %p469 = por %p467, %p468
      %s470 = ssub.s32 %s42, %s49
      %p471 = scmp.eq.s32.totalorder %s470, 0
      %s473 = sadd.s32 %s472, 1
      %s474 = scalar_select %p471, %s472, %s473
      %p477 = pneg %p471
      %p478 = scmp.eq.s32.totalorder %s34, 1
      %p479 = por %p477, %p478
      %p480 = scmp.ne.s32.totalorder %s472, %s475
      %p481 = scmp.eq.s32.totalorder %s34, 0
      %p482 = por %p480, %p481
      %p483 = scmp.ne.s32.totalorder %s472, %s475
      %p484 = scmp.eq.s32.totalorder %s39, 1
      %p485 = por %p483, %p484
      %p486 = scmp.ne.s32.totalorder %s475, %s476
      %p487 = scmp.eq.s32.totalorder %s39, 0
      %p488 = por %p486, %p487
      %p489 = scmp.ne.s32.totalorder %s475, %s476
      %p490 = scmp.eq.s32.totalorder %s40, 1
      %p491 = por %p489, %p490
      %p493 = scmp.ne.s32.totalorder %s476, %s492
      %p494 = scmp.eq.s32.totalorder %s40, 0
      %p495 = por %p493, %p494
      %s496 = ssub.s32 %s42, %s49
      %p497 = scmp.eq.s32.totalorder %s496, 0
      %s499 = sadd.s32 %s498, 1
      %s500 = scalar_select %p497, %s498, %s499
      %p503 = pneg %p497
      %p504 = scmp.eq.s32.totalorder %s34, 1
      %p505 = por %p503, %p504
      %p506 = scmp.ne.s32.totalorder %s498, %s501
      %p507 = scmp.eq.s32.totalorder %s34, 0
      %p508 = por %p506, %p507
      %p509 = scmp.ne.s32.totalorder %s498, %s501
      %p510 = scmp.eq.s32.totalorder %s39, 1
      %p511 = por %p509, %p510
      %p512 = scmp.ne.s32.totalorder %s501, %s502
      %p513 = scmp.eq.s32.totalorder %s39, 0
      %p514 = por %p512, %p513
      %p515 = scmp.ne.s32.totalorder %s501, %s502
      %p516 = scmp.eq.s32.totalorder %s40, 1
      %p517 = por %p515, %p516
      %p519 = scmp.ne.s32.totalorder %s502, %s518
      %p520 = scmp.eq.s32.totalorder %s40, 0
      %p521 = por %p519, %p520
      %s522 = ssub.s32 %s42, %s49
      %p523 = scmp.eq.s32.totalorder %s522, 0
      %s525 = sadd.s32 %s524, 1
      %s526 = scalar_select %p523, %s524, %s525
      %p529 = pneg %p523
      %p530 = scmp.eq.s32.totalorder %s34, 1
      %p531 = por %p529, %p530
      %p532 = scmp.ne.s32.totalorder %s524, %s527
      %p533 = scmp.eq.s32.totalorder %s34, 0
      %p534 = por %p532, %p533
      %p535 = scmp.ne.s32.totalorder %s524, %s527
      %p536 = scmp.eq.s32.totalorder %s39, 1
      %p537 = por %p535, %p536
      %p538 = scmp.ne.s32.totalorder %s527, %s528
      %p539 = scmp.eq.s32.totalorder %s39, 0
      %p540 = por %p538, %p539
      %p541 = scmp.ne.s32.totalorder %s527, %s528
      %p542 = scmp.eq.s32.totalorder %s40, 1
      %p543 = por %p541, %p542
      %p545 = scmp.ne.s32.totalorder %s528, %s544
      %p546 = scmp.eq.s32.totalorder %s40, 0
      %p547 = por %p545, %p546
      %s548 = ssub.s32 %s42, %s49
      %p549 = scmp.eq.s32.totalorder %s548, 0
      %s551 = sadd.s32 %s550, 1
      %s552 = scalar_select %p549, %s550, %s551
      %p555 = pneg %p549
      %p556 = scmp.eq.s32.totalorder %s34, 1
      %p557 = por %p555, %p556
      %p558 = scmp.ne.s32.totalorder %s550, %s553
      %p559 = scmp.eq.s32.totalorder %s34, 0
      %p560 = por %p558, %p559
      %p561 = scmp.ne.s32.totalorder %s550, %s553
      %p562 = scmp.eq.s32.totalorder %s39, 1
      %p563 = por %p561, %p562
      %p564 = scmp.ne.s32.totalorder %s553, %s554
      %p565 = scmp.eq.s32.totalorder %s39, 0
      %p566 = por %p564, %p565
      %p567 = scmp.ne.s32.totalorder %s553, %s554
      %p568 = scmp.eq.s32.totalorder %s40, 1
      %p569 = por %p567, %p568
      %p571 = scmp.ne.s32.totalorder %s554, %s570
      %p572 = scmp.eq.s32.totalorder %s40, 0
      %p573 = por %p571, %p572
      %s574 = ssub.s32 %s42, %s49
      %s575 = ssub.s32 %s41, %s53
      %s576 = sor.u32 %s574, %s575
      %p577 = scmp.eq.s32.totalorder %s576, 0
      %s579 = sadd.s32 %s578, 1
      %s580 = scalar_select %p577, %s578, %s579
      %p583 = pneg %p577
      %p584 = scmp.eq.s32.totalorder %s34, 1
      %p585 = por %p583, %p584
      %p586 = scmp.ne.s32.totalorder %s578, %s581
      %p587 = scmp.eq.s32.totalorder %s34, 0
      %p588 = por %p586, %p587
      %p589 = scmp.ne.s32.totalorder %s578, %s581
      %p590 = scmp.eq.s32.totalorder %s39, 1
      %p591 = por %p589, %p590
      %p592 = scmp.ne.s32.totalorder %s581, %s582
      %p593 = scmp.eq.s32.totalorder %s39, 0
      %p594 = por %p592, %p593
      %p595 = scmp.ne.s32.totalorder %s581, %s582
      %p596 = scmp.eq.s32.totalorder %s40, 1
      %p597 = por %p595, %p596
      %p599 = scmp.ne.s32.totalorder %s582, %s598
      %p600 = scmp.eq.s32.totalorder %s40, 0
      %p601 = por %p599, %p600
      %s602 = ssub.s32 %s42, %s49
      %s603 = ssub.s32 %s41, %s53
      %s604 = sor.u32 %s602, %s603
      %p605 = scmp.eq.s32.totalorder %s604, 0
      %s607 = sadd.s32 %s606, 1
      %s608 = scalar_select %p605, %s606, %s607
      %p611 = pneg %p605
      %p612 = scmp.eq.s32.totalorder %s34, 1
      %p613 = por %p611, %p612
      %p614 = scmp.ne.s32.totalorder %s606, %s609
      %p615 = scmp.eq.s32.totalorder %s34, 0
      %p616 = por %p614, %p615
      %p617 = scmp.ne.s32.totalorder %s606, %s609
      %p618 = scmp.eq.s32.totalorder %s39, 1
      %p619 = por %p617, %p618
      %p620 = scmp.ne.s32.totalorder %s609, %s610
      %p621 = scmp.eq.s32.totalorder %s39, 0
      %p622 = por %p620, %p621
      %p623 = scmp.ne.s32.totalorder %s609, %s610
      %p624 = scmp.eq.s32.totalorder %s40, 1
      %p625 = por %p623, %p624
      %p627 = scmp.ne.s32.totalorder %s610, %s626
      %p628 = scmp.eq.s32.totalorder %s40, 0
      %p629 = por %p627, %p628
      %p630 = scmp.le.s32.totalorder 1, %s34
      %p631 = scmp.lt.s32.totalorder %s34, 3
      %p632 = pnand %p630, %p631
      %p633 = pneg %p632
      // Predicated region
      $region9: #{tpu_custom_call.1} parent=5 // pred_check
        _
      $region10: #{tpu_custom_call.1} parent=5 // pred_check_branch
        %635 = sbr.rel (%p632) target = $region12
      $region11: #{tpu_custom_call.1} parent=5 // pred_region
        %s636 = ssub.s32 %s34, 1
        // Predicated region
        $region13: #{tpu_custom_call.1} parent=11 // pred_check
          %p637 = pneg %p72
        $region14: #{tpu_custom_call.1} parent=11 // pred_check_branch
          %639 = sbr.rel (%p637) target = $region16
        $region15: #{tpu_custom_call.1} parent=11 // pred_region
          %s640 = smul.u32 2, %s43
          %s642 = ssub.s32 256, 256
          %643 = vsyncadd [#allocation8], %s642
          %s644 = smul.addr %s640, 128
          %s645 = scalar_lea.hbm %s0, %s644
          %s646 = sshll.u32 [#allocation7], 4
          %s647 = int_to_ptr.vmem [resolvable:$true] %s646
          %652 = dma.hbm_to_vmem [thread:$0]  %s645, 256, %s647, [#allocation8], 128, 128, 8
        $region16: #{tpu_custom_call.1} parent=11 // pred_fallthru
          _
        // Predicated region
        $region17: #{tpu_custom_call.1} parent=11 // pred_check
          %p653 = pneg %p98
        $region18: #{tpu_custom_call.1} parent=11 // pred_check_branch
          %655 = sbr.rel (%p653) target = $region20
        $region19: #{tpu_custom_call.1} parent=11 // pred_region
          %s656 = smul.u32 2, %s43
          %s658 = ssub.s32 256, 256
          %659 = vsyncadd [#allocation11], %s658
          %s660 = smul.addr %s656, 128
          %s661 = scalar_lea.hbm %s1, %s660
          %s662 = sshll.u32 [#allocation10], 4
          %s663 = int_to_ptr.vmem [resolvable:$true] %s662
          %668 = dma.hbm_to_vmem [thread:$0]  %s661, 256, %s663, [#allocation11], 128, 128, 8
        $region20: #{tpu_custom_call.1} parent=11 // pred_fallthru
          _
        // Predicated region
        $region21: #{tpu_custom_call.1} parent=11 // pred_check
          %p669 = pneg %p124
        $region22: #{tpu_custom_call.1} parent=11 // pred_check_branch
          %671 = sbr.rel (%p669) target = $region24
        $region23: #{tpu_custom_call.1} parent=11 // pred_region
          %s672 = smul.u32 2, %s43
          %s674 = ssub.s32 256, 256
          %675 = vsyncadd [#allocation11], %s674
          %s676 = smul.addr %s672, 128
          %s677 = scalar_lea.hbm %s2, %s676
          %s678 = sshll.u32 [#allocation12], 4
          %s679 = int_to_ptr.vmem [resolvable:$true] %s678
          %684 = dma.hbm_to_vmem [thread:$0]  %s677, 256, %s679, [#allocation11], 128, 128, 8
        $region24: #{tpu_custom_call.1} parent=11 // pred_fallthru
          _
        // Predicated region
        $region25: #{tpu_custom_call.1} parent=11 // pred_check
          %p685 = pneg %p150
        $region26: #{tpu_custom_call.1} parent=11 // pred_check_branch
          %687 = sbr.rel (%p685) target = $region28
        $region27: #{tpu_custom_call.1} parent=11 // pred_region
          %s688 = smul.u32 2, %s43
          %s690 = ssub.s32 256, 256
          %691 = vsyncadd [#allocation14], %s690
          %s692 = smul.addr %s688, 128
          %s693 = scalar_lea.hbm %s3, %s692
          %s694 = sshll.u32 [#allocation13], 4
          %s695 = int_to_ptr.vmem [resolvable:$true] %s694
          %700 = dma.hbm_to_vmem [thread:$0]  %s693, 256, %s695, [#allocation14], 128, 128, 8
        $region28: #{tpu_custom_call.1} parent=11 // pred_fallthru
          _
      $region12: #{tpu_custom_call.1} parent=5 // pred_fallthru
        _
      %p701 = scmp.lt.s32.totalorder %s34, 2
      // Predicated region
      $region29: #{tpu_custom_call.1} parent=5 // pred_check
        %p702 = pneg %p701
      $region30: #{tpu_custom_call.1} parent=5 // pred_check_branch
        %704 = sbr.rel (%p702) target = $region32
      $region31: #{tpu_custom_call.1} parent=5 // pred_region
        // Predicated region
        $region33: #{tpu_custom_call.1} parent=31 // pred_check
          %p705 = pneg %p170
        $region34: #{tpu_custom_call.1} parent=31 // pred_check_branch
          %707 = sbr.rel (%p705) target = $region36
        $region35: #{tpu_custom_call.1} parent=31 // pred_region
          %p708 = scmp.lt.s32.totalorder %s42, 1
          %s709 = scalar_select %p708, %s42, 1
          %s710 = smul.addr %s709, 4
          %s711 = smul.addr %s710, 8
          %s712 = scalar_lea.vmem %s4, %s711
        $region36: #{tpu_custom_call.1} parent=31 // pred_fallthru
          _
        // Predicated region
        $region37: #{tpu_custom_call.1} parent=31 // pred_check
          %p713 = pneg %p196
        $region38: #{tpu_custom_call.1} parent=31 // pred_check_branch
          %715 = sbr.rel (%p713) target = $region40
        $region39: #{tpu_custom_call.1} parent=31 // pred_region
          %p716 = scmp.lt.s32.totalorder %s42, 1
          %s717 = scalar_select %p716, %s42, 1
          %s718 = scalar_lea.vmem %s5, %s717
        $region40: #{tpu_custom_call.1} parent=31 // pred_fallthru
          _
        // Predicated region
        $region41: #{tpu_custom_call.1} parent=31 // pred_check
          %p719 = pneg %p222
        $region42: #{tpu_custom_call.1} parent=31 // pred_check_branch
          %721 = sbr.rel (%p719) target = $region44
        $region43: #{tpu_custom_call.1} parent=31 // pred_region
          %p722 = scmp.lt.s32.totalorder %s42, 1
          %s723 = scalar_select %p722, %s42, 1
          %s724 = smul.addr %s723, 4
          %s725 = smul.addr %s724, 8
          %s726 = scalar_lea.vmem %s6, %s725
        $region44: #{tpu_custom_call.1} parent=31 // pred_fallthru
          _
        // Predicated region
        $region45: #{tpu_custom_call.1} parent=31 // pred_check
          %p727 = pneg %p248
        $region46: #{tpu_custom_call.1} parent=31 // pred_check_branch
          %729 = sbr.rel (%p727) target = $region48
        $region47: #{tpu_custom_call.1} parent=31 // pred_region
          %p730 = scmp.lt.s32.totalorder %s42, 1
          %s731 = scalar_select %p730, %s42, 1
          %s732 = scalar_lea.vmem %s7, %s731
        $region48: #{tpu_custom_call.1} parent=31 // pred_fallthru
          _
        // Predicated region
        $region49: #{tpu_custom_call.1} parent=31 // pred_check
          %p733 = pneg %p274
        $region50: #{tpu_custom_call.1} parent=31 // pred_check_branch
          %735 = sbr.rel (%p733) target = $region52
        $region51: #{tpu_custom_call.1} parent=31 // pred_region
          %p736 = scmp.lt.s32.totalorder %s42, 1
          %s737 = scalar_select %p736, %s42, 1
          %s738 = smul.addr %s737, 4
          %s739 = smul.addr %s738, 8
          %s740 = scalar_lea.vmem %s8, %s739
        $region52: #{tpu_custom_call.1} parent=31 // pred_fallthru
          _
        // Predicated region
        $region53: #{tpu_custom_call.1} parent=31 // pred_check
          %p741 = pneg %p300
        $region54: #{tpu_custom_call.1} parent=31 // pred_check_branch
          %743 = sbr.rel (%p741) target = $region56
        $region55: #{tpu_custom_call.1} parent=31 // pred_region
          %p744 = scmp.lt.s32.totalorder %s42, 1
          %s745 = scalar_select %p744, %s42, 1
          %s746 = scalar_lea.vmem %s9, %s745
        $region56: #{tpu_custom_call.1} parent=31 // pred_fallthru
          _
        // Predicated region
        $region57: #{tpu_custom_call.1} parent=31 // pred_check
          %p747 = pneg %p326
        $region58: #{tpu_custom_call.1} parent=31 // pred_check_branch
          %749 = sbr.rel (%p747) target = $region60
        $region59: #{tpu_custom_call.1} parent=31 // pred_region
          %s750 = sand.u32 %s34, 1
          %s751 = scalar_lea.sflag [#allocation8], %s750
          %s752 = sand.u32 %s316, 1
          %s753 = smul.addr %s752, 32
          %s754 = scalar_lea.vmem [#allocation15], %s753
          %s756 = ssub.s32 512, 512
          %757 = vsyncadd %s751, %s756
          %s758 = smul.addr %s42, 4
          %s759 = smul.addr %s758, 128
          %s760 = scalar_lea.hbm %s10, %s759
          %s761 = sshll.u32 %s754, 4
          %s762 = int_to_ptr.vmem [resolvable:$true] %s761
          %767 = dma.hbm_to_vmem [thread:$0]  %s760, 512, %s762, %s751, 128, 128, 8
        $region60: #{tpu_custom_call.1} parent=31 // pred_fallthru
          _
        // Predicated region
        $region61: #{tpu_custom_call.1} parent=31 // pred_check
          %p768 = pneg %p352
        $region62: #{tpu_custom_call.1} parent=31 // pred_check_branch
          %770 = sbr.rel (%p768) target = $region64
        $region63: #{tpu_custom_call.1} parent=31 // pred_region
          %p771 = scmp.lt.s32.totalorder %s42, 1
          %s772 = scalar_select %p771, %s42, 1
          %s773 = scalar_lea.vmem %s11, %s772
        $region64: #{tpu_custom_call.1} parent=31 // pred_fallthru
          _
        // Predicated region
        $region65: #{tpu_custom_call.1} parent=31 // pred_check
          %p774 = pneg %p378
        $region66: #{tpu_custom_call.1} parent=31 // pred_check_branch
          %776 = sbr.rel (%p774) target = $region68
        $region67: #{tpu_custom_call.1} parent=31 // pred_region
          %p777 = scmp.lt.s32.totalorder %s42, 1
          %s778 = scalar_select %p777, %s42, 1
          %s779 = scalar_lea.vmem %s12, %s778
        $region68: #{tpu_custom_call.1} parent=31 // pred_fallthru
          _
        // Predicated region
        $region69: #{tpu_custom_call.1} parent=31 // pred_check
          %p780 = pneg %p404
        $region70: #{tpu_custom_call.1} parent=31 // pred_check_branch
          %782 = sbr.rel (%p780) target = $region72
        $region71: #{tpu_custom_call.1} parent=31 // pred_region
          %p783 = scmp.lt.s32.totalorder %s42, 1
          %s784 = scalar_select %p783, %s42, 1
          %s785 = scalar_lea.vmem %s13, %s784
        $region72: #{tpu_custom_call.1} parent=31 // pred_fallthru
          _
        // Predicated region
        $region73: #{tpu_custom_call.1} parent=31 // pred_check
          %p786 = pneg %p430
        $region74: #{tpu_custom_call.1} parent=31 // pred_check_branch
          %788 = sbr.rel (%p786) target = $region76
        $region75: #{tpu_custom_call.1} parent=31 // pred_region
          %s789 = sand.u32 %s34, 1
          %s790 = scalar_lea.sflag [#allocation8], %s789
          %s791 = sand.u32 %s420, 1
          %s792 = smul.addr %s791, 32
          %s793 = scalar_lea.vmem [#allocation16], %s792
          %s795 = ssub.s32 512, 512
          %796 = vsyncadd %s790, %s795
          %s797 = smul.addr %s42, 4
          %s798 = smul.addr %s797, 128
          %s799 = scalar_lea.hbm %s14, %s798
          %s800 = sshll.u32 %s793, 4
          %s801 = int_to_ptr.vmem [resolvable:$true] %s800
          %806 = dma.hbm_to_vmem [thread:$0]  %s799, 512, %s801, %s790, 128, 128, 8
        $region76: #{tpu_custom_call.1} parent=31 // pred_fallthru
          _
        // Predicated region
        $region77: #{tpu_custom_call.1} parent=31 // pred_check
          %p807 = pneg %p456
        $region78: #{tpu_custom_call.1} parent=31 // pred_check_branch
          %809 = sbr.rel (%p807) target = $region80
        $region79: #{tpu_custom_call.1} parent=31 // pred_region
          %p810 = scmp.lt.s32.totalorder %s42, 1
          %s811 = scalar_select %p810, %s42, 1
          %s812 = scalar_lea.vmem %s15, %s811
        $region80: #{tpu_custom_call.1} parent=31 // pred_fallthru
          _
        // Predicated region
        $region81: #{tpu_custom_call.1} parent=31 // pred_check
          %p813 = pneg %p482
        $region82: #{tpu_custom_call.1} parent=31 // pred_check_branch
          %815 = sbr.rel (%p813) target = $region84
        $region83: #{tpu_custom_call.1} parent=31 // pred_region
          %p816 = scmp.lt.s32.totalorder %s42, 1
          %s817 = scalar_select %p816, %s42, 1
          %s818 = smul.addr %s817, 8
          %s819 = smul.addr %s818, 8
          %s820 = scalar_lea.vmem %s16, %s819
        $region84: #{tpu_custom_call.1} parent=31 // pred_fallthru
          _
        // Predicated region
        $region85: #{tpu_custom_call.1} parent=31 // pred_check
          %p821 = pneg %p508
        $region86: #{tpu_custom_call.1} parent=31 // pred_check_branch
          %823 = sbr.rel (%p821) target = $region88
        $region87: #{tpu_custom_call.1} parent=31 // pred_region
          %p824 = scmp.lt.s32.totalorder %s42, 1
          %s825 = scalar_select %p824, %s42, 1
          %s826 = scalar_lea.vmem %s17, %s825
        $region88: #{tpu_custom_call.1} parent=31 // pred_fallthru
          _
        // Predicated region
        $region89: #{tpu_custom_call.1} parent=31 // pred_check
          %p827 = pneg %p534
        $region90: #{tpu_custom_call.1} parent=31 // pred_check_branch
          %829 = sbr.rel (%p827) target = $region92
        $region91: #{tpu_custom_call.1} parent=31 // pred_region
          %p830 = scmp.lt.s32.totalorder %s42, 1
          %s831 = scalar_select %p830, %s42, 1
          %s832 = scalar_lea.vmem %s18, %s831
        $region92: #{tpu_custom_call.1} parent=31 // pred_fallthru
          _
        // Predicated region
        $region93: #{tpu_custom_call.1} parent=31 // pred_check
          %p833 = pneg %p560
        $region94: #{tpu_custom_call.1} parent=31 // pred_check_branch
          %835 = sbr.rel (%p833) target = $region96
        $region95: #{tpu_custom_call.1} parent=31 // pred_region
          %p836 = scmp.lt.s32.totalorder %s42, 1
          %s837 = scalar_select %p836, %s42, 1
          %s838 = scalar_lea.vmem %s19, %s837
        $region96: #{tpu_custom_call.1} parent=31 // pred_fallthru
          _
      $region32: #{tpu_custom_call.1} parent=5 // pred_fallthru
        _
      %p839 = scmp.le.s32.totalorder 1, %s34
      %p840 = scmp.lt.s32.totalorder %s34, 3
      %p841 = pnand %p839, %p840
      %p842 = pneg %p841
      // Predicated region
      $region97: #{tpu_custom_call.1} parent=5 // pred_check
        _
      $region98: #{tpu_custom_call.1} parent=5 // pred_check_branch
        %844 = sbr.rel (%p841) target = $region100
      $region99: #{tpu_custom_call.1} parent=5 // pred_region
        %s845 = ssub.s32 %s34, 1
        // Predicated region
        $region101: #{tpu_custom_call.1} parent=99 // pred_check
          %p846 = pneg %p72
        $region102: #{tpu_custom_call.1} parent=99 // pred_check_branch
          %848 = sbr.rel (%p846) target = $region104
        $region103: #{tpu_custom_call.1} parent=99 // pred_region
          %849 = dma.done [#allocation8], 256
        $region104: #{tpu_custom_call.1} parent=99 // pred_fallthru
          _
        // Predicated region
        $region105: #{tpu_custom_call.1} parent=99 // pred_check
          %p850 = pneg %p98
        $region106: #{tpu_custom_call.1} parent=99 // pred_check_branch
          %852 = sbr.rel (%p850) target = $region108
        $region107: #{tpu_custom_call.1} parent=99 // pred_region
          %853 = dma.done [#allocation11], 256
        $region108: #{tpu_custom_call.1} parent=99 // pred_fallthru
          _
        // Predicated region
        $region109: #{tpu_custom_call.1} parent=99 // pred_check
          %p854 = pneg %p124
        $region110: #{tpu_custom_call.1} parent=99 // pred_check_branch
          %856 = sbr.rel (%p854) target = $region112
        $region111: #{tpu_custom_call.1} parent=99 // pred_region
          %857 = dma.done [#allocation11], 256
        $region112: #{tpu_custom_call.1} parent=99 // pred_fallthru
          _
        // Predicated region
        $region113: #{tpu_custom_call.1} parent=99 // pred_check
          %p858 = pneg %p150
        $region114: #{tpu_custom_call.1} parent=99 // pred_check_branch
          %860 = sbr.rel (%p858) target = $region116
        $region115: #{tpu_custom_call.1} parent=99 // pred_region
          %861 = dma.done [#allocation14], 256
        $region116: #{tpu_custom_call.1} parent=99 // pred_fallthru
          _
        %s862 = sand.u32 %s39, 1
        %s863 = scalar_lea.sflag [#allocation8], %s862
        %s864 = sand.u32 %s319, 1
        %s865 = smul.addr %s864, 32
        %s866 = scalar_lea.vmem [#allocation15], %s865
        // Predicated region
        $region117: #{tpu_custom_call.1} parent=99 // pred_check
          %p867 = pneg %p332
        $region118: #{tpu_custom_call.1} parent=99 // pred_check_branch
          %869 = sbr.rel (%p867) target = $region120
        $region119: #{tpu_custom_call.1} parent=99 // pred_region
          %870 = dma.done %s863, 512
        $region120: #{tpu_custom_call.1} parent=99 // pred_fallthru
          _
        %s871 = sand.u32 %s39, 1
        %s872 = scalar_lea.sflag [#allocation8], %s871
        %s873 = sand.u32 %s423, 1
        %s874 = smul.addr %s873, 32
        %s875 = scalar_lea.vmem [#allocation16], %s874
        // Predicated region
        $region121: #{tpu_custom_call.1} parent=99 // pred_check
          %p876 = pneg %p436
        $region122: #{tpu_custom_call.1} parent=99 // pred_check_branch
          %878 = sbr.rel (%p876) target = $region124
        $region123: #{tpu_custom_call.1} parent=99 // pred_region
          %879 = dma.done %s872, 512
        $region124: #{tpu_custom_call.1} parent=99 // pred_fallthru
          _
        %p880 = pneg %p72
        %p881 = pneg %p69
        %p882 = pneg %p98
        %p883 = pneg %p95
        %p884 = pneg %p124
        %p885 = pneg %p121
        %p886 = pneg %p150
        %p887 = pneg %p147
        %p888 = scmp.lt.s32.totalorder %s44, 1
        %s889 = scalar_select %p888, %s44, 1
        %s890 = smul.addr %s889, 4
        %s891 = smul.addr %s890, 8
        %s892 = scalar_lea.vmem %s4, %s891
        %p893 = pneg %p176
        %p894 = pneg %p173
        %p895 = scmp.lt.s32.totalorder %s44, 1
        %s896 = scalar_select %p895, %s44, 1
        %s897 = scalar_lea.vmem %s5, %s896
        %p898 = pneg %p202
        %p899 = pneg %p199
        %p900 = scmp.lt.s32.totalorder %s44, 1
        %s901 = scalar_select %p900, %s44, 1
        %s902 = smul.addr %s901, 4
        %s903 = smul.addr %s902, 8
        %s904 = scalar_lea.vmem %s6, %s903
        %p905 = pneg %p228
        %p906 = pneg %p225
        %p907 = scmp.lt.s32.totalorder %s44, 1
        %s908 = scalar_select %p907, %s44, 1
        %s909 = scalar_lea.vmem %s7, %s908
        %p910 = pneg %p254
        %p911 = pneg %p251
        %p912 = scmp.lt.s32.totalorder %s44, 1
        %s913 = scalar_select %p912, %s44, 1
        %s914 = smul.addr %s913, 4
        %s915 = smul.addr %s914, 8
        %s916 = scalar_lea.vmem %s8, %s915
        %p917 = pneg %p280
        %p918 = pneg %p277
        %p919 = scmp.lt.s32.totalorder %s44, 1
        %s920 = scalar_select %p919, %s44, 1
        %s921 = scalar_lea.vmem %s9, %s920
        %p922 = pneg %p306
        %p923 = pneg %p303
        %s924 = sand.u32 %s39, 1
        %s925 = scalar_lea.sflag [#allocation8], %s924
        %s926 = sand.u32 %s319, 1
        %s927 = smul.addr %s926, 32
        %s928 = scalar_lea.vmem [#allocation15], %s927
        %p929 = pneg %p332
        %p930 = pneg %p329
        %p931 = scmp.lt.s32.totalorder %s44, 1
        %s932 = scalar_select %p931, %s44, 1
        %s933 = scalar_lea.vmem %s11, %s932
        %p934 = pneg %p358
        %p935 = pneg %p355
        %p936 = scmp.lt.s32.totalorder %s44, 1
        %s937 = scalar_select %p936, %s44, 1
        %s938 = scalar_lea.vmem %s12, %s937
        %p939 = pneg %p384
        %p940 = pneg %p381
        %p941 = scmp.lt.s32.totalorder %s44, 1
        %s942 = scalar_select %p941, %s44, 1
        %s943 = scalar_lea.vmem %s13, %s942
        %p944 = pneg %p410
        %p945 = pneg %p407
        %s946 = sand.u32 %s39, 1
        %s947 = scalar_lea.sflag [#allocation8], %s946
        %s948 = sand.u32 %s423, 1
        %s949 = smul.addr %s948, 32
        %s950 = scalar_lea.vmem [#allocation16], %s949
        %p951 = pneg %p436
        %p952 = pneg %p433
        %p953 = scmp.lt.s32.totalorder %s44, 1
        %s954 = scalar_select %p953, %s44, 1
        %s955 = scalar_lea.vmem %s15, %s954
        %p956 = pneg %p462
        %p957 = pneg %p459
        %p958 = scmp.lt.s32.totalorder %s44, 1
        %s959 = scalar_select %p958, %s44, 1
        %s960 = smul.addr %s959, 8
        %s961 = smul.addr %s960, 8
        %s962 = scalar_lea.vmem %s16, %s961
        %p963 = pneg %p488
        %p964 = pneg %p485
        %p965 = scmp.lt.s32.totalorder %s44, 1
        %s966 = scalar_select %p965, %s44, 1
        %s967 = scalar_lea.vmem %s17, %s966
        %p968 = pneg %p514
        %p969 = pneg %p511
        %p970 = scmp.lt.s32.totalorder %s44, 1
        %s971 = scalar_select %p970, %s44, 1
        %s972 = scalar_lea.vmem %s18, %s971
        %p973 = pneg %p540
        %p974 = pneg %p537
        %p975 = scmp.lt.s32.totalorder %s44, 1
        %s976 = scalar_select %p975, %s44, 1
        %s977 = scalar_lea.vmem %s19, %s976
        %p978 = pneg %p566
        %p979 = pneg %p563
        %p980 = pneg %p594
        %p981 = pneg %p591
        %s982 = sand.u32 %s581, 1
        %s983 = scalar_lea.sflag [#allocation9], %s982
        %s984 = sand.u32 %s581, 1
        %s985 = smul.addr %s984, 16
        %s986 = scalar_lea.vmem [#allocation17], %s985
        %p987 = pneg %p622
        %p988 = pneg %p619
        %s989 = smul.u32 2, %s43
        %p990 = scmp.lt.s32.totalorder %s44, 1
        %s991 = scalar_select %p990, %s44, 1
        %p992 = scmp.lt.s32.totalorder %s989, 1
        %s993 = scalar_select %p992, %s989, 1
        %s994 = smul.addr %s991, 2
        %s995 = sadd.s32 %s993, %s994
        %s996 = smul.addr %s995, 8
        %s997 = scalar_lea.vmem %s21, %s996
        %s998 = smul.u32 2, %s43
        %s999 = smul.u32 2, %s43
        %s1000 = smul.u32 2, %s43
        %s1001 = smul.u32 2, %s43
        %p1002 = scmp.lt.s32.totalorder %s44, 1
        %s1003 = scalar_select %p1002, %s44, 1
        %s1004 = smul.addr %s1003, 4
        %s1005 = smul.addr %s1004, 8
        %s1006 = scalar_lea.vmem %s4, %s1005
        %p1007 = scmp.lt.s32.totalorder %s44, 1
        %s1008 = scalar_select %p1007, %s44, 1
        %s1009 = scalar_lea.vmem %s5, %s1008
        %p1010 = scmp.lt.s32.totalorder %s44, 1
        %s1011 = scalar_select %p1010, %s44, 1
        %s1012 = smul.addr %s1011, 4
        %s1013 = smul.addr %s1012, 8
        %s1014 = scalar_lea.vmem %s6, %s1013
        %p1015 = scmp.lt.s32.totalorder %s44, 1
        %s1016 = scalar_select %p1015, %s44, 1
        %s1017 = scalar_lea.vmem %s7, %s1016
        %p1018 = scmp.lt.s32.totalorder %s44, 1
        %s1019 = scalar_select %p1018, %s44, 1
        %s1020 = smul.addr %s1019, 4
        %s1021 = smul.addr %s1020, 8
        %s1022 = scalar_lea.vmem %s8, %s1021
        %p1023 = scmp.lt.s32.totalorder %s44, 1
        %s1024 = scalar_select %p1023, %s44, 1
        %s1025 = scalar_lea.vmem %s9, %s1024
        %p1026 = scmp.lt.s32.totalorder %s44, 1
        %s1027 = scalar_select %p1026, %s44, 1
        %s1028 = scalar_lea.vmem %s11, %s1027
        %p1029 = scmp.lt.s32.totalorder %s44, 1
        %s1030 = scalar_select %p1029, %s44, 1
        %s1031 = scalar_lea.vmem %s12, %s1030
        %p1032 = scmp.lt.s32.totalorder %s44, 1
        %s1033 = scalar_select %p1032, %s44, 1
        %s1034 = scalar_lea.vmem %s13, %s1033
        %p1035 = scmp.lt.s32.totalorder %s44, 1
        %s1036 = scalar_select %p1035, %s44, 1
        %s1037 = scalar_lea.vmem %s15, %s1036
        %p1038 = scmp.lt.s32.totalorder %s44, 1
        %s1039 = scalar_select %p1038, %s44, 1
        %s1040 = smul.addr %s1039, 8
        %s1041 = smul.addr %s1040, 8
        %s1042 = scalar_lea.vmem %s16, %s1041
        %p1043 = scmp.lt.s32.totalorder %s44, 1
        %s1044 = scalar_select %p1043, %s44, 1
        %s1045 = scalar_lea.vmem %s17, %s1044
        %p1046 = scmp.lt.s32.totalorder %s44, 1
        %s1047 = scalar_select %p1046, %s44, 1
        %s1048 = scalar_lea.vmem %s18, %s1047
        %p1049 = scmp.lt.s32.totalorder %s44, 1
        %s1050 = scalar_select %p1049, %s44, 1
        %s1051 = scalar_lea.vmem %s19, %s1050
        %s1052 = smul.u32 2, %s43
        %s1053 = smul.u32 2, %s43
        %p1054 = scmp.lt.s32.totalorder %s44, 1
        %s1055 = scalar_select %p1054, %s44, 1
        %p1056 = scmp.lt.s32.totalorder %s1053, 1
        %s1057 = scalar_select %p1056, %s1053, 1
        %s1058 = smul.addr %s1055, 2
        %s1059 = sadd.s32 %s1057, %s1058
        %s1060 = smul.addr %s1059, 8
        %s1061 = scalar_lea.vmem %s21, %s1060
        %s1062 = smul.u32 2, %s43
        %p1063 = scmp.eq.s32.totalorder %s44, 0
        // Predicated region
        $region125: #{tpu_custom_call.1} parent=99 // pred_check
          %p1064 = pneg %p1063
        $region126: #{tpu_custom_call.1} parent=99 // pred_check_branch
          %1066 = sbr.rel (%p1064) target = $region128
        $region127: #{tpu_custom_call.1} parent=99 // pred_region
          %v1067 = vld [vmem:[#allocation7] sm:$0xff]
          %v1068 = vld [vmem:[#allocation7 + $0x8] sm:$0xff]
          %vm1069 = vcmask 261120
          %1070 = vst.msk [vmem:[#allocation2] sm:$0xff] %vm1069, %v1067
          %1071 = vst.msk [vmem:[#allocation2 + $0x8] sm:$0xff] %vm1069, %v1068
        $region128: #{tpu_custom_call.1} parent=99 // pred_fallthru
          _
        %v1072 = vld [vmem:[#allocation2] sm:$0xff]
        %v1073 = vld [vmem:[#allocation2 + $0x8] sm:$0xff]
        %v1074 = vld [vmem:[#allocation10] sm:$0xff]
        %v1075 = vld [vmem:[#allocation10 + $0x8] sm:$0xff]
        %v1076 = vld [vmem:[#allocation12] sm:$0xff]
        %v1077 = vld [vmem:[#allocation12 + $0x8] sm:$0xff]
        %v1078 = vadd.f32 %v1072, %v1076
        %v1079 = vadd.f32 %v1073, %v1077
        %v1080 = vld [vmem:[#allocation13] sm:$0xff]
        %v1081 = vld [vmem:[#allocation13 + $0x8] sm:$0xff]
        %v1082 = vadd.f32 %v1074, %v1080
        %v1083 = vadd.f32 %v1075, %v1081
        %v1084 = vld [vmem:[%s1006] sm:$0xff]
        %v1085 = vld [vmem:[%s1006 + $0x8] sm:$0xff]
        %v1086 = vld [vmem:[%s1006 + $0x10] sm:$0xff]
        %v1087 = vld [vmem:[%s1006 + $0x18] sm:$0xff]
        %v1088 = vld [vmem:[%s1009] sm:$0x1]
        %v1090 = vlaneseq
        %v1091 = vshrl.u32 %v1090, 7
        %v1092 = vsub.s32 0, %v1091
        %v1093 = vrot.slane %v1088, %v1092
        %vm1095 = vcmask 261120
        %v1097 = vsel %vm1095, %v1078, 0
        %v1100 = vsel %vm1095, %v1079, 0
        %1102 = vmatprep.subr.mxu0 0.0
        %1103 = vmatpush1.msra.mxu0 %v1084
        %1104 = vmatprep.subr.mxu0 0.0
        %1105 = vmatpush1.msra.mxu0 %v1085
        %1106 = vmatprep.subr.mxu0 0.0
        %1107 = vmatpush1.msra.mxu0 %v1086
        %1108 = vmatprep.subr.mxu0 0.0
        %1109 = vmatpush1.msra.mxu0 %v1087
        %1110 = vmatprep.subr.mxu0 0.0
        %1111 = vmatpush1.msra.mxu0 0.0
        %1112 = vmatprep.subr.mxu0 0.0
        %1113 = vmatpush1.msra.mxu0 0.0
        %1114 = vmatprep.subr.mxu0 0.0
        %1115 = vmatpush1.msra.mxu0 0.0
        %1116 = vmatprep.subr.mxu0 0.0
        %1117 = vmatpush1.msra.mxu0 0.0
        %1118 = vmatprep.subr.mxu0 0.0
        %1119 = vmatpush1.msra.mxu0 0.0
        %1120 = vmatprep.subr.mxu0 0.0
        %1121 = vmatpush1.msra.mxu0 0.0
        %1122 = vmatprep.subr.mxu0 0.0
        %1123 = vmatpush1.msra.mxu0 0.0
        %1124 = vmatprep.subr.mxu0 0.0
        %1125 = vmatpush1.msra.mxu0 0.0
        %1126 = vmatprep.subr.mxu0 0.0
        %1127 = vmatpush1.msra.mxu0 0.0
        %1128 = vmatprep.subr.mxu0 0.0
        %1129 = vmatpush1.msra.mxu0 0.0
        %1130 = vmatprep.subr.mxu0 0.0
        %1131 = vmatpush1.msra.mxu0 0.0
        %1132 = vmatprep.subr.mxu0 0.0
        %1133 = vmatpush1.msra.mxu0 0.0
        %1134 = vmatprep.subr.mxu0 0.0
        %1135 = vmatpush1.msra.mxu0 0.0
        %1136 = vmatprep.subr.mxu0 0.0
        %1137 = vmatpush1.msra.mxu0 0.0
        %1138 = vmatprep.subr.mxu0 0.0
        %1139 = vmatpush1.msra.mxu0 0.0
        %1140 = vmatprep.subr.mxu0 0.0
        %1141 = vmatpush1.msra.mxu0 0.0
        %1142 = vmatprep.subr.mxu0 0.0
        %1143 = vmatpush1.msra.mxu0 0.0
        %1144 = vmatprep.subr.mxu0 0.0
        %1145 = vmatpush1.msra.mxu0 0.0
        %1146 = vmatprep.subr.mxu0 0.0
        %1147 = vmatpush1.msra.mxu0 0.0
        %1148 = vmatprep.subr.mxu0 0.0
        %1149 = vmatpush1.msra.mxu0 0.0
        %1150 = vmatprep.subr.mxu0 0.0
        %1151 = vmatpush1.msra.mxu0 0.0
        %1152 = vmatprep.subr.mxu0 0.0
        %1153 = vmatpush1.msra.mxu0 0.0
        %1154 = vmatprep.subr.mxu0 0.0
        %1155 = vmatpush1.msra.mxu0 0.0
        %1156 = vmatprep.subr.mxu0 0.0
        %1157 = vmatpush1.msra.mxu0 0.0
        %1158 = vmatprep.subr.mxu0 0.0
        %1159 = vmatpush1.msra.mxu0 0.0
        %1160 = vmatprep.subr.mxu0 0.0
        %1161 = vmatpush1.msra.mxu0 0.0
        %1162 = vmatprep.subr.mxu0 0.0
        %1163 = vmatpush1.msra.mxu0 0.0
        %1164 = vmatprep.subr.mxu0 0.0
        %1165 = vmatpush1.msra.mxu0 0.0
        %1166 = vmatprep.mubr.f32.mxu0 0.0
        %1167 = vmatmul.mubr.f32.gmra.mrb[0].mxu0 %v1097
        %v1168 = vpop.f32.mrb[0].mxu0
        %v1169 = vadd.f32 %v1093, %v1168
        %v1170 = vpop.f32.mrb[0].mxu0
        %1171 = vmatprep.mubr.f32.mxu0 0.0
        %1172 = vmatmul.mubr.f32.gmra.mrb[0].mxu0 %v1100
        %v1173 = vpop.f32.mrb[0].mxu0
        %v1174 = vadd.f32 %v1093, %v1173
        %v1175 = vpop.f32.mrb[0].mxu0
        %1176 = vdwg.mxu0
        %1177 = vst.msk [vmem:[#allocation3] sm:$0xff] %vm1095, %v1169
        %1178 = vst.msk [vmem:[#allocation3 + $0x8] sm:$0xff] %vm1095, %v1174
        %v1179 = vld [vmem:[%s1014] sm:$0xff]
        %v1180 = vld [vmem:[%s1014 + $0x8] sm:$0xff]
        %v1181 = vld [vmem:[%s1014 + $0x10] sm:$0xff]
        %v1182 = vld [vmem:[%s1014 + $0x18] sm:$0xff]
        %v1183 = vld [vmem:[%s1017] sm:$0x1]
        %v1185 = vlaneseq
        %v1186 = vshrl.u32 %v1185, 7
        %v1187 = vsub.s32 0, %v1186
        %v1188 = vrot.slane %v1183, %v1187
        %v1191 = vsel %vm1095, %v1082, 0
        %v1194 = vsel %vm1095, %v1083, 0
        %1196 = vmatprep.subr.mxu0 0.0
        %1197 = vmatpush1.msra.mxu0 %v1179
        %1198 = vmatprep.subr.mxu0 0.0
        %1199 = vmatpush1.msra.mxu0 %v1180
        %1200 = vmatprep.subr.mxu0 0.0
        %1201 = vmatpush1.msra.mxu0 %v1181
        %1202 = vmatprep.subr.mxu0 0.0
        %1203 = vmatpush1.msra.mxu0 %v1182
        %1204 = vmatprep.subr.mxu0 0.0
        %1205 = vmatpush1.msra.mxu0 0.0
        %1206 = vmatprep.subr.mxu0 0.0
        %1207 = vmatpush1.msra.mxu0 0.0
        %1208 = vmatprep.subr.mxu0 0.0
        %1209 = vmatpush1.msra.mxu0 0.0
        %1210 = vmatprep.subr.mxu0 0.0
        %1211 = vmatpush1.msra.mxu0 0.0
        %1212 = vmatprep.subr.mxu0 0.0
        %1213 = vmatpush1.msra.mxu0 0.0
        %1214 = vmatprep.subr.mxu0 0.0
        %1215 = vmatpush1.msra.mxu0 0.0
        %1216 = vmatprep.subr.mxu0 0.0
        %1217 = vmatpush1.msra.mxu0 0.0
        %1218 = vmatprep.subr.mxu0 0.0
        %1219 = vmatpush1.msra.mxu0 0.0
        %1220 = vmatprep.subr.mxu0 0.0
        %1221 = vmatpush1.msra.mxu0 0.0
        %1222 = vmatprep.subr.mxu0 0.0
        %1223 = vmatpush1.msra.mxu0 0.0
        %1224 = vmatprep.subr.mxu0 0.0
        %1225 = vmatpush1.msra.mxu0 0.0
        %1226 = vmatprep.subr.mxu0 0.0
        %1227 = vmatpush1.msra.mxu0 0.0
        %1228 = vmatprep.subr.mxu0 0.0
        %1229 = vmatpush1.msra.mxu0 0.0
        %1230 = vmatprep.subr.mxu0 0.0
        %1231 = vmatpush1.msra.mxu0 0.0
        %1232 = vmatprep.subr.mxu0 0.0
        %1233 = vmatpush1.msra.mxu0 0.0
        %1234 = vmatprep.subr.mxu0 0.0
        %1235 = vmatpush1.msra.mxu0 0.0
        %1236 = vmatprep.subr.mxu0 0.0
        %1237 = vmatpush1.msra.mxu0 0.0
        %1238 = vmatprep.subr.mxu0 0.0
        %1239 = vmatpush1.msra.mxu0 0.0
        %1240 = vmatprep.subr.mxu0 0.0
        %1241 = vmatpush1.msra.mxu0 0.0
        %1242 = vmatprep.subr.mxu0 0.0
        %1243 = vmatpush1.msra.mxu0 0.0
        %1244 = vmatprep.subr.mxu0 0.0
        %1245 = vmatpush1.msra.mxu0 0.0
        %1246 = vmatprep.subr.mxu0 0.0
        %1247 = vmatpush1.msra.mxu0 0.0
        %1248 = vmatprep.subr.mxu0 0.0
        %1249 = vmatpush1.msra.mxu0 0.0
        %1250 = vmatprep.subr.mxu0 0.0
        %1251 = vmatpush1.msra.mxu0 0.0
        %1252 = vmatprep.subr.mxu0 0.0
        %1253 = vmatpush1.msra.mxu0 0.0
        %1254 = vmatprep.subr.mxu0 0.0
        %1255 = vmatpush1.msra.mxu0 0.0
        %1256 = vmatprep.subr.mxu0 0.0
        %1257 = vmatpush1.msra.mxu0 0.0
        %1258 = vmatprep.subr.mxu0 0.0
        %1259 = vmatpush1.msra.mxu0 0.0
        %1260 = vmatprep.mubr.f32.mxu0 0.0
        %1261 = vmatmul.mubr.f32.gmra.mrb[0].mxu0 %v1191
        %v1262 = vpop.f32.mrb[0].mxu0
        %v1263 = vadd.f32 %v1188, %v1262
        %v1264 = vpop.f32.mrb[0].mxu0
        %1265 = vmatprep.mubr.f32.mxu0 0.0
        %1266 = vmatmul.mubr.f32.gmra.mrb[0].mxu0 %v1194
        %v1267 = vpop.f32.mrb[0].mxu0
        %v1268 = vadd.f32 %v1188, %v1267
        %v1269 = vpop.f32.mrb[0].mxu0
        %1270 = vdwg.mxu0
        %1271 = vst.msk [vmem:[#allocation4] sm:$0xff] %vm1095, %v1263
        %1272 = vst.msk [vmem:[#allocation4 + $0x8] sm:$0xff] %vm1095, %v1268
        %v1273 = vld [vmem:[%s1022] sm:$0xff]
        %v1274 = vld [vmem:[%s1022 + $0x8] sm:$0xff]
        %v1275 = vld [vmem:[%s1022 + $0x10] sm:$0xff]
        %v1276 = vld [vmem:[%s1022 + $0x18] sm:$0xff]
        %v1277 = vld [vmem:[%s1025] sm:$0x1]
        %v1279 = vlaneseq
        %v1280 = vshrl.u32 %v1279, 7
        %v1281 = vsub.s32 0, %v1280
        %v1282 = vrot.slane %v1277, %v1281
        %v1285 = vsel %vm1095, %v1074, 0
        %v1288 = vsel %vm1095, %v1075, 0
        %1290 = vmatprep.subr.mxu0 0.0
        %1291 = vmatpush1.msra.mxu0 %v1273
        %1292 = vmatprep.subr.mxu0 0.0
        %1293 = vmatpush1.msra.mxu0 %v1274
        %1294 = vmatprep.subr.mxu0 0.0
        %1295 = vmatpush1.msra.mxu0 %v1275
        %1296 = vmatprep.subr.mxu0 0.0
        %1297 = vmatpush1.msra.mxu0 %v1276
        %1298 = vmatprep.subr.mxu0 0.0
        %1299 = vmatpush1.msra.mxu0 0.0
        %1300 = vmatprep.subr.mxu0 0.0
        %1301 = vmatpush1.msra.mxu0 0.0
        %1302 = vmatprep.subr.mxu0 0.0
        %1303 = vmatpush1.msra.mxu0 0.0
        %1304 = vmatprep.subr.mxu0 0.0
        %1305 = vmatpush1.msra.mxu0 0.0
        %1306 = vmatprep.subr.mxu0 0.0
        %1307 = vmatpush1.msra.mxu0 0.0
        %1308 = vmatprep.subr.mxu0 0.0
        %1309 = vmatpush1.msra.mxu0 0.0
        %1310 = vmatprep.subr.mxu0 0.0
        %1311 = vmatpush1.msra.mxu0 0.0
        %1312 = vmatprep.subr.mxu0 0.0
        %1313 = vmatpush1.msra.mxu0 0.0
        %1314 = vmatprep.subr.mxu0 0.0
        %1315 = vmatpush1.msra.mxu0 0.0
        %1316 = vmatprep.subr.mxu0 0.0
        %1317 = vmatpush1.msra.mxu0 0.0
        %1318 = vmatprep.subr.mxu0 0.0
        %1319 = vmatpush1.msra.mxu0 0.0
        %1320 = vmatprep.subr.mxu0 0.0
        %1321 = vmatpush1.msra.mxu0 0.0
        %1322 = vmatprep.subr.mxu0 0.0
        %1323 = vmatpush1.msra.mxu0 0.0
        %1324 = vmatprep.subr.mxu0 0.0
        %1325 = vmatpush1.msra.mxu0 0.0
        %1326 = vmatprep.subr.mxu0 0.0
        %1327 = vmatpush1.msra.mxu0 0.0
        %1328 = vmatprep.subr.mxu0 0.0
        %1329 = vmatpush1.msra.mxu0 0.0
        %1330 = vmatprep.subr.mxu0 0.0
        %1331 = vmatpush1.msra.mxu0 0.0
        %1332 = vmatprep.subr.mxu0 0.0
        %1333 = vmatpush1.msra.mxu0 0.0
        %1334 = vmatprep.subr.mxu0 0.0
        %1335 = vmatpush1.msra.mxu0 0.0
        %1336 = vmatprep.subr.mxu0 0.0
        %1337 = vmatpush1.msra.mxu0 0.0
        %1338 = vmatprep.subr.mxu0 0.0
        %1339 = vmatpush1.msra.mxu0 0.0
        %1340 = vmatprep.subr.mxu0 0.0
        %1341 = vmatpush1.msra.mxu0 0.0
        %1342 = vmatprep.subr.mxu0 0.0
        %1343 = vmatpush1.msra.mxu0 0.0
        %1344 = vmatprep.subr.mxu0 0.0
        %1345 = vmatpush1.msra.mxu0 0.0
        %1346 = vmatprep.subr.mxu0 0.0
        %1347 = vmatpush1.msra.mxu0 0.0
        %1348 = vmatprep.subr.mxu0 0.0
        %1349 = vmatpush1.msra.mxu0 0.0
        %1350 = vmatprep.subr.mxu0 0.0
        %1351 = vmatpush1.msra.mxu0 0.0
        %1352 = vmatprep.subr.mxu0 0.0
        %1353 = vmatpush1.msra.mxu0 0.0
        %1354 = vmatprep.mubr.f32.mxu0 0.0
        %1355 = vmatmul.mubr.f32.gmra.mrb[0].mxu0 %v1285
        %v1356 = vpop.f32.mrb[0].mxu0
        %v1357 = vadd.f32 %v1282, %v1356
        %v1358 = vpop.f32.mrb[0].mxu0
        %1359 = vmatprep.mubr.f32.mxu0 0.0
        %1360 = vmatmul.mubr.f32.gmra.mrb[0].mxu0 %v1288
        %v1361 = vpop.f32.mrb[0].mxu0
        %v1362 = vadd.f32 %v1282, %v1361
        %v1363 = vpop.f32.mrb[0].mxu0
        %1364 = vdwg.mxu0
        %1365 = vst.msk [vmem:[#allocation5] sm:$0xff] %vm1095, %v1357
        %1366 = vst.msk [vmem:[#allocation5 + $0x8] sm:$0xff] %vm1095, %v1362
        loop: start=0, step=1, limit=2
        $region129: #{tpu_custom_call.1} parent=99 // loop_pre_header
          _
        $region130: #{tpu_custom_call.1} parent=99 // loop_header
          %s1368 = sphi 0, %s1372
          %p1369 = scmp.ge.s32.totalorder %s1368, 2
        $region131: #{tpu_custom_call.1} parent=99 // loop_header_branch
          %1371 = sbr.rel (%p1369) target = $region135
        $region132: #{tpu_custom_call.1} parent=99 // loop_body
          %s1373 = smul.u32 %s1368, 8
          %s1374 = scalar_lea.vmem [#allocation3], %s1373
          %v1375 = vld [vmem:[%s1374] sm:$0xff]
          %s1376 = scalar_lea.vmem [#allocation4], %s1373
          %v1377 = vld [vmem:[%s1376] sm:$0xff]
          %s1378 = scalar_lea.vmem [#allocation5], %s1373
          %v1379 = vld [vmem:[%s1378] sm:$0xff]
          %vm1380 = vcmask 64512
          %v1382 = vsel %vm1380, %v1375, 0
          %v1385 = vsel %vm1380, %v1377, 0
          %1387 = vmatprep.subr.mxu0 0.0
          %1388 = vmatpush1.xpose.msra.mxu0 %v1385
          %1389 = vmatprep.subr.mxu0 0.0
          %1390 = vmatpush1.xpose.msra.mxu0 0.0
          %1391 = vmatprep.subr.mxu0 0.0
          %1392 = vmatpush1.xpose.msra.mxu0 0.0
          %1393 = vmatprep.subr.mxu0 0.0
          %1394 = vmatpush1.xpose.msra.mxu0 0.0
          %1395 = vmatprep.subr.mxu0 0.0
          %1396 = vmatpush1.xpose.msra.mxu0 0.0
          %1397 = vmatprep.subr.mxu0 0.0
          %1398 = vmatpush1.xpose.msra.mxu0 0.0
          %1399 = vmatprep.subr.mxu0 0.0
          %1400 = vmatpush1.xpose.msra.mxu0 0.0
          %1401 = vmatprep.subr.mxu0 0.0
          %1402 = vmatpush1.xpose.msra.mxu0 0.0
          %1403 = vmatprep.subr.mxu0 0.0
          %1404 = vmatpush1.xpose.msra.mxu0 0.0
          %1405 = vmatprep.subr.mxu0 0.0
          %1406 = vmatpush1.xpose.msra.mxu0 0.0
          %1407 = vmatprep.subr.mxu0 0.0
          %1408 = vmatpush1.xpose.msra.mxu0 0.0
          %1409 = vmatprep.subr.mxu0 0.0
          %1410 = vmatpush1.xpose.msra.mxu0 0.0
          %1411 = vmatprep.subr.mxu0 0.0
          %1412 = vmatpush1.xpose.msra.mxu0 0.0
          %1413 = vmatprep.subr.mxu0 0.0
          %1414 = vmatpush1.xpose.msra.mxu0 0.0
          %1415 = vmatprep.subr.mxu0 0.0
          %1416 = vmatpush1.xpose.msra.mxu0 0.0
          %1417 = vmatprep.subr.mxu0 0.0
          %1418 = vmatpush1.xpose.msra.mxu0 0.0
          %1419 = vmatprep.subr.mxu0 0.0
          %1420 = vmatpush1.xpose.msra.mxu0 0.0
          %1421 = vmatprep.subr.mxu0 0.0
          %1422 = vmatpush1.xpose.msra.mxu0 0.0
          %1423 = vmatprep.subr.mxu0 0.0
          %1424 = vmatpush1.xpose.msra.mxu0 0.0
          %1425 = vmatprep.subr.mxu0 0.0
          %1426 = vmatpush1.xpose.msra.mxu0 0.0
          %1427 = vmatprep.subr.mxu0 0.0
          %1428 = vmatpush1.xpose.msra.mxu0 0.0
          %1429 = vmatprep.subr.mxu0 0.0
          %1430 = vmatpush1.xpose.msra.mxu0 0.0
          %1431 = vmatprep.subr.mxu0 0.0
          %1432 = vmatpush1.xpose.msra.mxu0 0.0
          %1433 = vmatprep.subr.mxu0 0.0
          %1434 = vmatpush1.xpose.msra.mxu0 0.0
          %1435 = vmatprep.subr.mxu0 0.0
          %1436 = vmatpush1.xpose.msra.mxu0 0.0
          %1437 = vmatprep.subr.mxu0 0.0
          %1438 = vmatpush1.xpose.msra.mxu0 0.0
          %1439 = vmatprep.subr.mxu0 0.0
          %1440 = vmatpush1.xpose.msra.mxu0 0.0
          %1441 = vmatprep.subr.mxu0 0.0
          %1442 = vmatpush1.xpose.msra.mxu0 0.0
          %1443 = vmatprep.subr.mxu0 0.0
          %1444 = vmatpush1.xpose.msra.mxu0 0.0
          %1445 = vmatprep.subr.mxu0 0.0
          %1446 = vmatpush1.xpose.msra.mxu0 0.0
          %1447 = vmatprep.subr.mxu0 0.0
          %1448 = vmatpush1.xpose.msra.mxu0 0.0
          %1449 = vmatprep.subr.mxu0 0.0
          %1450 = vmatpush1.xpose.msra.mxu0 0.0
          %1451 = vmatprep.mubr.f32.mxu0 0.0
          %1452 = vmatmul.mubr.f32.gmra.mrb[0].mxu0 %v1382
          %v1453 = vpop.f32.mrb[0].mxu0
          %v1454 = vadd.f32 0.0, %v1453
          %v1455 = vpop.f32.mrb[0].mxu0
          %1456 = vdwg.mxu0
          %v1457 = vmul.f32 %v1454, 0.35355338
          %v1458 = vsel %vm1380, %v1457, -inf
          %1459 = vmax.xlane.f32.xlu0 %v1458
          %v1460 = vpop.xlane.xlu0 %1459
          %v1461 = vsub.f32 %v1457, %v1460
          %v1462 = vmul.f32 %v1461, 1.442695
          %v1463 = vpow.pop %v1462
          %v1464 = vsel %vm1380, %v1463, 0.0
          %1465 = vadd.xlane.f32.xlu0 %v1464
          %v1466 = vpop.xlane.xlu0 %1465
          %v1467 = vrcp.pop %v1466
          %v1468 = vmul.f32 %v1466, %v1467
          %v1469 = vsub.f32 2.0, %v1468
          %v1470 = vmul.f32 %v1467, %v1469
          %v1471 = vmul.f32 %v1463, %v1470
          %v1472 = vadd.f32 %v1471, 0.0
          %v1474 = vsel %vm1380, %v1471, 0
          %1476 = vmatprep.subr.mxu0 0.0
          %1477 = vmatpush1.msra.mxu0 %v1379
          %1478 = vmatprep.subr.mxu0 0.0
          %1479 = vmatpush1.msra.mxu0 0.0
          %1480 = vmatprep.subr.mxu0 0.0
          %1481 = vmatpush1.msra.mxu0 0.0
          %1482 = vmatprep.subr.mxu0 0.0
          %1483 = vmatpush1.msra.mxu0 0.0
          %1484 = vmatprep.subr.mxu0 0.0
          %1485 = vmatpush1.msra.mxu0 0.0
          %1486 = vmatprep.subr.mxu0 0.0
          %1487 = vmatpush1.msra.mxu0 0.0
          %1488 = vmatprep.subr.mxu0 0.0
          %1489 = vmatpush1.msra.mxu0 0.0
          %1490 = vmatprep.subr.mxu0 0.0
          %1491 = vmatpush1.msra.mxu0 0.0
          %1492 = vmatprep.subr.mxu0 0.0
          %1493 = vmatpush1.msra.mxu0 0.0
          %1494 = vmatprep.subr.mxu0 0.0
          %1495 = vmatpush1.msra.mxu0 0.0
          %1496 = vmatprep.subr.mxu0 0.0
          %1497 = vmatpush1.msra.mxu0 0.0
          %1498 = vmatprep.subr.mxu0 0.0
          %1499 = vmatpush1.msra.mxu0 0.0
          %1500 = vmatprep.subr.mxu0 0.0
          %1501 = vmatpush1.msra.mxu0 0.0
          %1502 = vmatprep.subr.mxu0 0.0
          %1503 = vmatpush1.msra.mxu0 0.0
          %1504 = vmatprep.subr.mxu0 0.0
          %1505 = vmatpush1.msra.mxu0 0.0
          %1506 = vmatprep.subr.mxu0 0.0
          %1507 = vmatpush1.msra.mxu0 0.0
          %1508 = vmatprep.subr.mxu0 0.0
          %1509 = vmatpush1.msra.mxu0 0.0
          %1510 = vmatprep.subr.mxu0 0.0
          %1511 = vmatpush1.msra.mxu0 0.0
          %1512 = vmatprep.subr.mxu0 0.0
          %1513 = vmatpush1.msra.mxu0 0.0
          %1514 = vmatprep.subr.mxu0 0.0
          %1515 = vmatpush1.msra.mxu0 0.0
          %1516 = vmatprep.subr.mxu0 0.0
          %1517 = vmatpush1.msra.mxu0 0.0
          %1518 = vmatprep.subr.mxu0 0.0
          %1519 = vmatpush1.msra.mxu0 0.0
          %1520 = vmatprep.subr.mxu0 0.0
          %1521 = vmatpush1.msra.mxu0 0.0
          %1522 = vmatprep.subr.mxu0 0.0
          %1523 = vmatpush1.msra.mxu0 0.0
          %1524 = vmatprep.subr.mxu0 0.0
          %1525 = vmatpush1.msra.mxu0 0.0
          %1526 = vmatprep.subr.mxu0 0.0
          %1527 = vmatpush1.msra.mxu0 0.0
          %1528 = vmatprep.subr.mxu0 0.0
          %1529 = vmatpush1.msra.mxu0 0.0
          %1530 = vmatprep.subr.mxu0 0.0
          %1531 = vmatpush1.msra.mxu0 0.0
          %1532 = vmatprep.subr.mxu0 0.0
          %1533 = vmatpush1.msra.mxu0 0.0
          %1534 = vmatprep.subr.mxu0 0.0
          %1535 = vmatpush1.msra.mxu0 0.0
          %1536 = vmatprep.subr.mxu0 0.0
          %1537 = vmatpush1.msra.mxu0 0.0
          %1538 = vmatprep.subr.mxu0 0.0
          %1539 = vmatpush1.msra.mxu0 0.0
          %1540 = vmatprep.mubr.f32.mxu0 0.0
          %1541 = vmatmul.mubr.f32.gmra.mrb[0].mxu0 %v1474
          %v1542 = vpop.f32.mrb[0].mxu0
          %v1543 = vadd.f32 0.0, %v1542
          %v1544 = vpop.f32.mrb[0].mxu0
          %1545 = vdwg.mxu0
          %s1546 = scalar_lea.vmem [#allocation6], %s1373
          %1547 = vst.msk [vmem:[%s1546] sm:$0xff] %vm1380, %v1543
          %v1548 = vld [vmem:[%s1374] sm:$0xff]
          %v1549 = vld [vmem:[%s1376] sm:$0xff]
          %v1550 = vld [vmem:[%s1378] sm:$0xff]
          %1552 = vrot.lane.b32.xlu0 %v1548, 120
          %v1553 = vpop.permute.xlu0 %1552
          %1555 = vrot.lane.b32.xlu0 %v1549, 120
          %v1556 = vpop.permute.xlu0 %1555
          %v1557 = vsel %vm1380, %v1553, 0
          %v1559 = vsel %vm1380, %v1556, 0
          %1561 = vmatprep.subr.mxu0 0.0
          %1562 = vmatpush1.xpose.msra.mxu0 %v1559
          %1563 = vmatprep.subr.mxu0 0.0
          %1564 = vmatpush1.xpose.msra.mxu0 0.0
          %1565 = vmatprep.subr.mxu0 0.0
          %1566 = vmatpush1.xpose.msra.mxu0 0.0
          %1567 = vmatprep.subr.mxu0 0.0
          %1568 = vmatpush1.xpose.msra.mxu0 0.0
          %1569 = vmatprep.subr.mxu0 0.0
          %1570 = vmatpush1.xpose.msra.mxu0 0.0
          %1571 = vmatprep.subr.mxu0 0.0
          %1572 = vmatpush1.xpose.msra.mxu0 0.0
          %1573 = vmatprep.subr.mxu0 0.0
          %1574 = vmatpush1.xpose.msra.mxu0 0.0
          %1575 = vmatprep.subr.mxu0 0.0
          %1576 = vmatpush1.xpose.msra.mxu0 0.0
          %1577 = vmatprep.subr.mxu0 0.0
          %1578 = vmatpush1.xpose.msra.mxu0 0.0
          %1579 = vmatprep.subr.mxu0 0.0
          %1580 = vmatpush1.xpose.msra.mxu0 0.0
          %1581 = vmatprep.subr.mxu0 0.0
          %1582 = vmatpush1.xpose.msra.mxu0 0.0
          %1583 = vmatprep.subr.mxu0 0.0
          %1584 = vmatpush1.xpose.msra.mxu0 0.0
          %1585 = vmatprep.subr.mxu0 0.0
          %1586 = vmatpush1.xpose.msra.mxu0 0.0
          %1587 = vmatprep.subr.mxu0 0.0
          %1588 = vmatpush1.xpose.msra.mxu0 0.0
          %1589 = vmatprep.subr.mxu0 0.0
          %1590 = vmatpush1.xpose.msra.mxu0 0.0
          %1591 = vmatprep.subr.mxu0 0.0
          %1592 = vmatpush1.xpose.msra.mxu0 0.0
          %1593 = vmatprep.subr.mxu0 0.0
          %1594 = vmatpush1.xpose.msra.mxu0 0.0
          %1595 = vmatprep.subr.mxu0 0.0
          %1596 = vmatpush1.xpose.msra.mxu0 0.0
          %1597 = vmatprep.subr.mxu0 0.0
          %1598 = vmatpush1.xpose.msra.mxu0 0.0
          %1599 = vmatprep.subr.mxu0 0.0
          %1600 = vmatpush1.xpose.msra.mxu0 0.0
          %1601 = vmatprep.subr.mxu0 0.0
          %1602 = vmatpush1.xpose.msra.mxu0 0.0
          %1603 = vmatprep.subr.mxu0 0.0
          %1604 = vmatpush1.xpose.msra.mxu0 0.0
          %1605 = vmatprep.subr.mxu0 0.0
          %1606 = vmatpush1.xpose.msra.mxu0 0.0
          %1607 = vmatprep.subr.mxu0 0.0
          %1608 = vmatpush1.xpose.msra.mxu0 0.0
          %1609 = vmatprep.subr.mxu0 0.0
          %1610 = vmatpush1.xpose.msra.mxu0 0.0
          %1611 = vmatprep.subr.mxu0 0.0
          %1612 = vmatpush1.xpose.msra.mxu0 0.0
          %1613 = vmatprep.subr.mxu0 0.0
          %1614 = vmatpush1.xpose.msra.mxu0 0.0
          %1615 = vmatprep.subr.mxu0 0.0
          %1616 = vmatpush1.xpose.msra.mxu0 0.0
          %1617 = vmatprep.subr.mxu0 0.0
          %1618 = vmatpush1.xpose.msra.mxu0 0.0
          %1619 = vmatprep.subr.mxu0 0.0
          %1620 = vmatpush1.xpose.msra.mxu0 0.0
          %1621 = vmatprep.subr.mxu0 0.0
          %1622 = vmatpush1.xpose.msra.mxu0 0.0
          %1623 = vmatprep.subr.mxu0 0.0
          %1624 = vmatpush1.xpose.msra.mxu0 0.0
          %1625 = vmatprep.mubr.f32.mxu0 0.0
          %1626 = vmatmul.mubr.f32.gmra.mrb[0].mxu0 %v1557
          %v1627 = vpop.f32.mrb[0].mxu0
          %v1628 = vadd.f32 0.0, %v1627
          %v1629 = vpop.f32.mrb[0].mxu0
          %1630 = vdwg.mxu0
          %v1631 = vmul.f32 %v1628, 0.35355338
          %v1632 = vsel %vm1380, %v1631, -inf
          %1633 = vmax.xlane.f32.xlu0 %v1632
          %v1634 = vpop.xlane.xlu0 %1633
          %v1635 = vsub.f32 %v1631, %v1634
          %v1636 = vmul.f32 %v1635, 1.442695
          %v1637 = vpow.pop %v1636
          %v1638 = vsel %vm1380, %v1637, 0.0
          %1639 = vadd.xlane.f32.xlu0 %v1638
          %v1640 = vpop.xlane.xlu0 %1639
          %v1641 = vrcp.pop %v1640
          %v1642 = vmul.f32 %v1640, %v1641
          %v1643 = vsub.f32 2.0, %v1642
          %v1644 = vmul.f32 %v1641, %v1643
          %v1645 = vmul.f32 %v1637, %v1644
          %v1646 = vadd.f32 %v1472, %v1645
          %1648 = vrot.lane.b32.xlu0 %v1550, 120
          %v1649 = vpop.permute.xlu0 %1648
          %v1652 = vsel %vm1380, %v1645, 0
          %1654 = vmatprep.subr.mxu0 0.0
          %1655 = vmatpush1.msra.mxu0 %v1649
          %1656 = vmatprep.subr.mxu0 0.0
          %1657 = vmatpush1.msra.mxu0 0.0
          %1658 = vmatprep.subr.mxu0 0.0
          %1659 = vmatpush1.msra.mxu0 0.0
          %1660 = vmatprep.subr.mxu0 0.0
          %1661 = vmatpush1.msra.mxu0 0.0
          %1662 = vmatprep.subr.mxu0 0.0
          %1663 = vmatpush1.msra.mxu0 0.0
          %1664 = vmatprep.subr.mxu0 0.0
          %1665 = vmatpush1.msra.mxu0 0.0
          %1666 = vmatprep.subr.mxu0 0.0
          %1667 = vmatpush1.msra.mxu0 0.0
          %1668 = vmatprep.subr.mxu0 0.0
          %1669 = vmatpush1.msra.mxu0 0.0
          %1670 = vmatprep.subr.mxu0 0.0
          %1671 = vmatpush1.msra.mxu0 0.0
          %1672 = vmatprep.subr.mxu0 0.0
          %1673 = vmatpush1.msra.mxu0 0.0
          %1674 = vmatprep.subr.mxu0 0.0
          %1675 = vmatpush1.msra.mxu0 0.0
          %1676 = vmatprep.subr.mxu0 0.0
          %1677 = vmatpush1.msra.mxu0 0.0
          %1678 = vmatprep.subr.mxu0 0.0
          %1679 = vmatpush1.msra.mxu0 0.0
          %1680 = vmatprep.subr.mxu0 0.0
          %1681 = vmatpush1.msra.mxu0 0.0
          %1682 = vmatprep.subr.mxu0 0.0
          %1683 = vmatpush1.msra.mxu0 0.0
          %1684 = vmatprep.subr.mxu0 0.0
          %1685 = vmatpush1.msra.mxu0 0.0
          %1686 = vmatprep.subr.mxu0 0.0
          %1687 = vmatpush1.msra.mxu0 0.0
          %1688 = vmatprep.subr.mxu0 0.0
          %1689 = vmatpush1.msra.mxu0 0.0
          %1690 = vmatprep.subr.mxu0 0.0
          %1691 = vmatpush1.msra.mxu0 0.0
          %1692 = vmatprep.subr.mxu0 0.0
          %1693 = vmatpush1.msra.mxu0 0.0
          %1694 = vmatprep.subr.mxu0 0.0
          %1695 = vmatpush1.msra.mxu0 0.0
          %1696 = vmatprep.subr.mxu0 0.0
          %1697 = vmatpush1.msra.mxu0 0.0
          %1698 = vmatprep.subr.mxu0 0.0
          %1699 = vmatpush1.msra.mxu0 0.0
          %1700 = vmatprep.subr.mxu0 0.0
          %1701 = vmatpush1.msra.mxu0 0.0
          %1702 = vmatprep.subr.mxu0 0.0
          %1703 = vmatpush1.msra.mxu0 0.0
          %1704 = vmatprep.subr.mxu0 0.0
          %1705 = vmatpush1.msra.mxu0 0.0
          %1706 = vmatprep.subr.mxu0 0.0
          %1707 = vmatpush1.msra.mxu0 0.0
          %1708 = vmatprep.subr.mxu0 0.0
          %1709 = vmatpush1.msra.mxu0 0.0
          %1710 = vmatprep.subr.mxu0 0.0
          %1711 = vmatpush1.msra.mxu0 0.0
          %1712 = vmatprep.subr.mxu0 0.0
          %1713 = vmatpush1.msra.mxu0 0.0
          %1714 = vmatprep.subr.mxu0 0.0
          %1715 = vmatpush1.msra.mxu0 0.0
          %1716 = vmatprep.subr.mxu0 0.0
          %1717 = vmatpush1.msra.mxu0 0.0
          %1718 = vmatprep.mubr.f32.mxu0 0.0
          %1719 = vmatmul.mubr.f32.gmra.mrb[0].mxu0 %v1652
          %v1720 = vpop.f32.mrb[0].mxu0
          %v1721 = vadd.f32 0.0, %v1720
          %v1722 = vpop.f32.mrb[0].mxu0
          %1723 = vdwg.mxu0
          %1725 = vrot.lane.b32.xlu0 %v1721, 8
          %v1726 = vpop.permute.xlu0 %1725
          %vm1728 = vcmask 130112
          %1729 = vst.msk [vmem:[%s1546] sm:$0xff] %vm1728, %v1726
          %v1730 = vld [vmem:[%s1374] sm:$0xff]
          %v1731 = vld [vmem:[%s1376] sm:$0xff]
          %v1732 = vld [vmem:[%s1378] sm:$0xff]
          %1734 = vrot.lane.b32.xlu0 %v1730, 112
          %v1735 = vpop.permute.xlu0 %1734
          %1737 = vrot.lane.b32.xlu0 %v1731, 112
          %v1738 = vpop.permute.xlu0 %1737
          %v1739 = vsel %vm1380, %v1735, 0
          %v1741 = vsel %vm1380, %v1738, 0
          %1743 = vmatprep.subr.mxu0 0.0
          %1744 = vmatpush1.xpose.msra.mxu0 %v1741
          %1745 = vmatprep.subr.mxu0 0.0
          %1746 = vmatpush1.xpose.msra.mxu0 0.0
          %1747 = vmatprep.subr.mxu0 0.0
          %1748 = vmatpush1.xpose.msra.mxu0 0.0
          %1749 = vmatprep.subr.mxu0 0.0
          %1750 = vmatpush1.xpose.msra.mxu0 0.0
          %1751 = vmatprep.subr.mxu0 0.0
          %1752 = vmatpush1.xpose.msra.mxu0 0.0
          %1753 = vmatprep.subr.mxu0 0.0
          %1754 = vmatpush1.xpose.msra.mxu0 0.0
          %1755 = vmatprep.subr.mxu0 0.0
          %1756 = vmatpush1.xpose.msra.mxu0 0.0
          %1757 = vmatprep.subr.mxu0 0.0
          %1758 = vmatpush1.xpose.msra.mxu0 0.0
          %1759 = vmatprep.subr.mxu0 0.0
          %1760 = vmatpush1.xpose.msra.mxu0 0.0
          %1761 = vmatprep.subr.mxu0 0.0
          %1762 = vmatpush1.xpose.msra.mxu0 0.0
          %1763 = vmatprep.subr.mxu0 0.0
          %1764 = vmatpush1.xpose.msra.mxu0 0.0
          %1765 = vmatprep.subr.mxu0 0.0
          %1766 = vmatpush1.xpose.msra.mxu0 0.0
          %1767 = vmatprep.subr.mxu0 0.0
          %1768 = vmatpush1.xpose.msra.mxu0 0.0
          %1769 = vmatprep.subr.mxu0 0.0
          %1770 = vmatpush1.xpose.msra.mxu0 0.0
          %1771 = vmatprep.subr.mxu0 0.0
          %1772 = vmatpush1.xpose.msra.mxu0 0.0
          %1773 = vmatprep.subr.mxu0 0.0
          %1774 = vmatpush1.xpose.msra.mxu0 0.0
          %1775 = vmatprep.subr.mxu0 0.0
          %1776 = vmatpush1.xpose.msra.mxu0 0.0
          %1777 = vmatprep.subr.mxu0 0.0
          %1778 = vmatpush1.xpose.msra.mxu0 0.0
          %1779 = vmatprep.subr.mxu0 0.0
          %1780 = vmatpush1.xpose.msra.mxu0 0.0
          %1781 = vmatprep.subr.mxu0 0.0
          %1782 = vmatpush1.xpose.msra.mxu0 0.0
          %1783 = vmatprep.subr.mxu0 0.0
          %1784 = vmatpush1.xpose.msra.mxu0 0.0
          %1785 = vmatprep.subr.mxu0 0.0
          %1786 = vmatpush1.xpose.msra.mxu0 0.0
          %1787 = vmatprep.subr.mxu0 0.0
          %1788 = vmatpush1.xpose.msra.mxu0 0.0
          %1789 = vmatprep.subr.mxu0 0.0
          %1790 = vmatpush1.xpose.msra.mxu0 0.0
          %1791 = vmatprep.subr.mxu0 0.0
          %1792 = vmatpush1.xpose.msra.mxu0 0.0
          %1793 = vmatprep.subr.mxu0 0.0
          %1794 = vmatpush1.xpose.msra.mxu0 0.0
          %1795 = vmatprep.subr.mxu0 0.0
          %1796 = vmatpush1.xpose.msra.mxu0 0.0
          %1797 = vmatprep.subr.mxu0 0.0
          %1798 = vmatpush1.xpose.msra.mxu0 0.0
          %1799 = vmatprep.subr.mxu0 0.0
          %1800 = vmatpush1.xpose.msra.mxu0 0.0
          %1801 = vmatprep.subr.mxu0 0.0
          %1802 = vmatpush1.xpose.msra.mxu0 0.0
          %1803 = vmatprep.subr.mxu0 0.0
          %1804 = vmatpush1.xpose.msra.mxu0 0.0
          %1805 = vmatprep.subr.mxu0 0.0
          %1806 = vmatpush1.xpose.msra.mxu0 0.0
          %1807 = vmatprep.mubr.f32.mxu0 0.0
          %1808 = vmatmul.mubr.f32.gmra.mrb[0].mxu0 %v1739
          %v1809 = vpop.f32.mrb[0].mxu0
          %v1810 = vadd.f32 0.0, %v1809
          %v1811 = vpop.f32.mrb[0].mxu0
          %1812 = vdwg.mxu0
          %v1813 = vmul.f32 %v1810, 0.35355338
          %v1814 = vsel %vm1380, %v1813, -inf
          %1815 = vmax.xlane.f32.xlu0 %v1814
          %v1816 = vpop.xlane.xlu0 %1815
          %v1817 = vsub.f32 %v1813, %v1816
          %v1818 = vmul.f32 %v1817, 1.442695
          %v1819 = vpow.pop %v1818
          %v1820 = vsel %vm1380, %v1819, 0.0
          %1821 = vadd.xlane.f32.xlu0 %v1820
          %v1822 = vpop.xlane.xlu0 %1821
          %v1823 = vrcp.pop %v1822
          %v1824 = vmul.f32 %v1822, %v1823
          %v1825 = vsub.f32 2.0, %v1824
          %v1826 = vmul.f32 %v1823, %v1825
          %v1827 = vmul.f32 %v1819, %v1826
          %v1828 = vadd.f32 %v1646, %v1827
          %1830 = vrot.lane.b32.xlu0 %v1732, 112
          %v1831 = vpop.permute.xlu0 %1830
          %v1834 = vsel %vm1380, %v1827, 0
          %1836 = vmatprep.subr.mxu0 0.0
          %1837 = vmatpush1.msra.mxu0 %v1831
          %1838 = vmatprep.subr.mxu0 0.0
          %1839 = vmatpush1.msra.mxu0 0.0
          %1840 = vmatprep.subr.mxu0 0.0
          %1841 = vmatpush1.msra.mxu0 0.0
          %1842 = vmatprep.subr.mxu0 0.0
          %1843 = vmatpush1.msra.mxu0 0.0
          %1844 = vmatprep.subr.mxu0 0.0
          %1845 = vmatpush1.msra.mxu0 0.0
          %1846 = vmatprep.subr.mxu0 0.0
          %1847 = vmatpush1.msra.mxu0 0.0
          %1848 = vmatprep.subr.mxu0 0.0
          %1849 = vmatpush1.msra.mxu0 0.0
          %1850 = vmatprep.subr.mxu0 0.0
          %1851 = vmatpush1.msra.mxu0 0.0
          %1852 = vmatprep.subr.mxu0 0.0
          %1853 = vmatpush1.msra.mxu0 0.0
          %1854 = vmatprep.subr.mxu0 0.0
          %1855 = vmatpush1.msra.mxu0 0.0
          %1856 = vmatprep.subr.mxu0 0.0
          %1857 = vmatpush1.msra.mxu0 0.0
          %1858 = vmatprep.subr.mxu0 0.0
          %1859 = vmatpush1.msra.mxu0 0.0
          %1860 = vmatprep.subr.mxu0 0.0
          %1861 = vmatpush1.msra.mxu0 0.0
          %1862 = vmatprep.subr.mxu0 0.0
          %1863 = vmatpush1.msra.mxu0 0.0
          %1864 = vmatprep.subr.mxu0 0.0
          %1865 = vmatpush1.msra.mxu0 0.0
          %1866 = vmatprep.subr.mxu0 0.0
          %1867 = vmatpush1.msra.mxu0 0.0
          %1868 = vmatprep.subr.mxu0 0.0
          %1869 = vmatpush1.msra.mxu0 0.0
          %1870 = vmatprep.subr.mxu0 0.0
          %1871 = vmatpush1.msra.mxu0 0.0
          %1872 = vmatprep.subr.mxu0 0.0
          %1873 = vmatpush1.msra.mxu0 0.0
          %1874 = vmatprep.subr.mxu0 0.0
          %1875 = vmatpush1.msra.mxu0 0.0
          %1876 = vmatprep.subr.mxu0 0.0
          %1877 = vmatpush1.msra.mxu0 0.0
          %1878 = vmatprep.subr.mxu0 0.0
          %1879 = vmatpush1.msra.mxu0 0.0
          %1880 = vmatprep.subr.mxu0 0.0
          %1881 = vmatpush1.msra.mxu0 0.0
          %1882 = vmatprep.subr.mxu0 0.0
          %1883 = vmatpush1.msra.mxu0 0.0
          %1884 = vmatprep.subr.mxu0 0.0
          %1885 = vmatpush1.msra.mxu0 0.0
          %1886 = vmatprep.subr.mxu0 0.0
          %1887 = vmatpush1.msra.mxu0 0.0
          %1888 = vmatprep.subr.mxu0 0.0
          %1889 = vmatpush1.msra.mxu0 0.0
          %1890 = vmatprep.subr.mxu0 0.0
          %1891 = vmatpush1.msra.mxu0 0.0
          %1892 = vmatprep.subr.mxu0 0.0
          %1893 = vmatpush1.msra.mxu0 0.0
          %1894 = vmatprep.subr.mxu0 0.0
          %1895 = vmatpush1.msra.mxu0 0.0
          %1896 = vmatprep.subr.mxu0 0.0
          %1897 = vmatpush1.msra.mxu0 0.0
          %1898 = vmatprep.subr.mxu0 0.0
          %1899 = vmatpush1.msra.mxu0 0.0
          %1900 = vmatprep.mubr.f32.mxu0 0.0
          %1901 = vmatmul.mubr.f32.gmra.mrb[0].mxu0 %v1834
          %v1902 = vpop.f32.mrb[0].mxu0
          %v1903 = vadd.f32 0.0, %v1902
          %v1904 = vpop.f32.mrb[0].mxu0
          %1905 = vdwg.mxu0
          %1907 = vrot.lane.b32.xlu0 %v1903, 16
          %v1908 = vpop.permute.xlu0 %1907
          %vm1910 = vcmask 195712
          %1911 = vst.msk [vmem:[%s1546] sm:$0xff] %vm1910, %v1908
          %v1912 = vld [vmem:[%s1374] sm:$0xff]
          %v1913 = vld [vmem:[%s1376] sm:$0xff]
          %v1914 = vld [vmem:[%s1378] sm:$0xff]
          %1916 = vrot.lane.b32.xlu0 %v1912, 104
          %v1917 = vpop.permute.xlu0 %1916
          %1919 = vrot.lane.b32.xlu0 %v1913, 104
          %v1920 = vpop.permute.xlu0 %1919
          %v1921 = vsel %vm1380, %v1917, 0
          %v1923 = vsel %vm1380, %v1920, 0
          %1925 = vmatprep.subr.mxu0 0.0
          %1926 = vmatpush1.xpose.msra.mxu0 %v1923
          %1927 = vmatprep.subr.mxu0 0.0
          %1928 = vmatpush1.xpose.msra.mxu0 0.0
          %1929 = vmatprep.subr.mxu0 0.0
          %1930 = vmatpush1.xpose.msra.mxu0 0.0
          %1931 = vmatprep.subr.mxu0 0.0
          %1932 = vmatpush1.xpose.msra.mxu0 0.0
          %1933 = vmatprep.subr.mxu0 0.0
          %1934 = vmatpush1.xpose.msra.mxu0 0.0
          %1935 = vmatprep.subr.mxu0 0.0
          %1936 = vmatpush1.xpose.msra.mxu0 0.0
          %1937 = vmatprep.subr.mxu0 0.0
          %1938 = vmatpush1.xpose.msra.mxu0 0.0
          %1939 = vmatprep.subr.mxu0 0.0
          %1940 = vmatpush1.xpose.msra.mxu0 0.0
          %1941 = vmatprep.subr.mxu0 0.0
          %1942 = vmatpush1.xpose.msra.mxu0 0.0
          %1943 = vmatprep.subr.mxu0 0.0
          %1944 = vmatpush1.xpose.msra.mxu0 0.0
          %1945 = vmatprep.subr.mxu0 0.0
          %1946 = vmatpush1.xpose.msra.mxu0 0.0
          %1947 = vmatprep.subr.mxu0 0.0
          %1948 = vmatpush1.xpose.msra.mxu0 0.0
          %1949 = vmatprep.subr.mxu0 0.0
          %1950 = vmatpush1.xpose.msra.mxu0 0.0
          %1951 = vmatprep.subr.mxu0 0.0
          %1952 = vmatpush1.xpose.msra.mxu0 0.0
          %1953 = vmatprep.subr.mxu0 0.0
          %1954 = vmatpush1.xpose.msra.mxu0 0.0
          %1955 = vmatprep.subr.mxu0 0.0
          %1956 = vmatpush1.xpose.msra.mxu0 0.0
          %1957 = vmatprep.subr.mxu0 0.0
          %1958 = vmatpush1.xpose.msra.mxu0 0.0
          %1959 = vmatprep.subr.mxu0 0.0
          %1960 = vmatpush1.xpose.msra.mxu0 0.0
          %1961 = vmatprep.subr.mxu0 0.0
          %1962 = vmatpush1.xpose.msra.mxu0 0.0
          %1963 = vmatprep.subr.mxu0 0.0
          %1964 = vmatpush1.xpose.msra.mxu0 0.0
          %1965 = vmatprep.subr.mxu0 0.0
          %1966 = vmatpush1.xpose.msra.mxu0 0.0
          %1967 = vmatprep.subr.mxu0 0.0
          %1968 = vmatpush1.xpose.msra.mxu0 0.0
          %1969 = vmatprep.subr.mxu0 0.0
          %1970 = vmatpush1.xpose.msra.mxu0 0.0
          %1971 = vmatprep.subr.mxu0 0.0
          %1972 = vmatpush1.xpose.msra.mxu0 0.0
          %1973 = vmatprep.subr.mxu0 0.0
          %1974 = vmatpush1.xpose.msra.mxu0 0.0
          %1975 = vmatprep.subr.mxu0 0.0
          %1976 = vmatpush1.xpose.msra.mxu0 0.0
          %1977 = vmatprep.subr.mxu0 0.0
          %1978 = vmatpush1.xpose.msra.mxu0 0.0
          %1979 = vmatprep.subr.mxu0 0.0
          %1980 = vmatpush1.xpose.msra.mxu0 0.0
          %1981 = vmatprep.subr.mxu0 0.0
          %1982 = vmatpush1.xpose.msra.mxu0 0.0
          %1983 = vmatprep.subr.mxu0 0.0
          %1984 = vmatpush1.xpose.msra.mxu0 0.0
          %1985 = vmatprep.subr.mxu0 0.0
          %1986 = vmatpush1.xpose.msra.mxu0 0.0
          %1987 = vmatprep.subr.mxu0 0.0
          %1988 = vmatpush1.xpose.msra.mxu0 0.0
          %1989 = vmatprep.mubr.f32.mxu0 0.0
          %1990 = vmatmul.mubr.f32.gmra.mrb[0].mxu0 %v1921
          %v1991 = vpop.f32.mrb[0].mxu0
          %v1992 = vadd.f32 0.0, %v1991
          %v1993 = vpop.f32.mrb[0].mxu0
          %1994 = vdwg.mxu0
          %v1995 = vmul.f32 %v1992, 0.35355338
          %v1996 = vsel %vm1380, %v1995, -inf
          %1997 = vmax.xlane.f32.xlu0 %v1996
          %v1998 = vpop.xlane.xlu0 %1997
          %v1999 = vsub.f32 %v1995, %v1998
          %v2000 = vmul.f32 %v1999, 1.442695
          %v2001 = vpow.pop %v2000
          %v2002 = vsel %vm1380, %v2001, 0.0
          %2003 = vadd.xlane.f32.xlu0 %v2002
          %v2004 = vpop.xlane.xlu0 %2003
          %v2005 = vrcp.pop %v2004
          %v2006 = vmul.f32 %v2004, %v2005
          %v2007 = vsub.f32 2.0, %v2006
          %v2008 = vmul.f32 %v2005, %v2007
          %v2009 = vmul.f32 %v2001, %v2008
          %v2010 = vadd.f32 %v1828, %v2009
          %2012 = vrot.lane.b32.xlu0 %v1914, 104
          %v2013 = vpop.permute.xlu0 %2012
          %v2016 = vsel %vm1380, %v2009, 0
          %2018 = vmatprep.subr.mxu0 0.0
          %2019 = vmatpush1.msra.mxu0 %v2013
          %2020 = vmatprep.subr.mxu0 0.0
          %2021 = vmatpush1.msra.mxu0 0.0
          %2022 = vmatprep.subr.mxu0 0.0
          %2023 = vmatpush1.msra.mxu0 0.0
          %2024 = vmatprep.subr.mxu0 0.0
          %2025 = vmatpush1.msra.mxu0 0.0
          %2026 = vmatprep.subr.mxu0 0.0
          %2027 = vmatpush1.msra.mxu0 0.0
          %2028 = vmatprep.subr.mxu0 0.0
          %2029 = vmatpush1.msra.mxu0 0.0
          %2030 = vmatprep.subr.mxu0 0.0
          %2031 = vmatpush1.msra.mxu0 0.0
          %2032 = vmatprep.subr.mxu0 0.0
          %2033 = vmatpush1.msra.mxu0 0.0
          %2034 = vmatprep.subr.mxu0 0.0
          %2035 = vmatpush1.msra.mxu0 0.0
          %2036 = vmatprep.subr.mxu0 0.0
          %2037 = vmatpush1.msra.mxu0 0.0
          %2038 = vmatprep.subr.mxu0 0.0
          %2039 = vmatpush1.msra.mxu0 0.0
          %2040 = vmatprep.subr.mxu0 0.0
          %2041 = vmatpush1.msra.mxu0 0.0
          %2042 = vmatprep.subr.mxu0 0.0
          %2043 = vmatpush1.msra.mxu0 0.0
          %2044 = vmatprep.subr.mxu0 0.0
          %2045 = vmatpush1.msra.mxu0 0.0
          %2046 = vmatprep.subr.mxu0 0.0
          %2047 = vmatpush1.msra.mxu0 0.0
          %2048 = vmatprep.subr.mxu0 0.0
          %2049 = vmatpush1.msra.mxu0 0.0
          %2050 = vmatprep.subr.mxu0 0.0
          %2051 = vmatpush1.msra.mxu0 0.0
          %2052 = vmatprep.subr.mxu0 0.0
          %2053 = vmatpush1.msra.mxu0 0.0
          %2054 = vmatprep.subr.mxu0 0.0
          %2055 = vmatpush1.msra.mxu0 0.0
          %2056 = vmatprep.subr.mxu0 0.0
          %2057 = vmatpush1.msra.mxu0 0.0
          %2058 = vmatprep.subr.mxu0 0.0
          %2059 = vmatpush1.msra.mxu0 0.0
          %2060 = vmatprep.subr.mxu0 0.0
          %2061 = vmatpush1.msra.mxu0 0.0
          %2062 = vmatprep.subr.mxu0 0.0
          %2063 = vmatpush1.msra.mxu0 0.0
          %2064 = vmatprep.subr.mxu0 0.0
          %2065 = vmatpush1.msra.mxu0 0.0
          %2066 = vmatprep.subr.mxu0 0.0
          %2067 = vmatpush1.msra.mxu0 0.0
          %2068 = vmatprep.subr.mxu0 0.0
          %2069 = vmatpush1.msra.mxu0 0.0
          %2070 = vmatprep.subr.mxu0 0.0
          %2071 = vmatpush1.msra.mxu0 0.0
          %2072 = vmatprep.subr.mxu0 0.0
          %2073 = vmatpush1.msra.mxu0 0.0
          %2074 = vmatprep.subr.mxu0 0.0
          %2075 = vmatpush1.msra.mxu0 0.0
          %2076 = vmatprep.subr.mxu0 0.0
          %2077 = vmatpush1.msra.mxu0 0.0
          %2078 = vmatprep.subr.mxu0 0.0
          %2079 = vmatpush1.msra.mxu0 0.0
          %2080 = vmatprep.subr.mxu0 0.0
          %2081 = vmatpush1.msra.mxu0 0.0
          %2082 = vmatprep.mubr.f32.mxu0 0.0
          %2083 = vmatmul.mubr.f32.gmra.mrb[0].mxu0 %v2016
          %v2084 = vpop.f32.mrb[0].mxu0
          %v2085 = vadd.f32 0.0, %v2084
          %v2086 = vpop.f32.mrb[0].mxu0
          %2087 = vdwg.mxu0
          %2089 = vrot.lane.b32.xlu0 %v2085, 24
          %v2090 = vpop.permute.xlu0 %2089
          %vm2092 = vcmask 261312
          %2093 = vst.msk [vmem:[%s1546] sm:$0xff] %vm2092, %v2090
          %v2094 = vmul.f32 %v2010, 0.25
          %s2095 = scalar_lea.vmem %s1061, %s1373
          %2096 = vst.msk [vmem:[%s2095] sm:$0xff] %vm1380, %v2094
        $region133: #{tpu_custom_call.1} parent=99 // loop_footer
          %s1372 = sadd.s32 1, %s1368
        $region134: #{tpu_custom_call.1} parent=99 // loop_footer_branch
          %1367 = sbr.rel target = $region130
        $region135: #{tpu_custom_call.1} parent=99 // loop_exit
          _
        %v2097 = vld [vmem:[#allocation6] sm:$0xff]
        %v2098 = vld [vmem:[#allocation6 + $0x8] sm:$0xff]
        %v2099 = vld [vmem:[%s866] sm:$0xff]
        %v2100 = vld [vmem:[%s866 + $0x8] sm:$0xff]
        %v2101 = vld [vmem:[%s866 + $0x10] sm:$0xff]
        %v2102 = vld [vmem:[%s866 + $0x18] sm:$0xff]
        %v2103 = vld [vmem:[%s1028] sm:$0x1]
        %v2105 = vlaneseq
        %v2106 = vshrl.u32 %v2105, 7
        %v2107 = vsub.s32 0, %v2106
        %v2108 = vrot.slane %v2103, %v2107
        %v2111 = vsel %vm1095, %v2097, 0
        %v2114 = vsel %vm1095, %v2098, 0
        %2116 = vmatprep.subr.mxu0 0.0
        %2117 = vmatpush1.msra.mxu0 %v2099
        %2118 = vmatprep.subr.mxu0 0.0
        %2119 = vmatpush1.msra.mxu0 %v2100
        %2120 = vmatprep.subr.mxu0 0.0
        %2121 = vmatpush1.msra.mxu0 %v2101
        %2122 = vmatprep.subr.mxu0 0.0
        %2123 = vmatpush1.msra.mxu0 %v2102
        %2124 = vmatprep.subr.mxu0 0.0
        %2125 = vmatpush1.msra.mxu0 0.0
        %2126 = vmatprep.subr.mxu0 0.0
        %2127 = vmatpush1.msra.mxu0 0.0
        %2128 = vmatprep.subr.mxu0 0.0
        %2129 = vmatpush1.msra.mxu0 0.0
        %2130 = vmatprep.subr.mxu0 0.0
        %2131 = vmatpush1.msra.mxu0 0.0
        %2132 = vmatprep.subr.mxu0 0.0
        %2133 = vmatpush1.msra.mxu0 0.0
        %2134 = vmatprep.subr.mxu0 0.0
        %2135 = vmatpush1.msra.mxu0 0.0
        %2136 = vmatprep.subr.mxu0 0.0
        %2137 = vmatpush1.msra.mxu0 0.0
        %2138 = vmatprep.subr.mxu0 0.0
        %2139 = vmatpush1.msra.mxu0 0.0
        %2140 = vmatprep.subr.mxu0 0.0
        %2141 = vmatpush1.msra.mxu0 0.0
        %2142 = vmatprep.subr.mxu0 0.0
        %2143 = vmatpush1.msra.mxu0 0.0
        %2144 = vmatprep.subr.mxu0 0.0
        %2145 = vmatpush1.msra.mxu0 0.0
        %2146 = vmatprep.subr.mxu0 0.0
        %2147 = vmatpush1.msra.mxu0 0.0
        %2148 = vmatprep.subr.mxu0 0.0
        %2149 = vmatpush1.msra.mxu0 0.0
        %2150 = vmatprep.subr.mxu0 0.0
        %2151 = vmatpush1.msra.mxu0 0.0
        %2152 = vmatprep.subr.mxu0 0.0
        %2153 = vmatpush1.msra.mxu0 0.0
        %2154 = vmatprep.subr.mxu0 0.0
        %2155 = vmatpush1.msra.mxu0 0.0
        %2156 = vmatprep.subr.mxu0 0.0
        %2157 = vmatpush1.msra.mxu0 0.0
        %2158 = vmatprep.subr.mxu0 0.0
        %2159 = vmatpush1.msra.mxu0 0.0
        %2160 = vmatprep.subr.mxu0 0.0
        %2161 = vmatpush1.msra.mxu0 0.0
        %2162 = vmatprep.subr.mxu0 0.0
        %2163 = vmatpush1.msra.mxu0 0.0
        %2164 = vmatprep.subr.mxu0 0.0
        %2165 = vmatpush1.msra.mxu0 0.0
        %2166 = vmatprep.subr.mxu0 0.0
        %2167 = vmatpush1.msra.mxu0 0.0
        %2168 = vmatprep.subr.mxu0 0.0
        %2169 = vmatpush1.msra.mxu0 0.0
        %2170 = vmatprep.subr.mxu0 0.0
        %2171 = vmatpush1.msra.mxu0 0.0
        %2172 = vmatprep.subr.mxu0 0.0
        %2173 = vmatpush1.msra.mxu0 0.0
        %2174 = vmatprep.subr.mxu0 0.0
        %2175 = vmatpush1.msra.mxu0 0.0
        %2176 = vmatprep.subr.mxu0 0.0
        %2177 = vmatpush1.msra.mxu0 0.0
        %2178 = vmatprep.subr.mxu0 0.0
        %2179 = vmatpush1.msra.mxu0 0.0
        %2180 = vmatprep.mubr.f32.mxu0 0.0
        %2181 = vmatmul.mubr.f32.gmra.mrb[0].mxu0 %v2111
        %v2182 = vpop.f32.mrb[0].mxu0
        %v2183 = vadd.f32 %v2108, %v2182
        %v2184 = vpop.f32.mrb[0].mxu0
        %2185 = vmatprep.mubr.f32.mxu0 0.0
        %2186 = vmatmul.mubr.f32.gmra.mrb[0].mxu0 %v2114
        %v2187 = vpop.f32.mrb[0].mxu0
        %v2188 = vadd.f32 %v2108, %v2187
        %v2189 = vpop.f32.mrb[0].mxu0
        %2190 = vdwg.mxu0
        %v2191 = vadd.f32 %v1072, %v2183
        %v2192 = vadd.f32 %v1073, %v2188
        %v2193 = vld [vmem:[%s1031] sm:$0x1]
        %v2194 = vld [vmem:[%s1034] sm:$0x1]
        %v2195 = vsel %vm1095, %v2191, 0.0
        %2196 = vadd.xlane.f32.xlu0 %v2195
        %v2197 = vpop.xlane.xlu0 %2196
        %v2198 = vsel %vm1095, %v2192, 0.0
        %2199 = vadd.xlane.f32.xlu0 %v2198
        %v2200 = vpop.xlane.xlu0 %2199
        %v2201 = vrcp.pop 32.0
        %v2202 = vmul.f32 %v2197, %v2201
        %v2203 = vmul.f32 %v2200, %v2201
        %v2204 = vsub.f32 %v2191, %v2202
        %v2205 = vsub.f32 %v2192, %v2203
        %v2206 = vmul.f32 %v2204, %v2204
        %v2207 = vmul.f32 %v2205, %v2205
        %v2208 = vsel %vm1095, %v2206, 0.0
        %2209 = vadd.xlane.f32.xlu0 %v2208
        %v2210 = vpop.xlane.xlu0 %2209
        %v2211 = vsel %vm1095, %v2207, 0.0
        %2212 = vadd.xlane.f32.xlu0 %v2211
        %v2213 = vpop.xlane.xlu0 %2212
        %v2214 = vmul.f32 %v2210, %v2201
        %v2215 = vmul.f32 %v2213, %v2201
        %v2216 = vadd.f32 %v2214, 1e-05
        %v2217 = vadd.f32 %v2215, 1e-05
        %v2218 = vrsqrt.pop %v2216
        %v2219 = vrsqrt.pop %v2217
        %v2220 = vmul.f32 %v2204, %v2218
        %v2221 = vmul.f32 %v2205, %v2219
        %v2223 = vlaneseq
        %v2224 = vshrl.u32 %v2223, 7
        %v2225 = vsub.s32 0, %v2224
        %v2226 = vrot.slane %v2193, %v2225
        %v2228 = vmul.f32 %v2220, %v2226
        %v2229 = vmul.f32 %v2221, %v2226
        %v2231 = vlaneseq
        %v2232 = vshrl.u32 %v2231, 7
        %v2233 = vsub.s32 0, %v2232
        %v2234 = vrot.slane %v2194, %v2233
        %v2236 = vadd.f32 %v2228, %v2234
        %v2237 = vadd.f32 %v2229, %v2234
        %v2238 = vld [vmem:[%s875] sm:$0xff]
        %v2239 = vld [vmem:[%s875 + $0x8] sm:$0xff]
        %v2240 = vld [vmem:[%s875 + $0x10] sm:$0xff]
        %v2241 = vld [vmem:[%s875 + $0x18] sm:$0xff]
        %v2242 = vld [vmem:[%s1037] sm:$0x1]
        %v2244 = vlaneseq
        %v2245 = vshrl.u32 %v2244, 7
        %v2246 = vsub.s32 0, %v2245
        %v2247 = vrot.slane %v2242, %v2246
        %v2250 = vsel %vm1095, %v2236, 0
        %v2253 = vsel %vm1095, %v2237, 0
        %2255 = vmatprep.subr.mxu0 0.0
        %2256 = vmatpush1.msra.mxu0 %v2238
        %2257 = vmatprep.subr.mxu0 0.0
        %2258 = vmatpush1.msra.mxu0 %v2239
        %2259 = vmatprep.subr.mxu0 0.0
        %2260 = vmatpush1.msra.mxu0 %v2240
        %2261 = vmatprep.subr.mxu0 0.0
        %2262 = vmatpush1.msra.mxu0 %v2241
        %2263 = vmatprep.subr.mxu0 0.0
        %2264 = vmatpush1.msra.mxu0 0.0
        %2265 = vmatprep.subr.mxu0 0.0
        %2266 = vmatpush1.msra.mxu0 0.0
        %2267 = vmatprep.subr.mxu0 0.0
        %2268 = vmatpush1.msra.mxu0 0.0
        %2269 = vmatprep.subr.mxu0 0.0
        %2270 = vmatpush1.msra.mxu0 0.0
        %2271 = vmatprep.subr.mxu0 0.0
        %2272 = vmatpush1.msra.mxu0 0.0
        %2273 = vmatprep.subr.mxu0 0.0
        %2274 = vmatpush1.msra.mxu0 0.0
        %2275 = vmatprep.subr.mxu0 0.0
        %2276 = vmatpush1.msra.mxu0 0.0
        %2277 = vmatprep.subr.mxu0 0.0
        %2278 = vmatpush1.msra.mxu0 0.0
        %2279 = vmatprep.subr.mxu0 0.0
        %2280 = vmatpush1.msra.mxu0 0.0
        %2281 = vmatprep.subr.mxu0 0.0
        %2282 = vmatpush1.msra.mxu0 0.0
        %2283 = vmatprep.subr.mxu0 0.0
        %2284 = vmatpush1.msra.mxu0 0.0
        %2285 = vmatprep.subr.mxu0 0.0
        %2286 = vmatpush1.msra.mxu0 0.0
        %2287 = vmatprep.subr.mxu0 0.0
        %2288 = vmatpush1.msra.mxu0 0.0
        %2289 = vmatprep.subr.mxu0 0.0
        %2290 = vmatpush1.msra.mxu0 0.0
        %2291 = vmatprep.subr.mxu0 0.0
        %2292 = vmatpush1.msra.mxu0 0.0
        %2293 = vmatprep.subr.mxu0 0.0
        %2294 = vmatpush1.msra.mxu0 0.0
        %2295 = vmatprep.subr.mxu0 0.0
        %2296 = vmatpush1.msra.mxu0 0.0
        %2297 = vmatprep.subr.mxu0 0.0
        %2298 = vmatpush1.msra.mxu0 0.0
        %2299 = vmatprep.subr.mxu0 0.0
        %2300 = vmatpush1.msra.mxu0 0.0
        %2301 = vmatprep.subr.mxu0 0.0
        %2302 = vmatpush1.msra.mxu0 0.0
        %2303 = vmatprep.subr.mxu0 0.0
        %2304 = vmatpush1.msra.mxu0 0.0
        %2305 = vmatprep.subr.mxu0 0.0
        %2306 = vmatpush1.msra.mxu0 0.0
        %2307 = vmatprep.subr.mxu0 0.0
        %2308 = vmatpush1.msra.mxu0 0.0
        %2309 = vmatprep.subr.mxu0 0.0
        %2310 = vmatpush1.msra.mxu0 0.0
        %2311 = vmatprep.subr.mxu0 0.0
        %2312 = vmatpush1.msra.mxu0 0.0
        %2313 = vmatprep.subr.mxu0 0.0
        %2314 = vmatpush1.msra.mxu0 0.0
        %2315 = vmatprep.subr.mxu0 0.0
        %2316 = vmatpush1.msra.mxu0 0.0
        %2317 = vmatprep.subr.mxu0 0.0
        %2318 = vmatpush1.msra.mxu0 0.0
        %2319 = vmatprep.mubr.f32.mxu0 0.0
        %2320 = vmatmul.mubr.f32.gmra.mrb[0].mxu0 %v2250
        %v2321 = vpop.f32.mrb[0].mxu0
        %v2322 = vadd.f32 %v2247, %v2321
        %v2323 = vpop.f32.mrb[0].mxu0
        %2324 = vmatprep.mubr.f32.mxu0 0.0
        %2325 = vmatmul.mubr.f32.gmra.mrb[0].mxu0 %v2253
        %v2326 = vpop.f32.mrb[0].mxu0
        %v2327 = vadd.f32 %v2247, %v2326
        %v2328 = vpop.f32.mrb[0].mxu0
        %2329 = vdwg.mxu0
        %v2330 = vmax.f32 %v2322, 0.0
        %v2331 = vmax.f32 %v2327, 0.0
        %v2332 = vld [vmem:[%s1042] sm:$0xff]
        %v2333 = vld [vmem:[%s1042 + $0x8] sm:$0xff]
        %v2334 = vld [vmem:[%s1042 + $0x10] sm:$0xff]
        %v2335 = vld [vmem:[%s1042 + $0x18] sm:$0xff]
        %v2336 = vld [vmem:[%s1042 + $0x20] sm:$0xff]
        %v2337 = vld [vmem:[%s1042 + $0x28] sm:$0xff]
        %v2338 = vld [vmem:[%s1042 + $0x30] sm:$0xff]
        %v2339 = vld [vmem:[%s1042 + $0x38] sm:$0xff]
        %v2340 = vld [vmem:[%s1045] sm:$0x1]
        %v2342 = vlaneseq
        %v2343 = vshrl.u32 %v2342, 7
        %v2344 = vsub.s32 0, %v2343
        %v2345 = vrot.slane %v2340, %v2344
        %vm2347 = vcmask 523264
        %v2349 = vsel %vm2347, %v2330, 0
        %v2352 = vsel %vm2347, %v2331, 0
        %2354 = vmatprep.subr.mxu0 0.0
        %2355 = vmatpush1.msra.mxu0 %v2332
        %2356 = vmatprep.subr.mxu0 0.0
        %2357 = vmatpush1.msra.mxu0 %v2333
        %2358 = vmatprep.subr.mxu0 0.0
        %2359 = vmatpush1.msra.mxu0 %v2334
        %2360 = vmatprep.subr.mxu0 0.0
        %2361 = vmatpush1.msra.mxu0 %v2335
        %2362 = vmatprep.subr.mxu0 0.0
        %2363 = vmatpush1.msra.mxu0 %v2336
        %2364 = vmatprep.subr.mxu0 0.0
        %2365 = vmatpush1.msra.mxu0 %v2337
        %2366 = vmatprep.subr.mxu0 0.0
        %2367 = vmatpush1.msra.mxu0 %v2338
        %2368 = vmatprep.subr.mxu0 0.0
        %2369 = vmatpush1.msra.mxu0 %v2339
        %2370 = vmatprep.subr.mxu0 0.0
        %2371 = vmatpush1.msra.mxu0 0.0
        %2372 = vmatprep.subr.mxu0 0.0
        %2373 = vmatpush1.msra.mxu0 0.0
        %2374 = vmatprep.subr.mxu0 0.0
        %2375 = vmatpush1.msra.mxu0 0.0
        %2376 = vmatprep.subr.mxu0 0.0
        %2377 = vmatpush1.msra.mxu0 0.0
        %2378 = vmatprep.subr.mxu0 0.0
        %2379 = vmatpush1.msra.mxu0 0.0
        %2380 = vmatprep.subr.mxu0 0.0
        %2381 = vmatpush1.msra.mxu0 0.0
        %2382 = vmatprep.subr.mxu0 0.0
        %2383 = vmatpush1.msra.mxu0 0.0
        %2384 = vmatprep.subr.mxu0 0.0
        %2385 = vmatpush1.msra.mxu0 0.0
        %2386 = vmatprep.subr.mxu0 0.0
        %2387 = vmatpush1.msra.mxu0 0.0
        %2388 = vmatprep.subr.mxu0 0.0
        %2389 = vmatpush1.msra.mxu0 0.0
        %2390 = vmatprep.subr.mxu0 0.0
        %2391 = vmatpush1.msra.mxu0 0.0
        %2392 = vmatprep.subr.mxu0 0.0
        %2393 = vmatpush1.msra.mxu0 0.0
        %2394 = vmatprep.subr.mxu0 0.0
        %2395 = vmatpush1.msra.mxu0 0.0
        %2396 = vmatprep.subr.mxu0 0.0
        %2397 = vmatpush1.msra.mxu0 0.0
        %2398 = vmatprep.subr.mxu0 0.0
        %2399 = vmatpush1.msra.mxu0 0.0
        %2400 = vmatprep.subr.mxu0 0.0
        %2401 = vmatpush1.msra.mxu0 0.0
        %2402 = vmatprep.subr.mxu0 0.0
        %2403 = vmatpush1.msra.mxu0 0.0
        %2404 = vmatprep.subr.mxu0 0.0
        %2405 = vmatpush1.msra.mxu0 0.0
        %2406 = vmatprep.subr.mxu0 0.0
        %2407 = vmatpush1.msra.mxu0 0.0
        %2408 = vmatprep.subr.mxu0 0.0
        %2409 = vmatpush1.msra.mxu0 0.0
        %2410 = vmatprep.subr.mxu0 0.0
        %2411 = vmatpush1.msra.mxu0 0.0
        %2412 = vmatprep.subr.mxu0 0.0
        %2413 = vmatpush1.msra.mxu0 0.0
        %2414 = vmatprep.subr.mxu0 0.0
        %2415 = vmatpush1.msra.mxu0 0.0
        %2416 = vmatprep.subr.mxu0 0.0
        %2417 = vmatpush1.msra.mxu0 0.0
        %2418 = vmatprep.mubr.f32.mxu0 0.0
        %2419 = vmatmul.mubr.f32.gmra.mrb[0].mxu0 %v2349
        %v2420 = vpop.f32.mrb[0].mxu0
        %v2421 = vadd.f32 %v2345, %v2420
        %v2422 = vpop.f32.mrb[0].mxu0
        %2423 = vmatprep.mubr.f32.mxu0 0.0
        %2424 = vmatmul.mubr.f32.gmra.mrb[0].mxu0 %v2352
        %v2425 = vpop.f32.mrb[0].mxu0
        %v2426 = vadd.f32 %v2345, %v2425
        %v2427 = vpop.f32.mrb[0].mxu0
        %2428 = vdwg.mxu0
        %v2429 = vadd.f32 %v2236, %v2421
        %v2430 = vadd.f32 %v2237, %v2426
        %v2431 = vld [vmem:[%s1048] sm:$0x1]
        %v2432 = vld [vmem:[%s1051] sm:$0x1]
        %v2433 = vsel %vm1095, %v2429, 0.0
        %2434 = vadd.xlane.f32.xlu0 %v2433
        %v2435 = vpop.xlane.xlu0 %2434
        %v2436 = vsel %vm1095, %v2430, 0.0
        %2437 = vadd.xlane.f32.xlu0 %v2436
        %v2438 = vpop.xlane.xlu0 %2437
        %v2439 = vmul.f32 %v2435, %v2201
        %v2440 = vmul.f32 %v2438, %v2201
        %v2441 = vsub.f32 %v2429, %v2439
        %v2442 = vsub.f32 %v2430, %v2440
        %v2443 = vmul.f32 %v2441, %v2441
        %v2444 = vmul.f32 %v2442, %v2442
        %v2445 = vsel %vm1095, %v2443, 0.0
        %2446 = vadd.xlane.f32.xlu0 %v2445
        %v2447 = vpop.xlane.xlu0 %2446
        %v2448 = vsel %vm1095, %v2444, 0.0
        %2449 = vadd.xlane.f32.xlu0 %v2448
        %v2450 = vpop.xlane.xlu0 %2449
        %v2451 = vmul.f32 %v2447, %v2201
        %v2452 = vmul.f32 %v2450, %v2201
        %v2453 = vadd.f32 %v2451, 1e-05
        %v2454 = vadd.f32 %v2452, 1e-05
        %v2455 = vrsqrt.pop %v2453
        %v2456 = vrsqrt.pop %v2454
        %v2457 = vmul.f32 %v2441, %v2455
        %v2458 = vmul.f32 %v2442, %v2456
        %v2460 = vlaneseq
        %v2461 = vshrl.u32 %v2460, 7
        %v2462 = vsub.s32 0, %v2461
        %v2463 = vrot.slane %v2431, %v2462
        %v2465 = vmul.f32 %v2457, %v2463
        %v2466 = vmul.f32 %v2458, %v2463
        %v2468 = vlaneseq
        %v2469 = vshrl.u32 %v2468, 7
        %v2470 = vsub.s32 0, %v2469
        %v2471 = vrot.slane %v2432, %v2470
        %v2473 = vadd.f32 %v2465, %v2471
        %v2474 = vadd.f32 %v2466, %v2471
        %2475 = vst.msk [vmem:[#allocation2] sm:$0xff] %vm1095, %v2473
        %2476 = vst.msk [vmem:[#allocation2 + $0x8] sm:$0xff] %vm1095, %v2474
        %2477 = vst.msk [vmem:[%s986] sm:$0xff] %vm1095, %v2473
        %2478 = vst.msk [vmem:[%s986 + $0x8] sm:$0xff] %vm1095, %v2474
        %s2479 = sand.u32 %s581, 1
        %s2480 = scalar_lea.sflag [#allocation9], %s2479
        %s2481 = sand.u32 %s581, 1
        %s2482 = smul.addr %s2481, 16
        %s2483 = scalar_lea.vmem [#allocation17], %s2482
        %s2484 = smul.u32 2, %s43
        %p2485 = scmp.lt.s32.totalorder %s44, 1
        %s2486 = scalar_select %p2485, %s44, 1
        %p2487 = scmp.lt.s32.totalorder %s2484, 1
        %s2488 = scalar_select %p2487, %s2484, 1
        %s2489 = smul.addr %s2486, 2
        %s2490 = sadd.s32 %s2488, %s2489
        %s2491 = smul.addr %s2490, 8
        %s2492 = scalar_lea.vmem %s21, %s2491
        // Predicated region
        $region136: #{tpu_custom_call.1} parent=99 // pred_check
          %p2493 = pneg %p591
        $region137: #{tpu_custom_call.1} parent=99 // pred_check_branch
          %2495 = sbr.rel (%p2493) target = $region139
        $region138: #{tpu_custom_call.1} parent=99 // pred_region
          %s2496 = smul.u32 2, %s43
          %s2498 = ssub.s32 256, 256
          %2499 = vsyncadd %s2480, %s2498
          %s2500 = smul.addr %s44, 2
          %s2501 = sadd.s32 %s2496, %s2500
          %s2502 = smul.addr %s2501, 128
          %s2503 = scalar_lea.hbm %s20, %s2502
          %s2504 = sshll.u32 %s2483, 4
          %s2505 = int_to_ptr.vmem [resolvable:$true] %s2504
          %2510 = dma.vmem_to_hbm [thread:$0]  %s2505, 256, %s2503, %s2480, 128, 128, 8
        $region139: #{tpu_custom_call.1} parent=99 // pred_fallthru
          _
        // Predicated region
        $region140: #{tpu_custom_call.1} parent=99 // pred_check
          %p2511 = pneg %p619
        $region141: #{tpu_custom_call.1} parent=99 // pred_check_branch
          %2513 = sbr.rel (%p2511) target = $region143
        $region142: #{tpu_custom_call.1} parent=99 // pred_region
          %s2514 = smul.u32 2, %s43
        $region143: #{tpu_custom_call.1} parent=99 // pred_fallthru
          _
      $region100: #{tpu_custom_call.1} parent=5 // pred_fallthru
        _
      %p2515 = scmp.le.s32.totalorder 2, %s34
      // Predicated region
      $region144: #{tpu_custom_call.1} parent=5 // pred_check
        %p2516 = pneg %p2515
      $region145: #{tpu_custom_call.1} parent=5 // pred_check_branch
        %2518 = sbr.rel (%p2516) target = $region147
      $region146: #{tpu_custom_call.1} parent=5 // pred_region
        %s2519 = ssub.s32 %s34, 2
        // Predicated region
        $region148: #{tpu_custom_call.1} parent=146 // pred_check
          %p2520 = pneg %p597
        $region149: #{tpu_custom_call.1} parent=146 // pred_check_branch
          %2522 = sbr.rel (%p2520) target = $region151
        $region150: #{tpu_custom_call.1} parent=146 // pred_region
          %s2523 = sand.u32 %s582, 1
          %s2524 = scalar_lea.sflag [#allocation9], %s2523
          %s2525 = sand.u32 %s582, 1
          %s2526 = smul.addr %s2525, 16
          %s2527 = scalar_lea.vmem [#allocation17], %s2526
          %2528 = dma.done %s2524, 256
        $region151: #{tpu_custom_call.1} parent=146 // pred_fallthru
          _
        // Predicated region
        $region152: #{tpu_custom_call.1} parent=146 // pred_check
          %p2529 = pneg %p625
        $region153: #{tpu_custom_call.1} parent=146 // pred_check_branch
          %2531 = sbr.rel (%p2529) target = $region155
        $region154: #{tpu_custom_call.1} parent=146 // pred_region
          %s2532 = smul.u32 2, %s45
          %p2533 = scmp.lt.s32.totalorder %s46, 1
          %s2534 = scalar_select %p2533, %s46, 1
          %p2535 = scmp.lt.s32.totalorder %s2532, 1
          %s2536 = scalar_select %p2535, %s2532, 1
          %s2537 = smul.addr %s2534, 2
          %s2538 = sadd.s32 %s2536, %s2537
          %s2539 = smul.addr %s2538, 8
          %s2540 = scalar_lea.vmem %s21, %s2539
        $region155: #{tpu_custom_call.1} parent=146 // pred_fallthru
          _
      $region147: #{tpu_custom_call.1} parent=5 // pred_fallthru
        _
    $region6: #{tpu_custom_call.1} parent=1 // loop_footer
      %s38 = sadd.s32 1, %s34
    $region7: #{tpu_custom_call.1} parent=1 // loop_footer_branch
      %33 = sbr.rel target = $region3
    $region8: #{tpu_custom_call.1} parent=1 // loop_exit
      _
    %2541 = vsyncpa [#allocation8], 1
    %s2542 = scalar_lea.sflag [#allocation8], 1
    %2543 = vsyncpa %s2542, 1
    %2544 = vsyncpa [#allocation11], 1
    %2545 = vsyncpa [#allocation14], 1
    %2546 = vsyncpa [#allocation9], 1
    %s2547 = scalar_lea.sflag [#allocation9], 1
    %2548 = vsyncpa %s2547, 1

</llo_original>
